<compile_context>
chip_gen: v6e
topology: v6e:2x2x1
jax: 0.10.0
libtpu: 0.0.40
codegen_flags: <defaults>
</compile_context>

<pallas_src>
import functools
import math

import jax
import jax.numpy as jnp
import numpy as np
from jax import lax
from jax.experimental import pallas as pl
from jax.experimental.pallas import tpu as pltpu


D_MODEL = 39          # self.input_feat_dim is hard-coded to 39 in the module
FFN_MULT = 4          # MulT TransformerEncoderLayer: fc1 = Linear(D, 4D)
LANE = 128            # TPU lane width


def _round_up(x, m):
    return (x + m - 1) // m * m


def _pick_batch_block(B, T):
    """Largest per-block batch that still yields >=2 grid blocks (one per v7x TC)
    while keeping the (rows, 128) activation block sublane-legal (rows % 8 == 0).
    Falls back to a single full-size block (always layout-legal)."""
    for blk in range(B, 0, -1):
        if B % blk:
            continue
        if B // blk >= 2 and (T * blk) % 8 == 0:
            return blk
    return B


# ------------------------------ fused kernel --------------------------------

def _bertphone_kernel(
    # per-batch-block input (embedded, lane-padded, batch-major rows)
    xemb_ref,
    # stacked per-layer weights (VMEM-resident across the whole grid)
    wqkv_ref, bqkv_ref, wout_ref, bout_ref, ln0g_ref, ln0b_ref,
    wfc1_ref, bfc1_ref, wfc2_ref, bfc2_ref, ln1g_ref, ln1b_ref,
    # final norm + fused heads
    lnfg_ref, lnfb_ref, whead_ref,
    # outputs (per batch block)
    x_ref, ctc_ref, rec_ref,
    *, T, Bblk, D, H, P, PP, num_layers):
    rows = x_ref.shape[0]              # Bblk * T
    DP = x_ref.shape[-1]               # 128 (padded feature width)
    hd = D // H                        # 3

    lane = lax.broadcasted_iota(jnp.int32, (1, DP), 1)
    feat_mask = (lane < D).astype(jnp.float32)        # real features only

    def layernorm(z, g, b):
        # mean/var over the REAL D features (padded lanes are zero / masked)
        zm = z * feat_mask
        mean = jnp.sum(zm, axis=-1, keepdims=True) * (1.0 / D)
        cent = (z - mean) * feat_mask
        var = jnp.sum(cent * cent, axis=-1, keepdims=True) * (1.0 / D)
        inv = lax.rsqrt(var + 1e-5)
        return cent * inv * g + b                     # padded gamma/beta are 0

    def layer_body(li, x):
        # ================= self-attention block (pre-norm) ==================
        h = layernorm(x, ln0g_ref[li], ln0b_ref[li])
        qkv = jnp.dot(h.astype(jnp.bfloat16), wqkv_ref[li],
                      preferred_element_type=jnp.float32) + bqkv_ref[li]
        q = qkv[:, 0:DP]               # scaling already folded into packed weights
        k = qkv[:, DP:2 * DP]
        v = qkv[:, 2 * DP:3 * DP]
        qb = q.reshape(Bblk, T, DP)    # rows are batch-major -> direct reshape
        kb = k.reshape(Bblk, T, DP)
        vb = v.reshape(Bblk, T, DP)

        attn = jnp.zeros((Bblk, T, DP), jnp.float32)
        for hh in range(H):            # head_dim = 3: per-head masked MXU matmuls
            mh = ((lane >= hh * hd) & (lane < (hh + 1) * hd)).astype(jnp.float32)
            s = jnp.einsum('bid,bjd->bij', qb * mh, kb,
                           preferred_element_type=jnp.float32)     # (Bblk, T, T)
            s = s - jnp.max(s, axis=-1, keepdims=True)
            p = jnp.exp(s)
            p = p / jnp.sum(p, axis=-1, keepdims=True)             # exact softmax
            o = jnp.einsum('bij,bjd->bid', p, vb,
                           preferred_element_type=jnp.float32)     # (Bblk, T, DP)
            attn = attn + o * mh       # keep only this head's 3 feature lanes
        attn = attn.reshape(rows, DP)
        attn = jnp.dot(attn.astype(jnp.bfloat16), wout_ref[li],
                       preferred_element_type=jnp.float32) + bout_ref[li]
        x = x + attn

        # =================== feed-forward block (pre-norm) ==================
        h = layernorm(x, ln1g_ref[li], ln1b_ref[li])
        h = jnp.dot(h.astype(jnp.bfloat16), wfc1_ref[li],
                    preferred_element_type=jnp.float32) + bfc1_ref[li]
        h = jnp.maximum(h, 0.0)
        h = jnp.dot(h.astype(jnp.bfloat16), wfc2_ref[li],
                    preferred_element_type=jnp.float32) + bfc2_ref[li]
        return x + h

    x = lax.fori_loop(0, num_layers, layer_body, xemb_ref[...])

    # ============ final LayerNorm + fused 1x1-conv heads =====================
    xf = layernorm(x, lnfg_ref[...], lnfb_ref[...])
    x_ref[...] = xf                                   # transformer output (padded)

    heads = jnp.dot(xf.astype(jnp.bfloat16), whead_ref[...],
                    preferred_element_type=jnp.float32)   # (rows, PP + ODP)
    logits = heads[:, :PP]
    rec = heads[:, PP:]

    # CTC head: log_softmax over the REAL P phone channels
    pmask = lax.broadcasted_iota(jnp.int32, logits.shape, 1) < P
    mx = jnp.max(jnp.where(pmask, logits, jnp.float32(-1e30)), axis=-1, keepdims=True)
    sh = logits - mx
    ex = jnp.where(pmask, jnp.exp(sh), 0.0)
    lse = jnp.log(jnp.sum(ex, axis=-1, keepdims=True))
    ctc_ref[...] = (sh - lse).astype(ctc_ref.dtype)
    rec_ref[...] = rec.astype(rec_ref.dtype)


# ------------------------- parameters (PyTorch layout) -----------------------

def init_params(key, num_phones, out_feature_dim, num_layers):
    D, F = D_MODEL, FFN_MULT * D_MODEL

    def dense(k, shape, scale=0.05):
        return scale * jax.random.normal(k, shape, dtype=jnp.float32)

    layers = []
    for _ in range(num_layers):
        key, *ks = jax.random.split(key, 5)
        layers.append(dict(
            in_proj_w=dense(ks[0], (3 * D, D)), in_proj_b=jnp.zeros((3 * D,), jnp.float32),
            out_proj_w=dense(ks[1], (D, D)),    out_proj_b=jnp.zeros((D,), jnp.float32),
            ln0_g=jnp.ones((D,), jnp.float32),  ln0_b=jnp.zeros((D,), jnp.float32),
            fc1_w=dense(ks[2], (F, D)),         fc1_b=jnp.zeros((F,), jnp.float32),
            fc2_w=dense(ks[3], (D, F)),         fc2_b=jnp.zeros((D,), jnp.float32),
            ln1_g=jnp.ones((D,), jnp.float32),  ln1_b=jnp.zeros((D,), jnp.float32),
        ))
    key, k1, k2 = jax.random.split(key, 3)
    return dict(
        layers=layers,
        lnf_g=jnp.ones((D,), jnp.float32), lnf_b=jnp.zeros((D,), jnp.float32),
        proj_ctc_w=dense(k1, (num_phones, D)),        # Conv1d(39, P, 1, bias=False)
        proj_rec_w=dense(k2, (out_feature_dim, D)),   # Conv1d(39, out_dim, 1, bias=False)
    )


def pack_params(params, num_heads):
    """Pad / pre-transpose / layer-stack the PyTorch-layout params once (outside jit).
    Matmul weights are stored in bf16; biases / LayerNorm params stay f32.
    The attention scaling (head_dim**-0.5) is folded into the q weights & bias."""
    D, F = D_MODEL, FFN_MULT * D_MODEL
    assert D % num_heads == 0
    hd = D // num_heads
    scaling = float(hd) ** -0.5
    DP, FP = LANE, _round_up(F, LANE)
    layers = params["layers"]
    L = len(layers)

    w_qkv = np.zeros((L, DP, 3 * DP), np.float32)
    b_qkv = np.zeros((L, 1, 3 * DP), np.float32)
    w_out = np.zeros((L, DP, DP), np.float32)
    b_out = np.zeros((L, 1, DP), np.float32)
    ln0_g = np.zeros((L, 1, DP), np.float32)
    ln0_b = np.zeros((L, 1, DP), np.float32)
    w_fc1 = np.zeros((L, DP, FP), np.float32)
    b_fc1 = np.zeros((L, 1, FP), np.float32)
    w_fc2 = np.zeros((L, FP, DP), np.float32)
    b_fc2 = np.zeros((L, 1, DP), np.float32)
    ln1_g = np.zeros((L, 1, DP), np.float32)
    ln1_b = np.zeros((L, 1, DP), np.float32)

    for i, lp in enumerate(layers):
        ipw = np.asarray(lp["in_proj_w"], np.float32)   # (3D, D); y = x @ W.T
        ipb = np.asarray(lp["in_proj_b"], np.float32)
        for s in range(3):                              # q / k / v into 128-aligned slots
            sc = scaling if s == 0 else 1.0             # fold attention scaling into q
            w_qkv[i, :D, s * DP:s * DP + D] = sc * ipw[s * D:(s + 1) * D, :].T
            b_qkv[i, 0, s * DP:s * DP + D] = sc * ipb[s * D:(s + 1) * D]
        w_out[i, :D, :D] = np.asarray(lp["out_proj_w"], np.float32).T
        b_out[i, 0, :D] = np.asarray(lp["out_proj_b"], np.float32)
        ln0_g[i, 0, :D] = np.asarray(lp["ln0_g"], np.float32)
        ln0_b[i, 0, :D] = np.asarray(lp["ln0_b"], np.float32)
        w_fc1[i, :D, :F] = np.asarray(lp["fc1_w"], np.float32).T
        b_fc1[i, 0, :F] = np.asarray(lp["fc1_b"], np.float32)
        w_fc2[i, :F, :D] = np.asarray(lp["fc2_w"], np.float32).T
        b_fc2[i, 0, :D] = np.asarray(lp["fc2_b"], np.float32)
        ln1_g[i, 0, :D] = np.asarray(lp["ln1_g"], np.float32)
        ln1_b[i, 0, :D] = np.asarray(lp["ln1_b"], np.float32)

    P = params["proj_ctc_w"].shape[0]
    out_dim = params["proj_rec_w"].shape[0]
    PP, ODP = _round_up(P, LANE), _round_up(out_dim, LANE)

    lnf_g = np.zeros((1, DP), np.float32); lnf_g[0, :D] = np.asarray(params["lnf_g"])
    lnf_b = np.zeros((1, DP), np.float32); lnf_b[0, :D] = np.asarray(params["lnf_b"])
    # fused head weight: [ctc | rec]
    w_head = np.zeros((DP, PP + ODP), np.float32)
    w_head[:D, :P] = np.asarray(params["proj_ctc_w"], np.float32).T
    w_head[:D, PP:PP + out_dim] = np.asarray(params["proj_rec_w"], np.float32).T

    bf16 = lambda a: jnp.asarray(a, dtype=jnp.bfloat16)
    f32 = lambda a: jnp.asarray(a, dtype=jnp.float32)
    return dict(
        w_qkv=bf16(w_qkv), b_qkv=f32(b_qkv), w_out=bf16(w_out), b_out=f32(b_out),
        ln0_g=f32(ln0_g), ln0_b=f32(ln0_b),
        w_fc1=bf16(w_fc1), b_fc1=f32(b_fc1), w_fc2=bf16(w_fc2), b_fc2=f32(b_fc2),
        ln1_g=f32(ln1_g), ln1_b=f32(ln1_b),
        lnf_g=f32(lnf_g), lnf_b=f32(lnf_b), w_head=bf16(w_head),
    )


# ------------------------------- forward -------------------------------------

def sinusoidal_pos_emb(T, D):
    half = D // 2
    freq = jnp.exp(jnp.arange(half, dtype=jnp.float32) * -(math.log(10000.0) / (half - 1)))
    pos = jnp.arange(1, T + 1, dtype=jnp.float32)[:, None]   # positions 1..T
    ang = pos * freq[None, :]
    emb = jnp.concatenate([jnp.sin(ang), jnp.cos(ang)], axis=1)
    if D % 2 == 1:
        emb = jnp.concatenate([emb, jnp.zeros((T, 1), jnp.float32)], axis=1)
    return emb  # (T, D)


def bertphone_forward(x0, packed, *, num_phones, out_dim, num_heads):
    """x0: (B, 39, T) float32 (PyTorch NCT layout)."""
    B, D, T = x0.shape
    assert D == D_MODEL and D % num_heads == 0
    DP = LANE
    N = B * T
    L = packed["w_qkv"].shape[0]
    FP = packed["w_fc1"].shape[2]
    PP = _round_up(num_phones, LANE)
    ODP = packed["w_head"].shape[1] - PP

    Bblk = _pick_batch_block(B, T)
    nblk = B // Bblk
    rows_blk = Bblk * T

    # ---- XLA prologue (fused): embed scale + pos emb, batch-major rows, pad ----
    pe = sinusoidal_pos_emb(T, D)                                    # (T, D)
    x = jnp.transpose(x0, (0, 2, 1)).astype(jnp.float32) * math.sqrt(D) + pe[None]
    xemb = jnp.pad(x.reshape(N, D), ((0, 0), (0, DP - D)))           # (N, 128)

    kernel = functools.partial(
        _bertphone_kernel, T=T, Bblk=Bblk, D=D, H=num_heads,
        P=num_phones, PP=PP, num_layers=L)

    const3 = lambda b: (0, 0, 0)       # stacked per-layer weights: resident in VMEM
    const2 = lambda b: (0, 0)
    rowblk = lambda b: (b, 0)          # per-batch-block activations / outputs

    in_specs = [
        pl.BlockSpec((rows_blk, DP), rowblk),        # embedded input
        pl.BlockSpec((L, DP, 3 * DP), const3),       # w_qkv (bf16)
        pl.BlockSpec((L, 1, 3 * DP), const3),        # b_qkv
        pl.BlockSpec((L, DP, DP), const3),           # w_out (bf16)
        pl.BlockSpec((L, 1, DP), const3),            # b_out
        pl.BlockSpec((L, 1, DP), const3),            # ln0_g
        pl.BlockSpec((L, 1, DP), const3),            # ln0_b
        pl.BlockSpec((L, DP, FP), const3),           # w_fc1 (bf16)
        pl.BlockSpec((L, 1, FP), const3),            # b_fc1
        pl.BlockSpec((L, FP, DP), const3),           # w_fc2 (bf16)
        pl.BlockSpec((L, 1, DP), const3),            # b_fc2
        pl.BlockSpec((L, 1, DP), const3),            # ln1_g
        pl.BlockSpec((L, 1, DP), const3),            # ln1_b
        pl.BlockSpec((1, DP), const2),               # lnf_g
        pl.BlockSpec((1, DP), const2),               # lnf_b
        pl.BlockSpec((DP, PP + ODP), const2),        # fused heads (bf16)
    ]
    out_specs = [
        pl.BlockSpec((rows_blk, DP), rowblk),        # transformer output (padded)
        pl.BlockSpec((rows_blk, PP), rowblk),        # ctc log-probs (padded)
        pl.BlockSpec((rows_blk, ODP), rowblk),       # reconstruction (padded)
    ]
    out_shape = [
        jax.ShapeDtypeStruct((N, DP), jnp.float32),
        jax.ShapeDtypeStruct((N, PP), jnp.float32),
        jax.ShapeDtypeStruct((N, ODP), jnp.float32),
    ]

    x_out, ctc_out, rec_out = pl.pallas_call(
        kernel,
        out_shape=out_shape,
        grid=(nblk,),                                # batch blocks; v7x megacore-parallel
        in_specs=in_specs,
        out_specs=out_specs,
        compiler_params=pltpu.CompilerParams(
            dimension_semantics=("parallel",),
            vmem_limit_bytes=48 * 1024 * 1024),      # explicit budget (fits v7x's 64 MiB)
    )(xemb,
      packed["w_qkv"], packed["b_qkv"], packed["w_out"], packed["b_out"],
      packed["ln0_g"], packed["ln0_b"], packed["w_fc1"], packed["b_fc1"],
      packed["w_fc2"], packed["b_fc2"], packed["ln1_g"], packed["ln1_b"],
      packed["lnf_g"], packed["lnf_b"], packed["w_head"])

    # lazy host-side un-padding / NCT permutes to match the PyTorch API
    transformer_out = x_out[:, :D].reshape(B, T, D).transpose(0, 2, 1)              # (B, 39, T)
    ctc_logits = ctc_out[:, :num_phones].reshape(B, T, num_phones).transpose(1, 0, 2)  # (T, B, P)
    projection_rec = rec_out[:, :out_dim].reshape(B, T, out_dim).transpose(0, 2, 1)    # (B, out, T)
    return ctc_logits, projection_rec, transformer_out


# --------------------------------- main --------------------------------------

if __name__ == "__main__":
    B, T = 2, 8
    NUM_PHONES = 86
    NUM_HEADS = 13
    NUM_LAYERS = 2          # small layer count for the demo (module default is 12)
    INPUT_FEAT_DIM = 39     # out_feature_dim = input_feat_dim

    key = jax.random.PRNGKey(0)
    key, pkey, xkey = jax.random.split(key, 3)
    params = init_params(pkey, NUM_PHONES, INPUT_FEAT_DIM, NUM_LAYERS)
    packed = pack_params(params, NUM_HEADS)                       # pad/transpose/stack once
    x0 = jax.random.normal(xkey, (B, D_MODEL, T), dtype=jnp.float32)   # (B, 39, T)

    fwd = jax.jit(functools.partial(
        bertphone_forward, num_phones=NUM_PHONES, out_dim=INPUT_FEAT_DIM,
        num_heads=NUM_HEADS))
    ctc_logits, projection_rec, transformer_out = fwd(x0, packed)
    jax.block_until_ready((ctc_logits, projection_rec, transformer_out))

    assert ctc_logits.shape == (T, B, NUM_PHONES)
    assert projection_rec.shape == (B, INPUT_FEAT_DIM, T)
    assert transformer_out.shape == (B, D_MODEL, T)
    assert bool(jnp.all(jnp.isfinite(transformer_out)))
    # log_softmax rows over the real phone channels must sum to ~1
    assert jnp.allclose(jnp.sum(jnp.exp(ctc_logits), axis=-1), 1.0, atol=1e-4)
    print("KERNEL_OK")
</pallas_src>

<mosaic_0001>
module attributes {stable_mosaic.version = 11 : i64} {
  func.func @_bertphone_kernel(%arg0: i32, %arg1: memref<8x128xf32, #tpu.memory_space<vmem>>, %arg2: memref<2x128x384xbf16, #tpu.memory_space<vmem>>, %arg3: memref<2x1x384xf32, #tpu.memory_space<vmem>>, %arg4: memref<2x128x128xbf16, #tpu.memory_space<vmem>>, %arg5: memref<2x1x128xf32, #tpu.memory_space<vmem>>, %arg6: memref<2x1x128xf32, #tpu.memory_space<vmem>>, %arg7: memref<2x1x128xf32, #tpu.memory_space<vmem>>, %arg8: memref<2x128x256xbf16, #tpu.memory_space<vmem>>, %arg9: memref<2x1x256xf32, #tpu.memory_space<vmem>>, %arg10: memref<2x256x128xbf16, #tpu.memory_space<vmem>>, %arg11: memref<2x1x128xf32, #tpu.memory_space<vmem>>, %arg12: memref<2x1x128xf32, #tpu.memory_space<vmem>>, %arg13: memref<2x1x128xf32, #tpu.memory_space<vmem>>, %arg14: memref<1x128xf32, #tpu.memory_space<vmem>>, %arg15: memref<1x128xf32, #tpu.memory_space<vmem>>, %arg16: memref<128x256xbf16, #tpu.memory_space<vmem>>, %arg17: memref<8x128xf32, #tpu.memory_space<vmem>>, %arg18: memref<8x128xf32, #tpu.memory_space<vmem>>, %arg19: memref<8x128xf32, #tpu.memory_space<vmem>>) attributes {dimension_semantics = [#tpu.dimension_semantics<parallel>], iteration_bounds = array<i64: 2>, scalar_prefetch = 0 : i64, scratch_operands = 0 : i64, tpu.core_type = #tpu.core_type<tc>, window_params = [{transform_indices = @transform_0, window_bounds = array<i64: 8, 128>}, {pipeline_mode = #tpu.pipeline_mode<synchronous>, transform_indices = @transform_1, window_bounds = array<i64: 2, 128, 384>}, {pipeline_mode = #tpu.pipeline_mode<synchronous>, transform_indices = @transform_2, window_bounds = array<i64: 2, 1, 384>}, {pipeline_mode = #tpu.pipeline_mode<synchronous>, transform_indices = @transform_3, window_bounds = array<i64: 2, 128, 128>}, {pipeline_mode = #tpu.pipeline_mode<synchronous>, transform_indices = @transform_4, window_bounds = array<i64: 2, 1, 128>}, {pipeline_mode = #tpu.pipeline_mode<synchronous>, transform_indices = @transform_5, window_bounds = array<i64: 2, 1, 128>}, {pipeline_mode = #tpu.pipeline_mode<synchronous>, transform_indices = @transform_6, window_bounds = array<i64: 2, 1, 128>}, {pipeline_mode = #tpu.pipeline_mode<synchronous>, transform_indices = @transform_7, window_bounds = array<i64: 2, 128, 256>}, {pipeline_mode = #tpu.pipeline_mode<synchronous>, transform_indices = @transform_8, window_bounds = array<i64: 2, 1, 256>}, {pipeline_mode = #tpu.pipeline_mode<synchronous>, transform_indices = @transform_9, window_bounds = array<i64: 2, 256, 128>}, {pipeline_mode = #tpu.pipeline_mode<synchronous>, transform_indices = @transform_10, window_bounds = array<i64: 2, 1, 128>}, {pipeline_mode = #tpu.pipeline_mode<synchronous>, transform_indices = @transform_11, window_bounds = array<i64: 2, 1, 128>}, {pipeline_mode = #tpu.pipeline_mode<synchronous>, transform_indices = @transform_12, window_bounds = array<i64: 2, 1, 128>}, {pipeline_mode = #tpu.pipeline_mode<synchronous>, transform_indices = @transform_13, window_bounds = array<i64: 1, 128>}, {pipeline_mode = #tpu.pipeline_mode<synchronous>, transform_indices = @transform_14, window_bounds = array<i64: 1, 128>}, {pipeline_mode = #tpu.pipeline_mode<synchronous>, transform_indices = @transform_15, window_bounds = array<i64: 128, 256>}, {transform_indices = @transform_16, window_bounds = array<i64: 8, 128>}, {transform_indices = @transform_17, window_bounds = array<i64: 8, 128>}, {transform_indices = @transform_18, window_bounds = array<i64: 8, 128>}]} {
    %0 = tpu.iota {dimensions = array<i32: 1>} : vector<1x128xi32>
    %c39_i32 = arith.constant 39 : i32
    %1 = vector.broadcast %c39_i32 : i32 to vector<1x128xi32>
    %2 = arith.cmpi slt, %0, %1 : vector<1x128xi32>
    %3 = arith.extui %2 : vector<1x128xi1> to vector<1x128xi32>
    %4 = arith.sitofp %3 : vector<1x128xi32> to vector<1x128xf32>
    %c0 = arith.constant 0 : index
    %c0_0 = arith.constant 0 : index
    %5 = vector.load %arg1[%c0, %c0_0] : memref<8x128xf32, #tpu.memory_space<vmem>>, vector<8x128xf32>
    %c0_i32 = arith.constant 0 : i32
    %c2_i32 = arith.constant 2 : i32
    %6 = arith.addi %c0_i32, %c2_i32 : i32
    %c1_i32 = arith.constant 1 : i32
    %7 = scf.for %arg20 = %c0_i32 to %6 step %c1_i32 iter_args(%arg21 = %5) -> (vector<8x128xf32>)  : i32 {
      %59 = arith.index_cast %arg20 : i32 to index
      %c0_23 = arith.constant 0 : index
      %c0_24 = arith.constant 0 : index
      %60 = vector.load %arg6[%59, %c0_23, %c0_24] : memref<2x1x128xf32, #tpu.memory_space<vmem>>, vector<1x1x128xf32>
      %61 = vector.shape_cast %60 : vector<1x1x128xf32> to vector<1x128xf32>
      %62 = arith.index_cast %arg20 : i32 to index
      %c0_25 = arith.constant 0 : index
      %c0_26 = arith.constant 0 : index
      %63 = vector.load %arg7[%62, %c0_25, %c0_26] : memref<2x1x128xf32, #tpu.memory_space<vmem>>, vector<1x1x128xf32>
      %64 = vector.shape_cast %63 : vector<1x1x128xf32> to vector<1x128xf32>
      %65 = vector.broadcast %4 : vector<1x128xf32> to vector<8x128xf32>
      %66 = arith.mulf %arg21, %65 : vector<8x128xf32>
      %cst_27 = arith.constant dense<0.000000e+00> : vector<8xf32>
      %67 = vector.multi_reduction <add>, %66, %cst_27 [1] : vector<8x128xf32> to vector<8xf32>
      %68 = vector.shape_cast %67 : vector<8xf32> to vector<8x1xf32>
      %cst_28 = arith.constant 0.025641026 : f32
      %69 = vector.broadcast %cst_28 : f32 to vector<8x1xf32>
      %70 = arith.mulf %68, %69 : vector<8x1xf32>
      %71 = vector.broadcast %70 : vector<8x1xf32> to vector<8x128xf32>
      %72 = arith.subf %arg21, %71 : vector<8x128xf32>
      %73 = vector.broadcast %4 : vector<1x128xf32> to vector<8x128xf32>
      %74 = arith.mulf %72, %73 : vector<8x128xf32>
      %75 = arith.mulf %74, %74 : vector<8x128xf32>
      %cst_29 = arith.constant dense<0.000000e+00> : vector<8xf32>
      %76 = vector.multi_reduction <add>, %75, %cst_29 [1] : vector<8x128xf32> to vector<8xf32>
      %77 = vector.shape_cast %76 : vector<8xf32> to vector<8x1xf32>
      %cst_30 = arith.constant 0.025641026 : f32
      %78 = vector.broadcast %cst_30 : f32 to vector<8x1xf32>
      %79 = arith.mulf %77, %78 : vector<8x1xf32>
      %cst_31 = arith.constant 9.99999974E-6 : f32
      %80 = vector.broadcast %cst_31 : f32 to vector<8x1xf32>
      %81 = arith.addf %79, %80 : vector<8x1xf32>
      %82 = math.rsqrt %81 : vector<8x1xf32>
      %83 = vector.broadcast %82 : vector<8x1xf32> to vector<8x128xf32>
      %84 = arith.mulf %74, %83 : vector<8x128xf32>
      %85 = vector.broadcast %61 : vector<1x128xf32> to vector<8x128xf32>
      %86 = arith.mulf %84, %85 : vector<8x128xf32>
      %87 = vector.broadcast %64 : vector<1x128xf32> to vector<8x128xf32>
      %88 = arith.addf %86, %87 : vector<8x128xf32>
      %89 = arith.truncf %88 : vector<8x128xf32> to vector<8x128xbf16>
      %90 = arith.index_cast %arg20 : i32 to index
      %c0_32 = arith.constant 0 : index
      %c0_33 = arith.constant 0 : index
      %91 = vector.load %arg2[%90, %c0_32, %c0_33] : memref<2x128x384xbf16, #tpu.memory_space<vmem>>, vector<1x128x384xbf16>
      %92 = vector.shape_cast %91 : vector<1x128x384xbf16> to vector<128x384xbf16>
      %cst_34 = arith.constant dense<0.000000e+00> : vector<8x384xf32>
      %93 = tpu.matmul %89, %92, %cst_34 {dimension_numbers = #tpu.dot_dimension_numbers<[1], [0], [0], [1], [0, 0, 1, 1], [], []>} : vector<8x128xbf16>, vector<128x384xbf16>, vector<8x384xf32> -> vector<8x384xf32>
      %94 = arith.index_cast %arg20 : i32 to index
      %c0_35 = arith.constant 0 : index
      %c0_36 = arith.constant 0 : index
      %95 = vector.load %arg3[%94, %c0_35, %c0_36] : memref<2x1x384xf32, #tpu.memory_space<vmem>>, vector<1x1x384xf32>
      %96 = vector.shape_cast %95 : vector<1x1x384xf32> to vector<1x384xf32>
      %97 = vector.broadcast %96 : vector<1x384xf32> to vector<8x384xf32>
      %98 = arith.addf %93, %97 : vector<8x384xf32>
      %99 = vector.extract_strided_slice %98 {offsets = [0, 0], sizes = [8, 128], strides = [1, 1]} : vector<8x384xf32> to vector<8x128xf32>
      %100 = vector.extract_strided_slice %98 {offsets = [0, 128], sizes = [8, 128], strides = [1, 1]} : vector<8x384xf32> to vector<8x128xf32>
      %101 = vector.extract_strided_slice %98 {offsets = [0, 256], sizes = [8, 128], strides = [1, 1]} : vector<8x384xf32> to vector<8x128xf32>
      %102 = vector.shape_cast %99 : vector<8x128xf32> to vector<1x8x128xf32>
      %103 = vector.shape_cast %100 : vector<8x128xf32> to vector<1x8x128xf32>
      %104 = vector.shape_cast %101 : vector<8x128xf32> to vector<1x8x128xf32>
      %cst_37 = arith.constant 0.000000e+00 : f32
      %105 = vector.broadcast %cst_37 : f32 to vector<1x8x128xf32>
      %c0_i32_38 = arith.constant 0 : i32
      %106 = vector.broadcast %c0_i32_38 : i32 to vector<1x128xi32>
      %107 = arith.cmpi sge, %0, %106 : vector<1x128xi32>
      %c3_i32 = arith.constant 3 : i32
      %108 = vector.broadcast %c3_i32 : i32 to vector<1x128xi32>
      %109 = arith.cmpi slt, %0, %108 : vector<1x128xi32>
      %110 = arith.andi %107, %109 : vector<1x128xi1>
      %111 = arith.extui %110 : vector<1x128xi1> to vector<1x128xi32>
      %112 = arith.sitofp %111 : vector<1x128xi32> to vector<1x128xf32>
      %113 = vector.shape_cast %112 : vector<1x128xf32> to vector<1x1x128xf32>
      %114 = vector.broadcast %113 : vector<1x1x128xf32> to vector<1x8x128xf32>
      %115 = arith.mulf %102, %114 : vector<1x8x128xf32>
      "tpu.trace_start"() <{level = 10 : i32, message = "bid,bjd->bij"}> : () -> ()
      %cst_39 = arith.constant dense<0.000000e+00> : vector<1x8x8xf32>
      %116 = tpu.matmul %115, %103, %cst_39 {dimension_numbers = #tpu.dot_dimension_numbers<[2], [2], [1], [1], [0, 0, 0, 1, 1, 1], [0], [0]>} : vector<1x8x128xf32>, vector<1x8x128xf32>, vector<1x8x8xf32> -> vector<1x8x8xf32>
      "tpu.trace_stop"() : () -> ()
      %cst_40 = arith.constant dense<0xFF800000> : vector<1x8xf32>
      %117 = vector.multi_reduction <maximumf>, %116, %cst_40 [2] : vector<1x8x8xf32> to vector<1x8xf32>
      %118 = vector.shape_cast %117 : vector<1x8xf32> to vector<1x8x1xf32>
      %119 = vector.broadcast %118 : vector<1x8x1xf32> to vector<1x8x8xf32>
      %120 = arith.subf %116, %119 : vector<1x8x8xf32>
      %121 = math.exp %120 : vector<1x8x8xf32>
      %cst_41 = arith.constant dense<0.000000e+00> : vector<1x8xf32>
      %122 = vector.multi_reduction <add>, %121, %cst_41 [2] : vector<1x8x8xf32> to vector<1x8xf32>
      %123 = vector.shape_cast %122 : vector<1x8xf32> to vector<1x8x1xf32>
      %124 = vector.broadcast %123 : vector<1x8x1xf32> to vector<1x8x8xf32>
      %125 = arith.divf %121, %124 : vector<1x8x8xf32>
      "tpu.trace_start"() <{level = 10 : i32, message = "bij,bjd->bid"}> : () -> ()
      %cst_42 = arith.constant dense<0.000000e+00> : vector<1x8x128xf32>
      %126 = tpu.matmul %125, %104, %cst_42 {dimension_numbers = #tpu.dot_dimension_numbers<[2], [1], [1], [2], [0, 0, 0, 1, 1, 2], [0], [0]>} : vector<1x8x8xf32>, vector<1x8x128xf32>, vector<1x8x128xf32> -> vector<1x8x128xf32>
      "tpu.trace_stop"() : () -> ()
      %127 = vector.shape_cast %112 : vector<1x128xf32> to vector<1x1x128xf32>
      %128 = vector.broadcast %127 : vector<1x1x128xf32> to vector<1x8x128xf32>
      %129 = arith.mulf %126, %128 : vector<1x8x128xf32>
      %130 = arith.addf %105, %129 : vector<1x8x128xf32>
      %c3_i32_43 = arith.constant 3 : i32
      %131 = vector.broadcast %c3_i32_43 : i32 to vector<1x128xi32>
      %132 = arith.cmpi sge, %0, %131 : vector<1x128xi32>
      %c6_i32 = arith.constant 6 : i32
      %133 = vector.broadcast %c6_i32 : i32 to vector<1x128xi32>
      %134 = arith.cmpi slt, %0, %133 : vector<1x128xi32>
      %135 = arith.andi %132, %134 : vector<1x128xi1>
      %136 = arith.extui %135 : vector<1x128xi1> to vector<1x128xi32>
      %137 = arith.sitofp %136 : vector<1x128xi32> to vector<1x128xf32>
      %138 = vector.shape_cast %137 : vector<1x128xf32> to vector<1x1x128xf32>
      %139 = vector.broadcast %138 : vector<1x1x128xf32> to vector<1x8x128xf32>
      %140 = arith.mulf %102, %139 : vector<1x8x128xf32>
      "tpu.trace_start"() <{level = 10 : i32, message = "bid,bjd->bij"}> : () -> ()
      %cst_44 = arith.constant dense<0.000000e+00> : vector<1x8x8xf32>
      %141 = tpu.matmul %140, %103, %cst_44 {dimension_numbers = #tpu.dot_dimension_numbers<[2], [2], [1], [1], [0, 0, 0, 1, 1, 1], [0], [0]>} : vector<1x8x128xf32>, vector<1x8x128xf32>, vector<1x8x8xf32> -> vector<1x8x8xf32>
      "tpu.trace_stop"() : () -> ()
      %cst_45 = arith.constant dense<0xFF800000> : vector<1x8xf32>
      %142 = vector.multi_reduction <maximumf>, %141, %cst_45 [2] : vector<1x8x8xf32> to vector<1x8xf32>
      %143 = vector.shape_cast %142 : vector<1x8xf32> to vector<1x8x1xf32>
      %144 = vector.broadcast %143 : vector<1x8x1xf32> to vector<1x8x8xf32>
      %145 = arith.subf %141, %144 : vector<1x8x8xf32>
      %146 = math.exp %145 : vector<1x8x8xf32>
      %cst_46 = arith.constant dense<0.000000e+00> : vector<1x8xf32>
      %147 = vector.multi_reduction <add>, %146, %cst_46 [2] : vector<1x8x8xf32> to vector<1x8xf32>
      %148 = vector.shape_cast %147 : vector<1x8xf32> to vector<1x8x1xf32>
      %149 = vector.broadcast %148 : vector<1x8x1xf32> to vector<1x8x8xf32>
      %150 = arith.divf %146, %149 : vector<1x8x8xf32>
      "tpu.trace_start"() <{level = 10 : i32, message = "bij,bjd->bid"}> : () -> ()
      %cst_47 = arith.constant dense<0.000000e+00> : vector<1x8x128xf32>
      %151 = tpu.matmul %150, %104, %cst_47 {dimension_numbers = #tpu.dot_dimension_numbers<[2], [1], [1], [2], [0, 0, 0, 1, 1, 2], [0], [0]>} : vector<1x8x8xf32>, vector<1x8x128xf32>, vector<1x8x128xf32> -> vector<1x8x128xf32>
      "tpu.trace_stop"() : () -> ()
      %152 = vector.shape_cast %137 : vector<1x128xf32> to vector<1x1x128xf32>
      %153 = vector.broadcast %152 : vector<1x1x128xf32> to vector<1x8x128xf32>
      %154 = arith.mulf %151, %153 : vector<1x8x128xf32>
      %155 = arith.addf %130, %154 : vector<1x8x128xf32>
      %c6_i32_48 = arith.constant 6 : i32
      %156 = vector.broadcast %c6_i32_48 : i32 to vector<1x128xi32>
      %157 = arith.cmpi sge, %0, %156 : vector<1x128xi32>
      %c9_i32 = arith.constant 9 : i32
      %158 = vector.broadcast %c9_i32 : i32 to vector<1x128xi32>
      %159 = arith.cmpi slt, %0, %158 : vector<1x128xi32>
      %160 = arith.andi %157, %159 : vector<1x128xi1>
      %161 = arith.extui %160 : vector<1x128xi1> to vector<1x128xi32>
      %162 = arith.sitofp %161 : vector<1x128xi32> to vector<1x128xf32>
      %163 = vector.shape_cast %162 : vector<1x128xf32> to vector<1x1x128xf32>
      %164 = vector.broadcast %163 : vector<1x1x128xf32> to vector<1x8x128xf32>
      %165 = arith.mulf %102, %164 : vector<1x8x128xf32>
      "tpu.trace_start"() <{level = 10 : i32, message = "bid,bjd->bij"}> : () -> ()
      %cst_49 = arith.constant dense<0.000000e+00> : vector<1x8x8xf32>
      %166 = tpu.matmul %165, %103, %cst_49 {dimension_numbers = #tpu.dot_dimension_numbers<[2], [2], [1], [1], [0, 0, 0, 1, 1, 1], [0], [0]>} : vector<1x8x128xf32>, vector<1x8x128xf32>, vector<1x8x8xf32> -> vector<1x8x8xf32>
      "tpu.trace_stop"() : () -> ()
      %cst_50 = arith.constant dense<0xFF800000> : vector<1x8xf32>
      %167 = vector.multi_reduction <maximumf>, %166, %cst_50 [2] : vector<1x8x8xf32> to vector<1x8xf32>
      %168 = vector.shape_cast %167 : vector<1x8xf32> to vector<1x8x1xf32>
      %169 = vector.broadcast %168 : vector<1x8x1xf32> to vector<1x8x8xf32>
      %170 = arith.subf %166, %169 : vector<1x8x8xf32>
      %171 = math.exp %170 : vector<1x8x8xf32>
      %cst_51 = arith.constant dense<0.000000e+00> : vector<1x8xf32>
      %172 = vector.multi_reduction <add>, %171, %cst_51 [2] : vector<1x8x8xf32> to vector<1x8xf32>
      %173 = vector.shape_cast %172 : vector<1x8xf32> to vector<1x8x1xf32>
      %174 = vector.broadcast %173 : vector<1x8x1xf32> to vector<1x8x8xf32>
      %175 = arith.divf %171, %174 : vector<1x8x8xf32>
      "tpu.trace_start"() <{level = 10 : i32, message = "bij,bjd->bid"}> : () -> ()
      %cst_52 = arith.constant dense<0.000000e+00> : vector<1x8x128xf32>
      %176 = tpu.matmul %175, %104, %cst_52 {dimension_numbers = #tpu.dot_dimension_numbers<[2], [1], [1], [2], [0, 0, 0, 1, 1, 2], [0], [0]>} : vector<1x8x8xf32>, vector<1x8x128xf32>, vector<1x8x128xf32> -> vector<1x8x128xf32>
      "tpu.trace_stop"() : () -> ()
      %177 = vector.shape_cast %162 : vector<1x128xf32> to vector<1x1x128xf32>
      %178 = vector.broadcast %177 : vector<1x1x128xf32> to vector<1x8x128xf32>
      %179 = arith.mulf %176, %178 : vector<1x8x128xf32>
      %180 = arith.addf %155, %179 : vector<1x8x128xf32>
      %c9_i32_53 = arith.constant 9 : i32
      %181 = vector.broadcast %c9_i32_53 : i32 to vector<1x128xi32>
      %182 = arith.cmpi sge, %0, %181 : vector<1x128xi32>
      %c12_i32 = arith.constant 12 : i32
      %183 = vector.broadcast %c12_i32 : i32 to vector<1x128xi32>
      %184 = arith.cmpi slt, %0, %183 : vector<1x128xi32>
      %185 = arith.andi %182, %184 : vector<1x128xi1>
      %186 = arith.extui %185 : vector<1x128xi1> to vector<1x128xi32>
      %187 = arith.sitofp %186 : vector<1x128xi32> to vector<1x128xf32>
      %188 = vector.shape_cast %187 : vector<1x128xf32> to vector<1x1x128xf32>
      %189 = vector.broadcast %188 : vector<1x1x128xf32> to vector<1x8x128xf32>
      %190 = arith.mulf %102, %189 : vector<1x8x128xf32>
      "tpu.trace_start"() <{level = 10 : i32, message = "bid,bjd->bij"}> : () -> ()
      %cst_54 = arith.constant dense<0.000000e+00> : vector<1x8x8xf32>
      %191 = tpu.matmul %190, %103, %cst_54 {dimension_numbers = #tpu.dot_dimension_numbers<[2], [2], [1], [1], [0, 0, 0, 1, 1, 1], [0], [0]>} : vector<1x8x128xf32>, vector<1x8x128xf32>, vector<1x8x8xf32> -> vector<1x8x8xf32>
      "tpu.trace_stop"() : () -> ()
      %cst_55 = arith.constant dense<0xFF800000> : vector<1x8xf32>
      %192 = vector.multi_reduction <maximumf>, %191, %cst_55 [2] : vector<1x8x8xf32> to vector<1x8xf32>
      %193 = vector.shape_cast %192 : vector<1x8xf32> to vector<1x8x1xf32>
      %194 = vector.broadcast %193 : vector<1x8x1xf32> to vector<1x8x8xf32>
      %195 = arith.subf %191, %194 : vector<1x8x8xf32>
      %196 = math.exp %195 : vector<1x8x8xf32>
      %cst_56 = arith.constant dense<0.000000e+00> : vector<1x8xf32>
      %197 = vector.multi_reduction <add>, %196, %cst_56 [2] : vector<1x8x8xf32> to vector<1x8xf32>
      %198 = vector.shape_cast %197 : vector<1x8xf32> to vector<1x8x1xf32>
      %199 = vector.broadcast %198 : vector<1x8x1xf32> to vector<1x8x8xf32>
      %200 = arith.divf %196, %199 : vector<1x8x8xf32>
      "tpu.trace_start"() <{level = 10 : i32, message = "bij,bjd->bid"}> : () -> ()
      %cst_57 = arith.constant dense<0.000000e+00> : vector<1x8x128xf32>
      %201 = tpu.matmul %200, %104, %cst_57 {dimension_numbers = #tpu.dot_dimension_numbers<[2], [1], [1], [2], [0, 0, 0, 1, 1, 2], [0], [0]>} : vector<1x8x8xf32>, vector<1x8x128xf32>, vector<1x8x128xf32> -> vector<1x8x128xf32>
      "tpu.trace_stop"() : () -> ()
      %202 = vector.shape_cast %187 : vector<1x128xf32> to vector<1x1x128xf32>
      %203 = vector.broadcast %202 : vector<1x1x128xf32> to vector<1x8x128xf32>
      %204 = arith.mulf %201, %203 : vector<1x8x128xf32>
      %205 = arith.addf %180, %204 : vector<1x8x128xf32>
      %c12_i32_58 = arith.constant 12 : i32
      %206 = vector.broadcast %c12_i32_58 : i32 to vector<1x128xi32>
      %207 = arith.cmpi sge, %0, %206 : vector<1x128xi32>
      %c15_i32 = arith.constant 15 : i32
      %208 = vector.broadcast %c15_i32 : i32 to vector<1x128xi32>
      %209 = arith.cmpi slt, %0, %208 : vector<1x128xi32>
      %210 = arith.andi %207, %209 : vector<1x128xi1>
      %211 = arith.extui %210 : vector<1x128xi1> to vector<1x128xi32>
      %212 = arith.sitofp %211 : vector<1x128xi32> to vector<1x128xf32>
      %213 = vector.shape_cast %212 : vector<1x128xf32> to vector<1x1x128xf32>
      %214 = vector.broadcast %213 : vector<1x1x128xf32> to vector<1x8x128xf32>
      %215 = arith.mulf %102, %214 : vector<1x8x128xf32>
      "tpu.trace_start"() <{level = 10 : i32, message = "bid,bjd->bij"}> : () -> ()
      %cst_59 = arith.constant dense<0.000000e+00> : vector<1x8x8xf32>
      %216 = tpu.matmul %215, %103, %cst_59 {dimension_numbers = #tpu.dot_dimension_numbers<[2], [2], [1], [1], [0, 0, 0, 1, 1, 1], [0], [0]>} : vector<1x8x128xf32>, vector<1x8x128xf32>, vector<1x8x8xf32> -> vector<1x8x8xf32>
      "tpu.trace_stop"() : () -> ()
      %cst_60 = arith.constant dense<0xFF800000> : vector<1x8xf32>
      %217 = vector.multi_reduction <maximumf>, %216, %cst_60 [2] : vector<1x8x8xf32> to vector<1x8xf32>
      %218 = vector.shape_cast %217 : vector<1x8xf32> to vector<1x8x1xf32>
      %219 = vector.broadcast %218 : vector<1x8x1xf32> to vector<1x8x8xf32>
      %220 = arith.subf %216, %219 : vector<1x8x8xf32>
      %221 = math.exp %220 : vector<1x8x8xf32>
      %cst_61 = arith.constant dense<0.000000e+00> : vector<1x8xf32>
      %222 = vector.multi_reduction <add>, %221, %cst_61 [2] : vector<1x8x8xf32> to vector<1x8xf32>
      %223 = vector.shape_cast %222 : vector<1x8xf32> to vector<1x8x1xf32>
      %224 = vector.broadcast %223 : vector<1x8x1xf32> to vector<1x8x8xf32>
      %225 = arith.divf %221, %224 : vector<1x8x8xf32>
      "tpu.trace_start"() <{level = 10 : i32, message = "bij,bjd->bid"}> : () -> ()
      %cst_62 = arith.constant dense<0.000000e+00> : vector<1x8x128xf32>
      %226 = tpu.matmul %225, %104, %cst_62 {dimension_numbers = #tpu.dot_dimension_numbers<[2], [1], [1], [2], [0, 0, 0, 1, 1, 2], [0], [0]>} : vector<1x8x8xf32>, vector<1x8x128xf32>, vector<1x8x128xf32> -> vector<1x8x128xf32>
      "tpu.trace_stop"() : () -> ()
      %227 = vector.shape_cast %212 : vector<1x128xf32> to vector<1x1x128xf32>
      %228 = vector.broadcast %227 : vector<1x1x128xf32> to vector<1x8x128xf32>
      %229 = arith.mulf %226, %228 : vector<1x8x128xf32>
      %230 = arith.addf %205, %229 : vector<1x8x128xf32>
      %c15_i32_63 = arith.constant 15 : i32
      %231 = vector.broadcast %c15_i32_63 : i32 to vector<1x128xi32>
      %232 = arith.cmpi sge, %0, %231 : vector<1x128xi32>
      %c18_i32 = arith.constant 18 : i32
      %233 = vector.broadcast %c18_i32 : i32 to vector<1x128xi32>
      %234 = arith.cmpi slt, %0, %233 : vector<1x128xi32>
      %235 = arith.andi %232, %234 : vector<1x128xi1>
      %236 = arith.extui %235 : vector<1x128xi1> to vector<1x128xi32>
      %237 = arith.sitofp %236 : vector<1x128xi32> to vector<1x128xf32>
      %238 = vector.shape_cast %237 : vector<1x128xf32> to vector<1x1x128xf32>
      %239 = vector.broadcast %238 : vector<1x1x128xf32> to vector<1x8x128xf32>
      %240 = arith.mulf %102, %239 : vector<1x8x128xf32>
      "tpu.trace_start"() <{level = 10 : i32, message = "bid,bjd->bij"}> : () -> ()
      %cst_64 = arith.constant dense<0.000000e+00> : vector<1x8x8xf32>
      %241 = tpu.matmul %240, %103, %cst_64 {dimension_numbers = #tpu.dot_dimension_numbers<[2], [2], [1], [1], [0, 0, 0, 1, 1, 1], [0], [0]>} : vector<1x8x128xf32>, vector<1x8x128xf32>, vector<1x8x8xf32> -> vector<1x8x8xf32>
      "tpu.trace_stop"() : () -> ()
      %cst_65 = arith.constant dense<0xFF800000> : vector<1x8xf32>
      %242 = vector.multi_reduction <maximumf>, %241, %cst_65 [2] : vector<1x8x8xf32> to vector<1x8xf32>
      %243 = vector.shape_cast %242 : vector<1x8xf32> to vector<1x8x1xf32>
      %244 = vector.broadcast %243 : vector<1x8x1xf32> to vector<1x8x8xf32>
      %245 = arith.subf %241, %244 : vector<1x8x8xf32>
      %246 = math.exp %245 : vector<1x8x8xf32>
      %cst_66 = arith.constant dense<0.000000e+00> : vector<1x8xf32>
      %247 = vector.multi_reduction <add>, %246, %cst_66 [2] : vector<1x8x8xf32> to vector<1x8xf32>
      %248 = vector.shape_cast %247 : vector<1x8xf32> to vector<1x8x1xf32>
      %249 = vector.broadcast %248 : vector<1x8x1xf32> to vector<1x8x8xf32>
      %250 = arith.divf %246, %249 : vector<1x8x8xf32>
      "tpu.trace_start"() <{level = 10 : i32, message = "bij,bjd->bid"}> : () -> ()
      %cst_67 = arith.constant dense<0.000000e+00> : vector<1x8x128xf32>
      %251 = tpu.matmul %250, %104, %cst_67 {dimension_numbers = #tpu.dot_dimension_numbers<[2], [1], [1], [2], [0, 0, 0, 1, 1, 2], [0], [0]>} : vector<1x8x8xf32>, vector<1x8x128xf32>, vector<1x8x128xf32> -> vector<1x8x128xf32>
      "tpu.trace_stop"() : () -> ()
      %252 = vector.shape_cast %237 : vector<1x128xf32> to vector<1x1x128xf32>
      %253 = vector.broadcast %252 : vector<1x1x128xf32> to vector<1x8x128xf32>
      %254 = arith.mulf %251, %253 : vector<1x8x128xf32>
      %255 = arith.addf %230, %254 : vector<1x8x128xf32>
      %c18_i32_68 = arith.constant 18 : i32
      %256 = vector.broadcast %c18_i32_68 : i32 to vector<1x128xi32>
      %257 = arith.cmpi sge, %0, %256 : vector<1x128xi32>
      %c21_i32 = arith.constant 21 : i32
      %258 = vector.broadcast %c21_i32 : i32 to vector<1x128xi32>
      %259 = arith.cmpi slt, %0, %258 : vector<1x128xi32>
      %260 = arith.andi %257, %259 : vector<1x128xi1>
      %261 = arith.extui %260 : vector<1x128xi1> to vector<1x128xi32>
      %262 = arith.sitofp %261 : vector<1x128xi32> to vector<1x128xf32>
      %263 = vector.shape_cast %262 : vector<1x128xf32> to vector<1x1x128xf32>
      %264 = vector.broadcast %263 : vector<1x1x128xf32> to vector<1x8x128xf32>
      %265 = arith.mulf %102, %264 : vector<1x8x128xf32>
      "tpu.trace_start"() <{level = 10 : i32, message = "bid,bjd->bij"}> : () -> ()
      %cst_69 = arith.constant dense<0.000000e+00> : vector<1x8x8xf32>
      %266 = tpu.matmul %265, %103, %cst_69 {dimension_numbers = #tpu.dot_dimension_numbers<[2], [2], [1], [1], [0, 0, 0, 1, 1, 1], [0], [0]>} : vector<1x8x128xf32>, vector<1x8x128xf32>, vector<1x8x8xf32> -> vector<1x8x8xf32>
      "tpu.trace_stop"() : () -> ()
      %cst_70 = arith.constant dense<0xFF800000> : vector<1x8xf32>
      %267 = vector.multi_reduction <maximumf>, %266, %cst_70 [2] : vector<1x8x8xf32> to vector<1x8xf32>
      %268 = vector.shape_cast %267 : vector<1x8xf32> to vector<1x8x1xf32>
      %269 = vector.broadcast %268 : vector<1x8x1xf32> to vector<1x8x8xf32>
      %270 = arith.subf %266, %269 : vector<1x8x8xf32>
      %271 = math.exp %270 : vector<1x8x8xf32>
      %cst_71 = arith.constant dense<0.000000e+00> : vector<1x8xf32>
      %272 = vector.multi_reduction <add>, %271, %cst_71 [2] : vector<1x8x8xf32> to vector<1x8xf32>
      %273 = vector.shape_cast %272 : vector<1x8xf32> to vector<1x8x1xf32>
      %274 = vector.broadcast %273 : vector<1x8x1xf32> to vector<1x8x8xf32>
      %275 = arith.divf %271, %274 : vector<1x8x8xf32>
      "tpu.trace_start"() <{level = 10 : i32, message = "bij,bjd->bid"}> : () -> ()
      %cst_72 = arith.constant dense<0.000000e+00> : vector<1x8x128xf32>
      %276 = tpu.matmul %275, %104, %cst_72 {dimension_numbers = #tpu.dot_dimension_numbers<[2], [1], [1], [2], [0, 0, 0, 1, 1, 2], [0], [0]>} : vector<1x8x8xf32>, vector<1x8x128xf32>, vector<1x8x128xf32> -> vector<1x8x128xf32>
      "tpu.trace_stop"() : () -> ()
      %277 = vector.shape_cast %262 : vector<1x128xf32> to vector<1x1x128xf32>
      %278 = vector.broadcast %277 : vector<1x1x128xf32> to vector<1x8x128xf32>
      %279 = arith.mulf %276, %278 : vector<1x8x128xf32>
      %280 = arith.addf %255, %279 : vector<1x8x128xf32>
      %c21_i32_73 = arith.constant 21 : i32
      %281 = vector.broadcast %c21_i32_73 : i32 to vector<1x128xi32>
      %282 = arith.cmpi sge, %0, %281 : vector<1x128xi32>
      %c24_i32 = arith.constant 24 : i32
      %283 = vector.broadcast %c24_i32 : i32 to vector<1x128xi32>
      %284 = arith.cmpi slt, %0, %283 : vector<1x128xi32>
      %285 = arith.andi %282, %284 : vector<1x128xi1>
      %286 = arith.extui %285 : vector<1x128xi1> to vector<1x128xi32>
      %287 = arith.sitofp %286 : vector<1x128xi32> to vector<1x128xf32>
      %288 = vector.shape_cast %287 : vector<1x128xf32> to vector<1x1x128xf32>
      %289 = vector.broadcast %288 : vector<1x1x128xf32> to vector<1x8x128xf32>
      %290 = arith.mulf %102, %289 : vector<1x8x128xf32>
      "tpu.trace_start"() <{level = 10 : i32, message = "bid,bjd->bij"}> : () -> ()
      %cst_74 = arith.constant dense<0.000000e+00> : vector<1x8x8xf32>
      %291 = tpu.matmul %290, %103, %cst_74 {dimension_numbers = #tpu.dot_dimension_numbers<[2], [2], [1], [1], [0, 0, 0, 1, 1, 1], [0], [0]>} : vector<1x8x128xf32>, vector<1x8x128xf32>, vector<1x8x8xf32> -> vector<1x8x8xf32>
      "tpu.trace_stop"() : () -> ()
      %cst_75 = arith.constant dense<0xFF800000> : vector<1x8xf32>
      %292 = vector.multi_reduction <maximumf>, %291, %cst_75 [2] : vector<1x8x8xf32> to vector<1x8xf32>
      %293 = vector.shape_cast %292 : vector<1x8xf32> to vector<1x8x1xf32>
      %294 = vector.broadcast %293 : vector<1x8x1xf32> to vector<1x8x8xf32>
      %295 = arith.subf %291, %294 : vector<1x8x8xf32>
      %296 = math.exp %295 : vector<1x8x8xf32>
      %cst_76 = arith.constant dense<0.000000e+00> : vector<1x8xf32>
      %297 = vector.multi_reduction <add>, %296, %cst_76 [2] : vector<1x8x8xf32> to vector<1x8xf32>
      %298 = vector.shape_cast %297 : vector<1x8xf32> to vector<1x8x1xf32>
      %299 = vector.broadcast %298 : vector<1x8x1xf32> to vector<1x8x8xf32>
      %300 = arith.divf %296, %299 : vector<1x8x8xf32>
      "tpu.trace_start"() <{level = 10 : i32, message = "bij,bjd->bid"}> : () -> ()
      %cst_77 = arith.constant dense<0.000000e+00> : vector<1x8x128xf32>
      %301 = tpu.matmul %300, %104, %cst_77 {dimension_numbers = #tpu.dot_dimension_numbers<[2], [1], [1], [2], [0, 0, 0, 1, 1, 2], [0], [0]>} : vector<1x8x8xf32>, vector<1x8x128xf32>, vector<1x8x128xf32> -> vector<1x8x128xf32>
      "tpu.trace_stop"() : () -> ()
      %302 = vector.shape_cast %287 : vector<1x128xf32> to vector<1x1x128xf32>
      %303 = vector.broadcast %302 : vector<1x1x128xf32> to vector<1x8x128xf32>
      %304 = arith.mulf %301, %303 : vector<1x8x128xf32>
      %305 = arith.addf %280, %304 : vector<1x8x128xf32>
      %c24_i32_78 = arith.constant 24 : i32
      %306 = vector.broadcast %c24_i32_78 : i32 to vector<1x128xi32>
      %307 = arith.cmpi sge, %0, %306 : vector<1x128xi32>
      %c27_i32 = arith.constant 27 : i32
      %308 = vector.broadcast %c27_i32 : i32 to vector<1x128xi32>
      %309 = arith.cmpi slt, %0, %308 : vector<1x128xi32>
      %310 = arith.andi %307, %309 : vector<1x128xi1>
      %311 = arith.extui %310 : vector<1x128xi1> to vector<1x128xi32>
      %312 = arith.sitofp %311 : vector<1x128xi32> to vector<1x128xf32>
      %313 = vector.shape_cast %312 : vector<1x128xf32> to vector<1x1x128xf32>
      %314 = vector.broadcast %313 : vector<1x1x128xf32> to vector<1x8x128xf32>
      %315 = arith.mulf %102, %314 : vector<1x8x128xf32>
      "tpu.trace_start"() <{level = 10 : i32, message = "bid,bjd->bij"}> : () -> ()
      %cst_79 = arith.constant dense<0.000000e+00> : vector<1x8x8xf32>
      %316 = tpu.matmul %315, %103, %cst_79 {dimension_numbers = #tpu.dot_dimension_numbers<[2], [2], [1], [1], [0, 0, 0, 1, 1, 1], [0], [0]>} : vector<1x8x128xf32>, vector<1x8x128xf32>, vector<1x8x8xf32> -> vector<1x8x8xf32>
      "tpu.trace_stop"() : () -> ()
      %cst_80 = arith.constant dense<0xFF800000> : vector<1x8xf32>
      %317 = vector.multi_reduction <maximumf>, %316, %cst_80 [2] : vector<1x8x8xf32> to vector<1x8xf32>
      %318 = vector.shape_cast %317 : vector<1x8xf32> to vector<1x8x1xf32>
      %319 = vector.broadcast %318 : vector<1x8x1xf32> to vector<1x8x8xf32>
      %320 = arith.subf %316, %319 : vector<1x8x8xf32>
      %321 = math.exp %320 : vector<1x8x8xf32>
      %cst_81 = arith.constant dense<0.000000e+00> : vector<1x8xf32>
      %322 = vector.multi_reduction <add>, %321, %cst_81 [2] : vector<1x8x8xf32> to vector<1x8xf32>
      %323 = vector.shape_cast %322 : vector<1x8xf32> to vector<1x8x1xf32>
      %324 = vector.broadcast %323 : vector<1x8x1xf32> to vector<1x8x8xf32>
      %325 = arith.divf %321, %324 : vector<1x8x8xf32>
      "tpu.trace_start"() <{level = 10 : i32, message = "bij,bjd->bid"}> : () -> ()
      %cst_82 = arith.constant dense<0.000000e+00> : vector<1x8x128xf32>
      %326 = tpu.matmul %325, %104, %cst_82 {dimension_numbers = #tpu.dot_dimension_numbers<[2], [1], [1], [2], [0, 0, 0, 1, 1, 2], [0], [0]>} : vector<1x8x8xf32>, vector<1x8x128xf32>, vector<1x8x128xf32> -> vector<1x8x128xf32>
      "tpu.trace_stop"() : () -> ()
      %327 = vector.shape_cast %312 : vector<1x128xf32> to vector<1x1x128xf32>
      %328 = vector.broadcast %327 : vector<1x1x128xf32> to vector<1x8x128xf32>
      %329 = arith.mulf %326, %328 : vector<1x8x128xf32>
      %330 = arith.addf %305, %329 : vector<1x8x128xf32>
      %c27_i32_83 = arith.constant 27 : i32
      %331 = vector.broadcast %c27_i32_83 : i32 to vector<1x128xi32>
      %332 = arith.cmpi sge, %0, %331 : vector<1x128xi32>
      %c30_i32 = arith.constant 30 : i32
      %333 = vector.broadcast %c30_i32 : i32 to vector<1x128xi32>
      %334 = arith.cmpi slt, %0, %333 : vector<1x128xi32>
      %335 = arith.andi %332, %334 : vector<1x128xi1>
      %336 = arith.extui %335 : vector<1x128xi1> to vector<1x128xi32>
      %337 = arith.sitofp %336 : vector<1x128xi32> to vector<1x128xf32>
      %338 = vector.shape_cast %337 : vector<1x128xf32> to vector<1x1x128xf32>
      %339 = vector.broadcast %338 : vector<1x1x128xf32> to vector<1x8x128xf32>
      %340 = arith.mulf %102, %339 : vector<1x8x128xf32>
      "tpu.trace_start"() <{level = 10 : i32, message = "bid,bjd->bij"}> : () -> ()
      %cst_84 = arith.constant dense<0.000000e+00> : vector<1x8x8xf32>
      %341 = tpu.matmul %340, %103, %cst_84 {dimension_numbers = #tpu.dot_dimension_numbers<[2], [2], [1], [1], [0, 0, 0, 1, 1, 1], [0], [0]>} : vector<1x8x128xf32>, vector<1x8x128xf32>, vector<1x8x8xf32> -> vector<1x8x8xf32>
      "tpu.trace_stop"() : () -> ()
      %cst_85 = arith.constant dense<0xFF800000> : vector<1x8xf32>
      %342 = vector.multi_reduction <maximumf>, %341, %cst_85 [2] : vector<1x8x8xf32> to vector<1x8xf32>
      %343 = vector.shape_cast %342 : vector<1x8xf32> to vector<1x8x1xf32>
      %344 = vector.broadcast %343 : vector<1x8x1xf32> to vector<1x8x8xf32>
      %345 = arith.subf %341, %344 : vector<1x8x8xf32>
      %346 = math.exp %345 : vector<1x8x8xf32>
      %cst_86 = arith.constant dense<0.000000e+00> : vector<1x8xf32>
      %347 = vector.multi_reduction <add>, %346, %cst_86 [2] : vector<1x8x8xf32> to vector<1x8xf32>
      %348 = vector.shape_cast %347 : vector<1x8xf32> to vector<1x8x1xf32>
      %349 = vector.broadcast %348 : vector<1x8x1xf32> to vector<1x8x8xf32>
      %350 = arith.divf %346, %349 : vector<1x8x8xf32>
      "tpu.trace_start"() <{level = 10 : i32, message = "bij,bjd->bid"}> : () -> ()
      %cst_87 = arith.constant dense<0.000000e+00> : vector<1x8x128xf32>
      %351 = tpu.matmul %350, %104, %cst_87 {dimension_numbers = #tpu.dot_dimension_numbers<[2], [1], [1], [2], [0, 0, 0, 1, 1, 2], [0], [0]>} : vector<1x8x8xf32>, vector<1x8x128xf32>, vector<1x8x128xf32> -> vector<1x8x128xf32>
      "tpu.trace_stop"() : () -> ()
      %352 = vector.shape_cast %337 : vector<1x128xf32> to vector<1x1x128xf32>
      %353 = vector.broadcast %352 : vector<1x1x128xf32> to vector<1x8x128xf32>
      %354 = arith.mulf %351, %353 : vector<1x8x128xf32>
      %355 = arith.addf %330, %354 : vector<1x8x128xf32>
      %c30_i32_88 = arith.constant 30 : i32
      %356 = vector.broadcast %c30_i32_88 : i32 to vector<1x128xi32>
      %357 = arith.cmpi sge, %0, %356 : vector<1x128xi32>
      %c33_i32 = arith.constant 33 : i32
      %358 = vector.broadcast %c33_i32 : i32 to vector<1x128xi32>
      %359 = arith.cmpi slt, %0, %358 : vector<1x128xi32>
      %360 = arith.andi %357, %359 : vector<1x128xi1>
      %361 = arith.extui %360 : vector<1x128xi1> to vector<1x128xi32>
      %362 = arith.sitofp %361 : vector<1x128xi32> to vector<1x128xf32>
      %363 = vector.shape_cast %362 : vector<1x128xf32> to vector<1x1x128xf32>
      %364 = vector.broadcast %363 : vector<1x1x128xf32> to vector<1x8x128xf32>
      %365 = arith.mulf %102, %364 : vector<1x8x128xf32>
      "tpu.trace_start"() <{level = 10 : i32, message = "bid,bjd->bij"}> : () -> ()
      %cst_89 = arith.constant dense<0.000000e+00> : vector<1x8x8xf32>
      %366 = tpu.matmul %365, %103, %cst_89 {dimension_numbers = #tpu.dot_dimension_numbers<[2], [2], [1], [1], [0, 0, 0, 1, 1, 1], [0], [0]>} : vector<1x8x128xf32>, vector<1x8x128xf32>, vector<1x8x8xf32> -> vector<1x8x8xf32>
      "tpu.trace_stop"() : () -> ()
      %cst_90 = arith.constant dense<0xFF800000> : vector<1x8xf32>
      %367 = vector.multi_reduction <maximumf>, %366, %cst_90 [2] : vector<1x8x8xf32> to vector<1x8xf32>
      %368 = vector.shape_cast %367 : vector<1x8xf32> to vector<1x8x1xf32>
      %369 = vector.broadcast %368 : vector<1x8x1xf32> to vector<1x8x8xf32>
      %370 = arith.subf %366, %369 : vector<1x8x8xf32>
      %371 = math.exp %370 : vector<1x8x8xf32>
      %cst_91 = arith.constant dense<0.000000e+00> : vector<1x8xf32>
      %372 = vector.multi_reduction <add>, %371, %cst_91 [2] : vector<1x8x8xf32> to vector<1x8xf32>
      %373 = vector.shape_cast %372 : vector<1x8xf32> to vector<1x8x1xf32>
      %374 = vector.broadcast %373 : vector<1x8x1xf32> to vector<1x8x8xf32>
      %375 = arith.divf %371, %374 : vector<1x8x8xf32>
      "tpu.trace_start"() <{level = 10 : i32, message = "bij,bjd->bid"}> : () -> ()
      %cst_92 = arith.constant dense<0.000000e+00> : vector<1x8x128xf32>
      %376 = tpu.matmul %375, %104, %cst_92 {dimension_numbers = #tpu.dot_dimension_numbers<[2], [1], [1], [2], [0, 0, 0, 1, 1, 2], [0], [0]>} : vector<1x8x8xf32>, vector<1x8x128xf32>, vector<1x8x128xf32> -> vector<1x8x128xf32>
      "tpu.trace_stop"() : () -> ()
      %377 = vector.shape_cast %362 : vector<1x128xf32> to vector<1x1x128xf32>
      %378 = vector.broadcast %377 : vector<1x1x128xf32> to vector<1x8x128xf32>
      %379 = arith.mulf %376, %378 : vector<1x8x128xf32>
      %380 = arith.addf %355, %379 : vector<1x8x128xf32>
      %c33_i32_93 = arith.constant 33 : i32
      %381 = vector.broadcast %c33_i32_93 : i32 to vector<1x128xi32>
      %382 = arith.cmpi sge, %0, %381 : vector<1x128xi32>
      %c36_i32 = arith.constant 36 : i32
      %383 = vector.broadcast %c36_i32 : i32 to vector<1x128xi32>
      %384 = arith.cmpi slt, %0, %383 : vector<1x128xi32>
      %385 = arith.andi %382, %384 : vector<1x128xi1>
      %386 = arith.extui %385 : vector<1x128xi1> to vector<1x128xi32>
      %387 = arith.sitofp %386 : vector<1x128xi32> to vector<1x128xf32>
      %388 = vector.shape_cast %387 : vector<1x128xf32> to vector<1x1x128xf32>
      %389 = vector.broadcast %388 : vector<1x1x128xf32> to vector<1x8x128xf32>
      %390 = arith.mulf %102, %389 : vector<1x8x128xf32>
      "tpu.trace_start"() <{level = 10 : i32, message = "bid,bjd->bij"}> : () -> ()
      %cst_94 = arith.constant dense<0.000000e+00> : vector<1x8x8xf32>
      %391 = tpu.matmul %390, %103, %cst_94 {dimension_numbers = #tpu.dot_dimension_numbers<[2], [2], [1], [1], [0, 0, 0, 1, 1, 1], [0], [0]>} : vector<1x8x128xf32>, vector<1x8x128xf32>, vector<1x8x8xf32> -> vector<1x8x8xf32>
      "tpu.trace_stop"() : () -> ()
      %cst_95 = arith.constant dense<0xFF800000> : vector<1x8xf32>
      %392 = vector.multi_reduction <maximumf>, %391, %cst_95 [2] : vector<1x8x8xf32> to vector<1x8xf32>
      %393 = vector.shape_cast %392 : vector<1x8xf32> to vector<1x8x1xf32>
      %394 = vector.broadcast %393 : vector<1x8x1xf32> to vector<1x8x8xf32>
      %395 = arith.subf %391, %394 : vector<1x8x8xf32>
      %396 = math.exp %395 : vector<1x8x8xf32>
      %cst_96 = arith.constant dense<0.000000e+00> : vector<1x8xf32>
      %397 = vector.multi_reduction <add>, %396, %cst_96 [2] : vector<1x8x8xf32> to vector<1x8xf32>
      %398 = vector.shape_cast %397 : vector<1x8xf32> to vector<1x8x1xf32>
      %399 = vector.broadcast %398 : vector<1x8x1xf32> to vector<1x8x8xf32>
      %400 = arith.divf %396, %399 : vector<1x8x8xf32>
      "tpu.trace_start"() <{level = 10 : i32, message = "bij,bjd->bid"}> : () -> ()
      %cst_97 = arith.constant dense<0.000000e+00> : vector<1x8x128xf32>
      %401 = tpu.matmul %400, %104, %cst_97 {dimension_numbers = #tpu.dot_dimension_numbers<[2], [1], [1], [2], [0, 0, 0, 1, 1, 2], [0], [0]>} : vector<1x8x8xf32>, vector<1x8x128xf32>, vector<1x8x128xf32> -> vector<1x8x128xf32>
      "tpu.trace_stop"() : () -> ()
      %402 = vector.shape_cast %387 : vector<1x128xf32> to vector<1x1x128xf32>
      %403 = vector.broadcast %402 : vector<1x1x128xf32> to vector<1x8x128xf32>
      %404 = arith.mulf %401, %403 : vector<1x8x128xf32>
      %405 = arith.addf %380, %404 : vector<1x8x128xf32>
      %c36_i32_98 = arith.constant 36 : i32
      %406 = vector.broadcast %c36_i32_98 : i32 to vector<1x128xi32>
      %407 = arith.cmpi sge, %0, %406 : vector<1x128xi32>
      %c39_i32_99 = arith.constant 39 : i32
      %408 = vector.broadcast %c39_i32_99 : i32 to vector<1x128xi32>
      %409 = arith.cmpi slt, %0, %408 : vector<1x128xi32>
      %410 = arith.andi %407, %409 : vector<1x128xi1>
      %411 = arith.extui %410 : vector<1x128xi1> to vector<1x128xi32>
      %412 = arith.sitofp %411 : vector<1x128xi32> to vector<1x128xf32>
      %413 = vector.shape_cast %412 : vector<1x128xf32> to vector<1x1x128xf32>
      %414 = vector.broadcast %413 : vector<1x1x128xf32> to vector<1x8x128xf32>
      %415 = arith.mulf %102, %414 : vector<1x8x128xf32>
      "tpu.trace_start"() <{level = 10 : i32, message = "bid,bjd->bij"}> : () -> ()
      %cst_100 = arith.constant dense<0.000000e+00> : vector<1x8x8xf32>
      %416 = tpu.matmul %415, %103, %cst_100 {dimension_numbers = #tpu.dot_dimension_numbers<[2], [2], [1], [1], [0, 0, 0, 1, 1, 1], [0], [0]>} : vector<1x8x128xf32>, vector<1x8x128xf32>, vector<1x8x8xf32> -> vector<1x8x8xf32>
      "tpu.trace_stop"() : () -> ()
      %cst_101 = arith.constant dense<0xFF800000> : vector<1x8xf32>
      %417 = vector.multi_reduction <maximumf>, %416, %cst_101 [2] : vector<1x8x8xf32> to vector<1x8xf32>
      %418 = vector.shape_cast %417 : vector<1x8xf32> to vector<1x8x1xf32>
      %419 = vector.broadcast %418 : vector<1x8x1xf32> to vector<1x8x8xf32>
      %420 = arith.subf %416, %419 : vector<1x8x8xf32>
      %421 = math.exp %420 : vector<1x8x8xf32>
      %cst_102 = arith.constant dense<0.000000e+00> : vector<1x8xf32>
      %422 = vector.multi_reduction <add>, %421, %cst_102 [2] : vector<1x8x8xf32> to vector<1x8xf32>
      %423 = vector.shape_cast %422 : vector<1x8xf32> to vector<1x8x1xf32>
      %424 = vector.broadcast %423 : vector<1x8x1xf32> to vector<1x8x8xf32>
      %425 = arith.divf %421, %424 : vector<1x8x8xf32>
      "tpu.trace_start"() <{level = 10 : i32, message = "bij,bjd->bid"}> : () -> ()
      %cst_103 = arith.constant dense<0.000000e+00> : vector<1x8x128xf32>
      %426 = tpu.matmul %425, %104, %cst_103 {dimension_numbers = #tpu.dot_dimension_numbers<[2], [1], [1], [2], [0, 0, 0, 1, 1, 2], [0], [0]>} : vector<1x8x8xf32>, vector<1x8x128xf32>, vector<1x8x128xf32> -> vector<1x8x128xf32>
      "tpu.trace_stop"() : () -> ()
      %427 = vector.shape_cast %412 : vector<1x128xf32> to vector<1x1x128xf32>
      %428 = vector.broadcast %427 : vector<1x1x128xf32> to vector<1x8x128xf32>
      %429 = arith.mulf %426, %428 : vector<1x8x128xf32>
      %430 = arith.addf %405, %429 : vector<1x8x128xf32>
      %431 = vector.shape_cast %430 : vector<1x8x128xf32> to vector<8x128xf32>
      %432 = arith.truncf %431 : vector<8x128xf32> to vector<8x128xbf16>
      %433 = arith.index_cast %arg20 : i32 to index
      %c0_104 = arith.constant 0 : index
      %c0_105 = arith.constant 0 : index
      %434 = vector.load %arg4[%433, %c0_104, %c0_105] : memref<2x128x128xbf16, #tpu.memory_space<vmem>>, vector<1x128x128xbf16>
      %435 = vector.shape_cast %434 : vector<1x128x128xbf16> to vector<128x128xbf16>
      %cst_106 = arith.constant dense<0.000000e+00> : vector<8x128xf32>
      %436 = tpu.matmul %432, %435, %cst_106 {dimension_numbers = #tpu.dot_dimension_numbers<[1], [0], [0], [1], [0, 0, 1, 1], [], []>} : vector<8x128xbf16>, vector<128x128xbf16>, vector<8x128xf32> -> vector<8x128xf32>
      %437 = arith.index_cast %arg20 : i32 to index
      %c0_107 = arith.constant 0 : index
      %c0_108 = arith.constant 0 : index
      %438 = vector.load %arg5[%437, %c0_107, %c0_108] : memref<2x1x128xf32, #tpu.memory_space<vmem>>, vector<1x1x128xf32>
      %439 = vector.shape_cast %438 : vector<1x1x128xf32> to vector<1x128xf32>
      %440 = vector.broadcast %439 : vector<1x128xf32> to vector<8x128xf32>
      %441 = arith.addf %436, %440 : vector<8x128xf32>
      %442 = arith.addf %arg21, %441 : vector<8x128xf32>
      %443 = arith.index_cast %arg20 : i32 to index
      %c0_109 = arith.constant 0 : index
      %c0_110 = arith.constant 0 : index
      %444 = vector.load %arg12[%443, %c0_109, %c0_110] : memref<2x1x128xf32, #tpu.memory_space<vmem>>, vector<1x1x128xf32>
      %445 = vector.shape_cast %444 : vector<1x1x128xf32> to vector<1x128xf32>
      %446 = arith.index_cast %arg20 : i32 to index
      %c0_111 = arith.constant 0 : index
      %c0_112 = arith.constant 0 : index
      %447 = vector.load %arg13[%446, %c0_111, %c0_112] : memref<2x1x128xf32, #tpu.memory_space<vmem>>, vector<1x1x128xf32>
      %448 = vector.shape_cast %447 : vector<1x1x128xf32> to vector<1x128xf32>
      %449 = vector.broadcast %4 : vector<1x128xf32> to vector<8x128xf32>
      %450 = arith.mulf %442, %449 : vector<8x128xf32>
      %cst_113 = arith.constant dense<0.000000e+00> : vector<8xf32>
      %451 = vector.multi_reduction <add>, %450, %cst_113 [1] : vector<8x128xf32> to vector<8xf32>
      %452 = vector.shape_cast %451 : vector<8xf32> to vector<8x1xf32>
      %cst_114 = arith.constant 0.025641026 : f32
      %453 = vector.broadcast %cst_114 : f32 to vector<8x1xf32>
      %454 = arith.mulf %452, %453 : vector<8x1xf32>
      %455 = vector.broadcast %454 : vector<8x1xf32> to vector<8x128xf32>
      %456 = arith.subf %442, %455 : vector<8x128xf32>
      %457 = vector.broadcast %4 : vector<1x128xf32> to vector<8x128xf32>
      %458 = arith.mulf %456, %457 : vector<8x128xf32>
      %459 = arith.mulf %458, %458 : vector<8x128xf32>
      %cst_115 = arith.constant dense<0.000000e+00> : vector<8xf32>
      %460 = vector.multi_reduction <add>, %459, %cst_115 [1] : vector<8x128xf32> to vector<8xf32>
      %461 = vector.shape_cast %460 : vector<8xf32> to vector<8x1xf32>
      %cst_116 = arith.constant 0.025641026 : f32
      %462 = vector.broadcast %cst_116 : f32 to vector<8x1xf32>
      %463 = arith.mulf %461, %462 : vector<8x1xf32>
      %cst_117 = arith.constant 9.99999974E-6 : f32
      %464 = vector.broadcast %cst_117 : f32 to vector<8x1xf32>
      %465 = arith.addf %463, %464 : vector<8x1xf32>
      %466 = math.rsqrt %465 : vector<8x1xf32>
      %467 = vector.broadcast %466 : vector<8x1xf32> to vector<8x128xf32>
      %468 = arith.mulf %458, %467 : vector<8x128xf32>
      %469 = vector.broadcast %445 : vector<1x128xf32> to vector<8x128xf32>
      %470 = arith.mulf %468, %469 : vector<8x128xf32>
      %471 = vector.broadcast %448 : vector<1x128xf32> to vector<8x128xf32>
      %472 = arith.addf %470, %471 : vector<8x128xf32>
      %473 = arith.truncf %472 : vector<8x128xf32> to vector<8x128xbf16>
      %474 = arith.index_cast %arg20 : i32 to index
      %c0_118 = arith.constant 0 : index
      %c0_119 = arith.constant 0 : index
      %475 = vector.load %arg8[%474, %c0_118, %c0_119] : memref<2x128x256xbf16, #tpu.memory_space<vmem>>, vector<1x128x256xbf16>
      %476 = vector.shape_cast %475 : vector<1x128x256xbf16> to vector<128x256xbf16>
      %cst_120 = arith.constant dense<0.000000e+00> : vector<8x256xf32>
      %477 = tpu.matmul %473, %476, %cst_120 {dimension_numbers = #tpu.dot_dimension_numbers<[1], [0], [0], [1], [0, 0, 1, 1], [], []>} : vector<8x128xbf16>, vector<128x256xbf16>, vector<8x256xf32> -> vector<8x256xf32>
      %478 = arith.index_cast %arg20 : i32 to index
      %c0_121 = arith.constant 0 : index
      %c0_122 = arith.constant 0 : index
      %479 = vector.load %arg9[%478, %c0_121, %c0_122] : memref<2x1x256xf32, #tpu.memory_space<vmem>>, vector<1x1x256xf32>
      %480 = vector.shape_cast %479 : vector<1x1x256xf32> to vector<1x256xf32>
      %481 = vector.broadcast %480 : vector<1x256xf32> to vector<8x256xf32>
      %482 = arith.addf %477, %481 : vector<8x256xf32>
      %cst_123 = arith.constant 0.000000e+00 : f32
      %483 = vector.broadcast %cst_123 : f32 to vector<8x256xf32>
      %484 = arith.maximumf %482, %483 : vector<8x256xf32>
      %485 = arith.truncf %484 : vector<8x256xf32> to vector<8x256xbf16>
      %486 = arith.index_cast %arg20 : i32 to index
      %c0_124 = arith.constant 0 : index
      %c0_125 = arith.constant 0 : index
      %487 = vector.load %arg10[%486, %c0_124, %c0_125] : memref<2x256x128xbf16, #tpu.memory_space<vmem>>, vector<1x256x128xbf16>
      %488 = vector.shape_cast %487 : vector<1x256x128xbf16> to vector<256x128xbf16>
      %cst_126 = arith.constant dense<0.000000e+00> : vector<8x128xf32>
      %489 = tpu.matmul %485, %488, %cst_126 {dimension_numbers = #tpu.dot_dimension_numbers<[1], [0], [0], [1], [0, 0, 1, 1], [], []>} : vector<8x256xbf16>, vector<256x128xbf16>, vector<8x128xf32> -> vector<8x128xf32>
      %490 = arith.index_cast %arg20 : i32 to index
      %c0_127 = arith.constant 0 : index
      %c0_128 = arith.constant 0 : index
      %491 = vector.load %arg11[%490, %c0_127, %c0_128] : memref<2x1x128xf32, #tpu.memory_space<vmem>>, vector<1x1x128xf32>
      %492 = vector.shape_cast %491 : vector<1x1x128xf32> to vector<1x128xf32>
      %493 = vector.broadcast %492 : vector<1x128xf32> to vector<8x128xf32>
      %494 = arith.addf %489, %493 : vector<8x128xf32>
      %495 = arith.addf %442, %494 : vector<8x128xf32>
      scf.yield %495 : vector<8x128xf32>
    }
    %c2_i32_1 = arith.constant 2 : i32
    %c0_2 = arith.constant 0 : index
    %c0_3 = arith.constant 0 : index
    %8 = vector.load %arg14[%c0_2, %c0_3] : memref<1x128xf32, #tpu.memory_space<vmem>>, vector<1x128xf32>
    %c0_4 = arith.constant 0 : index
    %c0_5 = arith.constant 0 : index
    %9 = vector.load %arg15[%c0_4, %c0_5] : memref<1x128xf32, #tpu.memory_space<vmem>>, vector<1x128xf32>
    %10 = vector.broadcast %4 : vector<1x128xf32> to vector<8x128xf32>
    %11 = arith.mulf %7, %10 : vector<8x128xf32>
    %cst = arith.constant dense<0.000000e+00> : vector<8xf32>
    %12 = vector.multi_reduction <add>, %11, %cst [1] : vector<8x128xf32> to vector<8xf32>
    %13 = vector.shape_cast %12 : vector<8xf32> to vector<8x1xf32>
    %cst_6 = arith.constant 0.025641026 : f32
    %14 = vector.broadcast %cst_6 : f32 to vector<8x1xf32>
    %15 = arith.mulf %13, %14 : vector<8x1xf32>
    %16 = vector.broadcast %15 : vector<8x1xf32> to vector<8x128xf32>
    %17 = arith.subf %7, %16 : vector<8x128xf32>
    %18 = vector.broadcast %4 : vector<1x128xf32> to vector<8x128xf32>
    %19 = arith.mulf %17, %18 : vector<8x128xf32>
    %20 = arith.mulf %19, %19 : vector<8x128xf32>
    %cst_7 = arith.constant dense<0.000000e+00> : vector<8xf32>
    %21 = vector.multi_reduction <add>, %20, %cst_7 [1] : vector<8x128xf32> to vector<8xf32>
    %22 = vector.shape_cast %21 : vector<8xf32> to vector<8x1xf32>
    %cst_8 = arith.constant 0.025641026 : f32
    %23 = vector.broadcast %cst_8 : f32 to vector<8x1xf32>
    %24 = arith.mulf %22, %23 : vector<8x1xf32>
    %cst_9 = arith.constant 9.99999974E-6 : f32
    %25 = vector.broadcast %cst_9 : f32 to vector<8x1xf32>
    %26 = arith.addf %24, %25 : vector<8x1xf32>
    %27 = math.rsqrt %26 : vector<8x1xf32>
    %28 = vector.broadcast %27 : vector<8x1xf32> to vector<8x128xf32>
    %29 = arith.mulf %19, %28 : vector<8x128xf32>
    %30 = vector.broadcast %8 : vector<1x128xf32> to vector<8x128xf32>
    %31 = arith.mulf %29, %30 : vector<8x128xf32>
    %32 = vector.broadcast %9 : vector<1x128xf32> to vector<8x128xf32>
    %33 = arith.addf %31, %32 : vector<8x128xf32>
    %c0_10 = arith.constant 0 : index
    %c0_11 = arith.constant 0 : index
    %34 = vector.load %arg17[%c0_10, %c0_11] : memref<8x128xf32, #tpu.memory_space<vmem>>, vector<8x128xf32>
    tpu.vector_store %arg17[%c0_10, %c0_11], %33 {strides = array<i32>} : memref<8x128xf32, #tpu.memory_space<vmem>>, vector<8x128xf32>,
    %35 = arith.truncf %33 : vector<8x128xf32> to vector<8x128xbf16>
    %c0_12 = arith.constant 0 : index
    %c0_13 = arith.constant 0 : index
    %36 = vector.load %arg16[%c0_12, %c0_13] : memref<128x256xbf16, #tpu.memory_space<vmem>>, vector<128x256xbf16>
    %cst_14 = arith.constant dense<0.000000e+00> : vector<8x256xf32>
    %37 = tpu.matmul %35, %36, %cst_14 {dimension_numbers = #tpu.dot_dimension_numbers<[1], [0], [0], [1], [0, 0, 1, 1], [], []>} : vector<8x128xbf16>, vector<128x256xbf16>, vector<8x256xf32> -> vector<8x256xf32>
    %38 = vector.extract_strided_slice %37 {offsets = [0, 0], sizes = [8, 128], strides = [1, 1]} : vector<8x256xf32> to vector<8x128xf32>
    %39 = vector.extract_strided_slice %37 {offsets = [0, 128], sizes = [8, 128], strides = [1, 1]} : vector<8x256xf32> to vector<8x128xf32>
    %40 = tpu.iota {dimensions = array<i32: 1>} : vector<8x128xi32>
    %c86_i32 = arith.constant 86 : i32
    %41 = vector.broadcast %c86_i32 : i32 to vector<8x128xi32>
    %42 = arith.cmpi slt, %40, %41 : vector<8x128xi32>
    %cst_15 = arith.constant -1.000000e+30 : f32
    %43 = vector.broadcast %cst_15 : f32 to vector<8x128xf32>
    %44 = arith.select %42, %38, %43 : vector<8x128xi1>, vector<8x128xf32>
    %cst_16 = arith.constant dense<0xFF800000> : vector<8xf32>
    %45 = vector.multi_reduction <maximumf>, %44, %cst_16 [1] : vector<8x128xf32> to vector<8xf32>
    %46 = vector.shape_cast %45 : vector<8xf32> to vector<8x1xf32>
    %47 = vector.broadcast %46 : vector<8x1xf32> to vector<8x128xf32>
    %48 = arith.subf %38, %47 : vector<8x128xf32>
    %49 = math.exp %48 : vector<8x128xf32>
    %cst_17 = arith.constant 0.000000e+00 : f32
    %50 = vector.broadcast %cst_17 : f32 to vector<8x128xf32>
    %51 = arith.select %42, %49, %50 : vector<8x128xi1>, vector<8x128xf32>
    %cst_18 = arith.constant dense<0.000000e+00> : vector<8xf32>
    %52 = vector.multi_reduction <add>, %51, %cst_18 [1] : vector<8x128xf32> to vector<8xf32>
    %53 = vector.shape_cast %52 : vector<8xf32> to vector<8x1xf32>
    %54 = math.log %53 : vector<8x1xf32>
    %55 = vector.broadcast %54 : vector<8x1xf32> to vector<8x128xf32>
    %56 = arith.subf %48, %55 : vector<8x128xf32>
    %c0_19 = arith.constant 0 : index
    %c0_20 = arith.constant 0 : index
    %57 = vector.load %arg18[%c0_19, %c0_20] : memref<8x128xf32, #tpu.memory_space<vmem>>, vector<8x128xf32>
    tpu.vector_store %arg18[%c0_19, %c0_20], %56 {strides = array<i32>} : memref<8x128xf32, #tpu.memory_space<vmem>>, vector<8x128xf32>,
    %c0_21 = arith.constant 0 : index
    %c0_22 = arith.constant 0 : index
    %58 = vector.load %arg19[%c0_21, %c0_22] : memref<8x128xf32, #tpu.memory_space<vmem>>, vector<8x128xf32>
    tpu.vector_store %arg19[%c0_21, %c0_22], %39 {strides = array<i32>} : memref<8x128xf32, #tpu.memory_space<vmem>>, vector<8x128xf32>,
    return
  }
  func.func @transform_0(%arg0: i32) -> (i32, i32) {
    %c0_i32 = arith.constant 0 : i32
    %c0_i32_0 = arith.constant 0 : i32
    return %arg0, %c0_i32 : i32, i32
  }
  func.func @transform_1(%arg0: i32) -> (i32, i32, i32) {
    %c0_i32 = arith.constant 0 : i32
    %c0_i32_0 = arith.constant 0 : i32
    %c0_i32_1 = arith.constant 0 : i32
    %c0_i32_2 = arith.constant 0 : i32
    return %c0_i32, %c0_i32_0, %c0_i32_1 : i32, i32, i32
  }
  func.func @transform_2(%arg0: i32) -> (i32, i32, i32) {
    %c0_i32 = arith.constant 0 : i32
    %c0_i32_0 = arith.constant 0 : i32
    %c0_i32_1 = arith.constant 0 : i32
    %c0_i32_2 = arith.constant 0 : i32
    return %c0_i32, %c0_i32_0, %c0_i32_1 : i32, i32, i32
  }
  func.func @transform_3(%arg0: i32) -> (i32, i32, i32) {
    %c0_i32 = arith.constant 0 : i32
    %c0_i32_0 = arith.constant 0 : i32
    %c0_i32_1 = arith.constant 0 : i32
    %c0_i32_2 = arith.constant 0 : i32
    return %c0_i32, %c0_i32_0, %c0_i32_1 : i32, i32, i32
  }
  func.func @transform_4(%arg0: i32) -> (i32, i32, i32) {
    %c0_i32 = arith.constant 0 : i32
    %c0_i32_0 = arith.constant 0 : i32
    %c0_i32_1 = arith.constant 0 : i32
    %c0_i32_2 = arith.constant 0 : i32
    return %c0_i32, %c0_i32_0, %c0_i32_1 : i32, i32, i32
  }
  func.func @transform_5(%arg0: i32) -> (i32, i32, i32) {
    %c0_i32 = arith.constant 0 : i32
    %c0_i32_0 = arith.constant 0 : i32
    %c0_i32_1 = arith.constant 0 : i32
    %c0_i32_2 = arith.constant 0 : i32
    return %c0_i32, %c0_i32_0, %c0_i32_1 : i32, i32, i32
  }
  func.func @transform_6(%arg0: i32) -> (i32, i32, i32) {
    %c0_i32 = arith.constant 0 : i32
    %c0_i32_0 = arith.constant 0 : i32
    %c0_i32_1 = arith.constant 0 : i32
    %c0_i32_2 = arith.constant 0 : i32
    return %c0_i32, %c0_i32_0, %c0_i32_1 : i32, i32, i32
  }
  func.func @transform_7(%arg0: i32) -> (i32, i32, i32) {
    %c0_i32 = arith.constant 0 : i32
    %c0_i32_0 = arith.constant 0 : i32
    %c0_i32_1 = arith.constant 0 : i32
    %c0_i32_2 = arith.constant 0 : i32
    return %c0_i32, %c0_i32_0, %c0_i32_1 : i32, i32, i32
  }
  func.func @transform_8(%arg0: i32) -> (i32, i32, i32) {
    %c0_i32 = arith.constant 0 : i32
    %c0_i32_0 = arith.constant 0 : i32
    %c0_i32_1 = arith.constant 0 : i32
    %c0_i32_2 = arith.constant 0 : i32
    return %c0_i32, %c0_i32_0, %c0_i32_1 : i32, i32, i32
  }
  func.func @transform_9(%arg0: i32) -> (i32, i32, i32) {
    %c0_i32 = arith.constant 0 : i32
    %c0_i32_0 = arith.constant 0 : i32
    %c0_i32_1 = arith.constant 0 : i32
    %c0_i32_2 = arith.constant 0 : i32
    return %c0_i32, %c0_i32_0, %c0_i32_1 : i32, i32, i32
  }
  func.func @transform_10(%arg0: i32) -> (i32, i32, i32) {
    %c0_i32 = arith.constant 0 : i32
    %c0_i32_0 = arith.constant 0 : i32
    %c0_i32_1 = arith.constant 0 : i32
    %c0_i32_2 = arith.constant 0 : i32
    return %c0_i32, %c0_i32_0, %c0_i32_1 : i32, i32, i32
  }
  func.func @transform_11(%arg0: i32) -> (i32, i32, i32) {
    %c0_i32 = arith.constant 0 : i32
    %c0_i32_0 = arith.constant 0 : i32
    %c0_i32_1 = arith.constant 0 : i32
    %c0_i32_2 = arith.constant 0 : i32
    return %c0_i32, %c0_i32_0, %c0_i32_1 : i32, i32, i32
  }
  func.func @transform_12(%arg0: i32) -> (i32, i32, i32) {
    %c0_i32 = arith.constant 0 : i32
    %c0_i32_0 = arith.constant 0 : i32
    %c0_i32_1 = arith.constant 0 : i32
    %c0_i32_2 = arith.constant 0 : i32
    return %c0_i32, %c0_i32_0, %c0_i32_1 : i32, i32, i32
  }
  func.func @transform_13(%arg0: i32) -> (i32, i32) {
    %c0_i32 = arith.constant 0 : i32
    %c0_i32_0 = arith.constant 0 : i32
    %c0_i32_1 = arith.constant 0 : i32
    return %c0_i32, %c0_i32_0 : i32, i32
  }
  func.func @transform_14(%arg0: i32) -> (i32, i32) {
    %c0_i32 = arith.constant 0 : i32
    %c0_i32_0 = arith.constant 0 : i32
    %c0_i32_1 = arith.constant 0 : i32
    return %c0_i32, %c0_i32_0 : i32, i32
  }
  func.func @transform_15(%arg0: i32) -> (i32, i32) {
    %c0_i32 = arith.constant 0 : i32
    %c0_i32_0 = arith.constant 0 : i32
    %c0_i32_1 = arith.constant 0 : i32
    return %c0_i32, %c0_i32_0 : i32, i32
  }
  func.func @transform_16(%arg0: i32) -> (i32, i32) {
    %c0_i32 = arith.constant 0 : i32
    %c0_i32_0 = arith.constant 0 : i32
    return %arg0, %c0_i32 : i32, i32
  }
  func.func @transform_17(%arg0: i32) -> (i32, i32) {
    %c0_i32 = arith.constant 0 : i32
    %c0_i32_0 = arith.constant 0 : i32
    return %arg0, %c0_i32 : i32, i32
  }
  func.func @transform_18(%arg0: i32) -> (i32, i32) {
    %c0_i32 = arith.constant 0 : i32
    %c0_i32_0 = arith.constant 0 : i32
    return %arg0, %c0_i32 : i32, i32
  }
}

</mosaic_0001>

<llo_original>
// kernel: bertphone_forward.1
$region0: #{bertphone_forward.1}
  #allocation0 [shape = 'u32[]', space=smem, size = 0x4, offset = 0x4, fixed_abs, tag = 'smem constant byte address 0x4 - core index']
  #allocation1 [shape = 'u32[144,128]{1,0:T(1,128)}', space=vmem, size = 0x12000, scoped, tag = 'internal scratch']
  %s0 = inlined_call_operand.vmem [shape: f32[16,128], index: 0, kind: input, shape index: {}]
  %s1 = inlined_call_operand.hbm [shape: bf16[2,128,384], index: 1, kind: input, shape index: {}]
  %s2 = inlined_call_operand.vmem [shape: f32[2,1,384], index: 2, kind: input, shape index: {}]
  %s3 = inlined_call_operand.vmem [shape: bf16[2,128,128], index: 3, kind: input, shape index: {}]
  %s4 = inlined_call_operand.vmem [shape: f32[2,1,128], index: 4, kind: input, shape index: {}]
  %s5 = inlined_call_operand.vmem [shape: f32[2,1,128], index: 5, kind: input, shape index: {}]
  %s6 = inlined_call_operand.vmem [shape: f32[2,1,128], index: 6, kind: input, shape index: {}]
  %s7 = inlined_call_operand.hbm [shape: bf16[2,128,256], index: 7, kind: input, shape index: {}]
  %s8 = inlined_call_operand.vmem [shape: f32[2,1,256], index: 8, kind: input, shape index: {}]
  %s9 = inlined_call_operand.hbm [shape: bf16[2,256,128], index: 9, kind: input, shape index: {}]
  %s10 = inlined_call_operand.vmem [shape: f32[2,1,128], index: 10, kind: input, shape index: {}]
  %s11 = inlined_call_operand.vmem [shape: f32[2,1,128], index: 11, kind: input, shape index: {}]
  %s12 = inlined_call_operand.vmem [shape: f32[2,1,128], index: 12, kind: input, shape index: {}]
  %s13 = inlined_call_operand.vmem [shape: f32[1,128], index: 13, kind: input, shape index: {}]
  %s14 = inlined_call_operand.vmem [shape: f32[1,128], index: 14, kind: input, shape index: {}]
  %s15 = inlined_call_operand.hbm [shape: bf16[128,256], index: 15, kind: input, shape index: {}]
  %s16 = inlined_call_operand.vmem [shape: f32[16,128], index: 16, kind: output, shape index: {0}]
  %s17 = inlined_call_operand.vmem [shape: f32[16,128], index: 17, kind: output, shape index: {1}]
  %s18 = inlined_call_operand.vmem [shape: f32[16,128], index: 18, kind: output, shape index: {2}]
  %19 = xla_tuple %s16, %s17, %s18
  %s20 = sld [smem:[#allocation0]]
  $region136: #{bertphone_forward.1} parent=0
    _
  %s22 = ssub.s32 1, %s20
  %s23 = scalar_select 0, %s22, %s20
  $region1: #{bertphone_forward.1} parent=0
    #allocation2 [shape = 'u8[196608]{0}', space=vmem, size = 0x30000, scoped, tag = 'input window, operand 1, single buffered']
    #allocation3 [shape = 's32[2]{0}', space=sflag, size = 0x8, scoped, tag = 'scoped memory for bertphone_forward.1']
    #allocation4 [shape = 'u8[131072]{0}', space=vmem, size = 0x20000, scoped, tag = 'input window, operand 7, single buffered']
    #allocation5 [shape = 's32[1]{0}', space=sflag, size = 0x4, scoped, tag = 'scoped memory for bertphone_forward.1']
    #allocation6 [shape = 'u8[131072]{0}', space=vmem, size = 0x20000, scoped, tag = 'input window, operand 9, single buffered']
    #allocation7 [shape = 'u8[65536]{0}', space=vmem, size = 0x10000, scoped, tag = 'input window, operand 15, single buffered']
    #allocation8 [shape = 's32[1]{0}', space=sflag, size = 0x4, scoped, tag = 'scoped memory for bertphone_forward.1']
    %24 = vsyncpa [#allocation3], 0
    %25 = vsyncpa [#allocation5], 0
    %26 = vsyncpa [#allocation8], 0
    loop: start=0, step=1, limit=4
    $region2: #{bertphone_forward.1} parent=1 // loop_pre_header
      _
    $region3: #{bertphone_forward.1} parent=1 // loop_header
      %s28 = sphi 0, %s32
      %p29 = scmp.ge.s32.totalorder %s28, 4
      %s38 = sphi 0, %s40
      %s41 = sphi 0, %s38
      %s42 = sphi 0, %s41
      %s58 = sphi 0, %s42
      %s62 = sphi 0, %s62
      %s64 = sphi 0, %s62
      %s65 = sphi 0, %s64
      %s79 = sphi 0, %s65
      %s83 = sphi 0, %s83
      %s85 = sphi 0, %s83
      %s86 = sphi 0, %s85
      %s100 = sphi 0, %s86
      %s104 = sphi 0, %s104
      %s106 = sphi 0, %s104
      %s107 = sphi 0, %s106
      %s121 = sphi 0, %s107
      %s125 = sphi 0, %s125
      %s127 = sphi 0, %s125
      %s128 = sphi 0, %s127
      %s142 = sphi 0, %s128
      %s146 = sphi 0, %s146
      %s148 = sphi 0, %s146
      %s149 = sphi 0, %s148
      %s163 = sphi 0, %s149
      %s167 = sphi 0, %s167
      %s169 = sphi 0, %s167
      %s170 = sphi 0, %s169
      %s184 = sphi 0, %s170
      %s188 = sphi 0, %s188
      %s190 = sphi 0, %s188
      %s191 = sphi 0, %s190
      %s205 = sphi 0, %s191
      %s209 = sphi 0, %s209
      %s211 = sphi 0, %s209
      %s212 = sphi 0, %s211
      %s226 = sphi 0, %s212
      %s230 = sphi 0, %s230
      %s232 = sphi 0, %s230
      %s233 = sphi 0, %s232
      %s247 = sphi 0, %s233
      %s251 = sphi 0, %s251
      %s253 = sphi 0, %s251
      %s254 = sphi 0, %s253
      %s268 = sphi 0, %s254
      %s272 = sphi 0, %s272
      %s274 = sphi 0, %s272
      %s275 = sphi 0, %s274
      %s289 = sphi 0, %s275
      %s293 = sphi 0, %s293
      %s295 = sphi 0, %s293
      %s296 = sphi 0, %s295
      %s310 = sphi 0, %s296
      %s314 = sphi 0, %s314
      %s316 = sphi 0, %s314
      %s317 = sphi 0, %s316
      %s331 = sphi 0, %s317
      %s335 = sphi 0, %s335
      %s337 = sphi 0, %s335
      %s338 = sphi 0, %s337
      %s352 = sphi 0, %s338
      %s356 = sphi 0, %s356
      %s358 = sphi 0, %s356
      %s359 = sphi 0, %s358
      %s373 = sphi 0, %s359
      %s379 = sphi 0, %s381
      %s382 = sphi 0, %s379
      %s383 = sphi 0, %s382
      %s399 = sphi 0, %s383
      %s405 = sphi 0, %s407
      %s408 = sphi 0, %s405
      %s409 = sphi 0, %s408
      %s425 = sphi 0, %s409
      %s431 = sphi 0, %s433
      %s434 = sphi 0, %s431
      %s435 = sphi 0, %s434
      %s451 = sphi 0, %s435
    $region4: #{bertphone_forward.1} parent=1 // loop_header_branch
      %31 = sbr.rel (%p29) target = $region8
    $region5: #{bertphone_forward.1} parent=1 // loop_body
      %s33 = ssub.s32 %s28, 1
      %s34 = ssub.s32 %s28, 2
      %s35 = sadd.s32 %s28, 1
      %s36 = ssub.s32 %s28, %s35
      %p37 = scmp.eq.s32.totalorder %s36, 0
      %s39 = sadd.s32 %s38, 1
      %s40 = scalar_select %p37, %s38, %s39
      %p43 = pneg %p37
      %p44 = scmp.eq.s32.totalorder %s28, 1
      %p45 = por %p43, %p44
      %p46 = scmp.ne.s32.totalorder %s38, %s41
      %p47 = scmp.eq.s32.totalorder %s28, 0
      %p48 = por %p46, %p47
      %p49 = scmp.ne.s32.totalorder %s38, %s41
      %p50 = scmp.eq.s32.totalorder %s33, 1
      %p51 = por %p49, %p50
      %p52 = scmp.ne.s32.totalorder %s41, %s42
      %p53 = scmp.eq.s32.totalorder %s33, 0
      %p54 = por %p52, %p53
      %p55 = scmp.ne.s32.totalorder %s41, %s42
      %p56 = scmp.eq.s32.totalorder %s34, 1
      %p57 = por %p55, %p56
      %p59 = scmp.ne.s32.totalorder %s42, %s58
      %p60 = scmp.eq.s32.totalorder %s34, 0
      %p61 = por %p59, %p60
      %s63 = sadd.s32 %s62, 1
      %p66 = scmp.eq.s32.totalorder %s28, 1
      %p67 = scmp.ne.s32.totalorder %s62, %s64
      %p68 = scmp.eq.s32.totalorder %s28, 0
      %p69 = por %p67, %p68
      %p70 = scmp.ne.s32.totalorder %s62, %s64
      %p71 = scmp.eq.s32.totalorder %s33, 1
      %p72 = por %p70, %p71
      %p73 = scmp.ne.s32.totalorder %s64, %s65
      %p74 = scmp.eq.s32.totalorder %s33, 0
      %p75 = por %p73, %p74
      %p76 = scmp.ne.s32.totalorder %s64, %s65
      %p77 = scmp.eq.s32.totalorder %s34, 1
      %p78 = por %p76, %p77
      %p80 = scmp.ne.s32.totalorder %s65, %s79
      %p81 = scmp.eq.s32.totalorder %s34, 0
      %p82 = por %p80, %p81
      %s84 = sadd.s32 %s83, 1
      %p87 = scmp.eq.s32.totalorder %s28, 1
      %p88 = scmp.ne.s32.totalorder %s83, %s85
      %p89 = scmp.eq.s32.totalorder %s28, 0
      %p90 = por %p88, %p89
      %p91 = scmp.ne.s32.totalorder %s83, %s85
      %p92 = scmp.eq.s32.totalorder %s33, 1
      %p93 = por %p91, %p92
      %p94 = scmp.ne.s32.totalorder %s85, %s86
      %p95 = scmp.eq.s32.totalorder %s33, 0
      %p96 = por %p94, %p95
      %p97 = scmp.ne.s32.totalorder %s85, %s86
      %p98 = scmp.eq.s32.totalorder %s34, 1
      %p99 = por %p97, %p98
      %p101 = scmp.ne.s32.totalorder %s86, %s100
      %p102 = scmp.eq.s32.totalorder %s34, 0
      %p103 = por %p101, %p102
      %s105 = sadd.s32 %s104, 1
      %p108 = scmp.eq.s32.totalorder %s28, 1
      %p109 = scmp.ne.s32.totalorder %s104, %s106
      %p110 = scmp.eq.s32.totalorder %s28, 0
      %p111 = por %p109, %p110
      %p112 = scmp.ne.s32.totalorder %s104, %s106
      %p113 = scmp.eq.s32.totalorder %s33, 1
      %p114 = por %p112, %p113
      %p115 = scmp.ne.s32.totalorder %s106, %s107
      %p116 = scmp.eq.s32.totalorder %s33, 0
      %p117 = por %p115, %p116
      %p118 = scmp.ne.s32.totalorder %s106, %s107
      %p119 = scmp.eq.s32.totalorder %s34, 1
      %p120 = por %p118, %p119
      %p122 = scmp.ne.s32.totalorder %s107, %s121
      %p123 = scmp.eq.s32.totalorder %s34, 0
      %p124 = por %p122, %p123
      %s126 = sadd.s32 %s125, 1
      %p129 = scmp.eq.s32.totalorder %s28, 1
      %p130 = scmp.ne.s32.totalorder %s125, %s127
      %p131 = scmp.eq.s32.totalorder %s28, 0
      %p132 = por %p130, %p131
      %p133 = scmp.ne.s32.totalorder %s125, %s127
      %p134 = scmp.eq.s32.totalorder %s33, 1
      %p135 = por %p133, %p134
      %p136 = scmp.ne.s32.totalorder %s127, %s128
      %p137 = scmp.eq.s32.totalorder %s33, 0
      %p138 = por %p136, %p137
      %p139 = scmp.ne.s32.totalorder %s127, %s128
      %p140 = scmp.eq.s32.totalorder %s34, 1
      %p141 = por %p139, %p140
      %p143 = scmp.ne.s32.totalorder %s128, %s142
      %p144 = scmp.eq.s32.totalorder %s34, 0
      %p145 = por %p143, %p144
      %s147 = sadd.s32 %s146, 1
      %p150 = scmp.eq.s32.totalorder %s28, 1
      %p151 = scmp.ne.s32.totalorder %s146, %s148
      %p152 = scmp.eq.s32.totalorder %s28, 0
      %p153 = por %p151, %p152
      %p154 = scmp.ne.s32.totalorder %s146, %s148
      %p155 = scmp.eq.s32.totalorder %s33, 1
      %p156 = por %p154, %p155
      %p157 = scmp.ne.s32.totalorder %s148, %s149
      %p158 = scmp.eq.s32.totalorder %s33, 0
      %p159 = por %p157, %p158
      %p160 = scmp.ne.s32.totalorder %s148, %s149
      %p161 = scmp.eq.s32.totalorder %s34, 1
      %p162 = por %p160, %p161
      %p164 = scmp.ne.s32.totalorder %s149, %s163
      %p165 = scmp.eq.s32.totalorder %s34, 0
      %p166 = por %p164, %p165
      %s168 = sadd.s32 %s167, 1
      %p171 = scmp.eq.s32.totalorder %s28, 1
      %p172 = scmp.ne.s32.totalorder %s167, %s169
      %p173 = scmp.eq.s32.totalorder %s28, 0
      %p174 = por %p172, %p173
      %p175 = scmp.ne.s32.totalorder %s167, %s169
      %p176 = scmp.eq.s32.totalorder %s33, 1
      %p177 = por %p175, %p176
      %p178 = scmp.ne.s32.totalorder %s169, %s170
      %p179 = scmp.eq.s32.totalorder %s33, 0
      %p180 = por %p178, %p179
      %p181 = scmp.ne.s32.totalorder %s169, %s170
      %p182 = scmp.eq.s32.totalorder %s34, 1
      %p183 = por %p181, %p182
      %p185 = scmp.ne.s32.totalorder %s170, %s184
      %p186 = scmp.eq.s32.totalorder %s34, 0
      %p187 = por %p185, %p186
      %s189 = sadd.s32 %s188, 1
      %p192 = scmp.eq.s32.totalorder %s28, 1
      %p193 = scmp.ne.s32.totalorder %s188, %s190
      %p194 = scmp.eq.s32.totalorder %s28, 0
      %p195 = por %p193, %p194
      %p196 = scmp.ne.s32.totalorder %s188, %s190
      %p197 = scmp.eq.s32.totalorder %s33, 1
      %p198 = por %p196, %p197
      %p199 = scmp.ne.s32.totalorder %s190, %s191
      %p200 = scmp.eq.s32.totalorder %s33, 0
      %p201 = por %p199, %p200
      %p202 = scmp.ne.s32.totalorder %s190, %s191
      %p203 = scmp.eq.s32.totalorder %s34, 1
      %p204 = por %p202, %p203
      %p206 = scmp.ne.s32.totalorder %s191, %s205
      %p207 = scmp.eq.s32.totalorder %s34, 0
      %p208 = por %p206, %p207
      %s210 = sadd.s32 %s209, 1
      %p213 = scmp.eq.s32.totalorder %s28, 1
      %p214 = scmp.ne.s32.totalorder %s209, %s211
      %p215 = scmp.eq.s32.totalorder %s28, 0
      %p216 = por %p214, %p215
      %p217 = scmp.ne.s32.totalorder %s209, %s211
      %p218 = scmp.eq.s32.totalorder %s33, 1
      %p219 = por %p217, %p218
      %p220 = scmp.ne.s32.totalorder %s211, %s212
      %p221 = scmp.eq.s32.totalorder %s33, 0
      %p222 = por %p220, %p221
      %p223 = scmp.ne.s32.totalorder %s211, %s212
      %p224 = scmp.eq.s32.totalorder %s34, 1
      %p225 = por %p223, %p224
      %p227 = scmp.ne.s32.totalorder %s212, %s226
      %p228 = scmp.eq.s32.totalorder %s34, 0
      %p229 = por %p227, %p228
      %s231 = sadd.s32 %s230, 1
      %p234 = scmp.eq.s32.totalorder %s28, 1
      %p235 = scmp.ne.s32.totalorder %s230, %s232
      %p236 = scmp.eq.s32.totalorder %s28, 0
      %p237 = por %p235, %p236
      %p238 = scmp.ne.s32.totalorder %s230, %s232
      %p239 = scmp.eq.s32.totalorder %s33, 1
      %p240 = por %p238, %p239
      %p241 = scmp.ne.s32.totalorder %s232, %s233
      %p242 = scmp.eq.s32.totalorder %s33, 0
      %p243 = por %p241, %p242
      %p244 = scmp.ne.s32.totalorder %s232, %s233
      %p245 = scmp.eq.s32.totalorder %s34, 1
      %p246 = por %p244, %p245
      %p248 = scmp.ne.s32.totalorder %s233, %s247
      %p249 = scmp.eq.s32.totalorder %s34, 0
      %p250 = por %p248, %p249
      %s252 = sadd.s32 %s251, 1
      %p255 = scmp.eq.s32.totalorder %s28, 1
      %p256 = scmp.ne.s32.totalorder %s251, %s253
      %p257 = scmp.eq.s32.totalorder %s28, 0
      %p258 = por %p256, %p257
      %p259 = scmp.ne.s32.totalorder %s251, %s253
      %p260 = scmp.eq.s32.totalorder %s33, 1
      %p261 = por %p259, %p260
      %p262 = scmp.ne.s32.totalorder %s253, %s254
      %p263 = scmp.eq.s32.totalorder %s33, 0
      %p264 = por %p262, %p263
      %p265 = scmp.ne.s32.totalorder %s253, %s254
      %p266 = scmp.eq.s32.totalorder %s34, 1
      %p267 = por %p265, %p266
      %p269 = scmp.ne.s32.totalorder %s254, %s268
      %p270 = scmp.eq.s32.totalorder %s34, 0
      %p271 = por %p269, %p270
      %s273 = sadd.s32 %s272, 1
      %p276 = scmp.eq.s32.totalorder %s28, 1
      %p277 = scmp.ne.s32.totalorder %s272, %s274
      %p278 = scmp.eq.s32.totalorder %s28, 0
      %p279 = por %p277, %p278
      %p280 = scmp.ne.s32.totalorder %s272, %s274
      %p281 = scmp.eq.s32.totalorder %s33, 1
      %p282 = por %p280, %p281
      %p283 = scmp.ne.s32.totalorder %s274, %s275
      %p284 = scmp.eq.s32.totalorder %s33, 0
      %p285 = por %p283, %p284
      %p286 = scmp.ne.s32.totalorder %s274, %s275
      %p287 = scmp.eq.s32.totalorder %s34, 1
      %p288 = por %p286, %p287
      %p290 = scmp.ne.s32.totalorder %s275, %s289
      %p291 = scmp.eq.s32.totalorder %s34, 0
      %p292 = por %p290, %p291
      %s294 = sadd.s32 %s293, 1
      %p297 = scmp.eq.s32.totalorder %s28, 1
      %p298 = scmp.ne.s32.totalorder %s293, %s295
      %p299 = scmp.eq.s32.totalorder %s28, 0
      %p300 = por %p298, %p299
      %p301 = scmp.ne.s32.totalorder %s293, %s295
      %p302 = scmp.eq.s32.totalorder %s33, 1
      %p303 = por %p301, %p302
      %p304 = scmp.ne.s32.totalorder %s295, %s296
      %p305 = scmp.eq.s32.totalorder %s33, 0
      %p306 = por %p304, %p305
      %p307 = scmp.ne.s32.totalorder %s295, %s296
      %p308 = scmp.eq.s32.totalorder %s34, 1
      %p309 = por %p307, %p308
      %p311 = scmp.ne.s32.totalorder %s296, %s310
      %p312 = scmp.eq.s32.totalorder %s34, 0
      %p313 = por %p311, %p312
      %s315 = sadd.s32 %s314, 1
      %p318 = scmp.eq.s32.totalorder %s28, 1
      %p319 = scmp.ne.s32.totalorder %s314, %s316
      %p320 = scmp.eq.s32.totalorder %s28, 0
      %p321 = por %p319, %p320
      %p322 = scmp.ne.s32.totalorder %s314, %s316
      %p323 = scmp.eq.s32.totalorder %s33, 1
      %p324 = por %p322, %p323
      %p325 = scmp.ne.s32.totalorder %s316, %s317
      %p326 = scmp.eq.s32.totalorder %s33, 0
      %p327 = por %p325, %p326
      %p328 = scmp.ne.s32.totalorder %s316, %s317
      %p329 = scmp.eq.s32.totalorder %s34, 1
      %p330 = por %p328, %p329
      %p332 = scmp.ne.s32.totalorder %s317, %s331
      %p333 = scmp.eq.s32.totalorder %s34, 0
      %p334 = por %p332, %p333
      %s336 = sadd.s32 %s335, 1
      %p339 = scmp.eq.s32.totalorder %s28, 1
      %p340 = scmp.ne.s32.totalorder %s335, %s337
      %p341 = scmp.eq.s32.totalorder %s28, 0
      %p342 = por %p340, %p341
      %p343 = scmp.ne.s32.totalorder %s335, %s337
      %p344 = scmp.eq.s32.totalorder %s33, 1
      %p345 = por %p343, %p344
      %p346 = scmp.ne.s32.totalorder %s337, %s338
      %p347 = scmp.eq.s32.totalorder %s33, 0
      %p348 = por %p346, %p347
      %p349 = scmp.ne.s32.totalorder %s337, %s338
      %p350 = scmp.eq.s32.totalorder %s34, 1
      %p351 = por %p349, %p350
      %p353 = scmp.ne.s32.totalorder %s338, %s352
      %p354 = scmp.eq.s32.totalorder %s34, 0
      %p355 = por %p353, %p354
      %s357 = sadd.s32 %s356, 1
      %p360 = scmp.eq.s32.totalorder %s28, 1
      %p361 = scmp.ne.s32.totalorder %s356, %s358
      %p362 = scmp.eq.s32.totalorder %s28, 0
      %p363 = por %p361, %p362
      %p364 = scmp.ne.s32.totalorder %s356, %s358
      %p365 = scmp.eq.s32.totalorder %s33, 1
      %p366 = por %p364, %p365
      %p367 = scmp.ne.s32.totalorder %s358, %s359
      %p368 = scmp.eq.s32.totalorder %s33, 0
      %p369 = por %p367, %p368
      %p370 = scmp.ne.s32.totalorder %s358, %s359
      %p371 = scmp.eq.s32.totalorder %s34, 1
      %p372 = por %p370, %p371
      %p374 = scmp.ne.s32.totalorder %s359, %s373
      %p375 = scmp.eq.s32.totalorder %s34, 0
      %p376 = por %p374, %p375
      %s377 = ssub.s32 %s28, %s35
      %p378 = scmp.eq.s32.totalorder %s377, 0
      %s380 = sadd.s32 %s379, 1
      %s381 = scalar_select %p378, %s379, %s380
      %p384 = pneg %p378
      %p385 = scmp.eq.s32.totalorder %s28, 1
      %p386 = por %p384, %p385
      %p387 = scmp.ne.s32.totalorder %s379, %s382
      %p388 = scmp.eq.s32.totalorder %s28, 0
      %p389 = por %p387, %p388
      %p390 = scmp.ne.s32.totalorder %s379, %s382
      %p391 = scmp.eq.s32.totalorder %s33, 1
      %p392 = por %p390, %p391
      %p393 = scmp.ne.s32.totalorder %s382, %s383
      %p394 = scmp.eq.s32.totalorder %s33, 0
      %p395 = por %p393, %p394
      %p396 = scmp.ne.s32.totalorder %s382, %s383
      %p397 = scmp.eq.s32.totalorder %s34, 1
      %p398 = por %p396, %p397
      %p400 = scmp.ne.s32.totalorder %s383, %s399
      %p401 = scmp.eq.s32.totalorder %s34, 0
      %p402 = por %p400, %p401
      %s403 = ssub.s32 %s28, %s35
      %p404 = scmp.eq.s32.totalorder %s403, 0
      %s406 = sadd.s32 %s405, 1
      %s407 = scalar_select %p404, %s405, %s406
      %p410 = pneg %p404
      %p411 = scmp.eq.s32.totalorder %s28, 1
      %p412 = por %p410, %p411
      %p413 = scmp.ne.s32.totalorder %s405, %s408
      %p414 = scmp.eq.s32.totalorder %s28, 0
      %p415 = por %p413, %p414
      %p416 = scmp.ne.s32.totalorder %s405, %s408
      %p417 = scmp.eq.s32.totalorder %s33, 1
      %p418 = por %p416, %p417
      %p419 = scmp.ne.s32.totalorder %s408, %s409
      %p420 = scmp.eq.s32.totalorder %s33, 0
      %p421 = por %p419, %p420
      %p422 = scmp.ne.s32.totalorder %s408, %s409
      %p423 = scmp.eq.s32.totalorder %s34, 1
      %p424 = por %p422, %p423
      %p426 = scmp.ne.s32.totalorder %s409, %s425
      %p427 = scmp.eq.s32.totalorder %s34, 0
      %p428 = por %p426, %p427
      %s429 = ssub.s32 %s28, %s35
      %p430 = scmp.eq.s32.totalorder %s429, 0
      %s432 = sadd.s32 %s431, 1
      %s433 = scalar_select %p430, %s431, %s432
      %p436 = pneg %p430
      %p437 = scmp.eq.s32.totalorder %s28, 1
      %p438 = por %p436, %p437
      %p439 = scmp.ne.s32.totalorder %s431, %s434
      %p440 = scmp.eq.s32.totalorder %s28, 0
      %p441 = por %p439, %p440
      %p442 = scmp.ne.s32.totalorder %s431, %s434
      %p443 = scmp.eq.s32.totalorder %s33, 1
      %p444 = por %p442, %p443
      %p445 = scmp.ne.s32.totalorder %s434, %s435
      %p446 = scmp.eq.s32.totalorder %s33, 0
      %p447 = por %p445, %p446
      %p448 = scmp.ne.s32.totalorder %s434, %s435
      %p449 = scmp.eq.s32.totalorder %s34, 1
      %p450 = por %p448, %p449
      %p452 = scmp.ne.s32.totalorder %s435, %s451
      %p453 = scmp.eq.s32.totalorder %s34, 0
      %p454 = por %p452, %p453
      %p455 = scmp.le.s32.totalorder 1, %s28
      %p456 = scmp.lt.s32.totalorder %s28, 3
      %p457 = pnand %p455, %p456
      %p458 = pneg %p457
      // Predicated region
      $region9: #{bertphone_forward.1} parent=5 // pred_check
        _
      $region10: #{bertphone_forward.1} parent=5 // pred_check_branch
        %460 = sbr.rel (%p457) target = $region12
      $region11: #{bertphone_forward.1} parent=5 // pred_region
        %s461 = ssub.s32 %s28, 1
        // Predicated region
        $region13: #{bertphone_forward.1} parent=11 // pred_check
          %p462 = pneg %p75
        $region14: #{bertphone_forward.1} parent=11 // pred_check_branch
          %464 = sbr.rel (%p462) target = $region16
        $region15: #{bertphone_forward.1} parent=11 // pred_region
          %s466 = ssub.s32 6144, 6144
          %467 = vsyncadd [#allocation3], %s466
          %s468 = sshll.u32 [#allocation2], 4
          %s469 = int_to_ptr.vmem [resolvable:$true] %s468
          %474 = dma.hbm_to_vmem [thread:$0]  %s1, 6144, %s469, [#allocation3], 192, 192, 12
        $region16: #{bertphone_forward.1} parent=11 // pred_fallthru
          _
        // Predicated region
        $region17: #{bertphone_forward.1} parent=11 // pred_check
          %p475 = pneg %p96
        $region18: #{bertphone_forward.1} parent=11 // pred_check_branch
          %477 = sbr.rel (%p475) target = $region20
        $region19: #{bertphone_forward.1} parent=11 // pred_region
          _
        $region20: #{bertphone_forward.1} parent=11 // pred_fallthru
          _
        // Predicated region
        $region21: #{bertphone_forward.1} parent=11 // pred_check
          %p478 = pneg %p117
        $region22: #{bertphone_forward.1} parent=11 // pred_check_branch
          %480 = sbr.rel (%p478) target = $region24
        $region23: #{bertphone_forward.1} parent=11 // pred_region
          _
        $region24: #{bertphone_forward.1} parent=11 // pred_fallthru
          _
        // Predicated region
        $region25: #{bertphone_forward.1} parent=11 // pred_check
          %p481 = pneg %p138
        $region26: #{bertphone_forward.1} parent=11 // pred_check_branch
          %483 = sbr.rel (%p481) target = $region28
        $region27: #{bertphone_forward.1} parent=11 // pred_region
          _
        $region28: #{bertphone_forward.1} parent=11 // pred_fallthru
          _
        // Predicated region
        $region29: #{bertphone_forward.1} parent=11 // pred_check
          %p484 = pneg %p159
        $region30: #{bertphone_forward.1} parent=11 // pred_check_branch
          %486 = sbr.rel (%p484) target = $region32
        $region31: #{bertphone_forward.1} parent=11 // pred_region
          _
        $region32: #{bertphone_forward.1} parent=11 // pred_fallthru
          _
        // Predicated region
        $region33: #{bertphone_forward.1} parent=11 // pred_check
          %p487 = pneg %p180
        $region34: #{bertphone_forward.1} parent=11 // pred_check_branch
          %489 = sbr.rel (%p487) target = $region36
        $region35: #{bertphone_forward.1} parent=11 // pred_region
          _
        $region36: #{bertphone_forward.1} parent=11 // pred_fallthru
          _
        // Predicated region
        $region37: #{bertphone_forward.1} parent=11 // pred_check
          %p490 = pneg %p201
        $region38: #{bertphone_forward.1} parent=11 // pred_check_branch
          %492 = sbr.rel (%p490) target = $region40
        $region39: #{bertphone_forward.1} parent=11 // pred_region
          %s494 = ssub.s32 4096, 4096
          %495 = vsyncadd [#allocation5], %s494
          %s496 = sshll.u32 [#allocation4], 4
          %s497 = int_to_ptr.vmem [resolvable:$true] %s496
          %502 = dma.hbm_to_vmem [thread:$0]  %s7, 4096, %s497, [#allocation5], 128, 128, 8
        $region40: #{bertphone_forward.1} parent=11 // pred_fallthru
          _
        // Predicated region
        $region41: #{bertphone_forward.1} parent=11 // pred_check
          %p503 = pneg %p222
        $region42: #{bertphone_forward.1} parent=11 // pred_check_branch
          %505 = sbr.rel (%p503) target = $region44
        $region43: #{bertphone_forward.1} parent=11 // pred_region
          _
        $region44: #{bertphone_forward.1} parent=11 // pred_fallthru
          _
        // Predicated region
        $region45: #{bertphone_forward.1} parent=11 // pred_check
          %p506 = pneg %p243
        $region46: #{bertphone_forward.1} parent=11 // pred_check_branch
          %508 = sbr.rel (%p506) target = $region48
        $region47: #{bertphone_forward.1} parent=11 // pred_region
          %s510 = ssub.s32 4096, 4096
          %511 = vsyncadd [#allocation5], %s510
          %s512 = sshll.u32 [#allocation6], 4
          %s513 = int_to_ptr.vmem [resolvable:$true] %s512
          %518 = dma.hbm_to_vmem [thread:$0]  %s9, 4096, %s513, [#allocation5], 64, 64, 4
        $region48: #{bertphone_forward.1} parent=11 // pred_fallthru
          _
        // Predicated region
        $region49: #{bertphone_forward.1} parent=11 // pred_check
          %p519 = pneg %p264
        $region50: #{bertphone_forward.1} parent=11 // pred_check_branch
          %521 = sbr.rel (%p519) target = $region52
        $region51: #{bertphone_forward.1} parent=11 // pred_region
          _
        $region52: #{bertphone_forward.1} parent=11 // pred_fallthru
          _
        // Predicated region
        $region53: #{bertphone_forward.1} parent=11 // pred_check
          %p522 = pneg %p285
        $region54: #{bertphone_forward.1} parent=11 // pred_check_branch
          %524 = sbr.rel (%p522) target = $region56
        $region55: #{bertphone_forward.1} parent=11 // pred_region
          _
        $region56: #{bertphone_forward.1} parent=11 // pred_fallthru
          _
        // Predicated region
        $region57: #{bertphone_forward.1} parent=11 // pred_check
          %p525 = pneg %p306
        $region58: #{bertphone_forward.1} parent=11 // pred_check_branch
          %527 = sbr.rel (%p525) target = $region60
        $region59: #{bertphone_forward.1} parent=11 // pred_region
          _
        $region60: #{bertphone_forward.1} parent=11 // pred_fallthru
          _
        // Predicated region
        $region61: #{bertphone_forward.1} parent=11 // pred_check
          %p528 = pneg %p327
        $region62: #{bertphone_forward.1} parent=11 // pred_check_branch
          %530 = sbr.rel (%p528) target = $region64
        $region63: #{bertphone_forward.1} parent=11 // pred_region
          _
        $region64: #{bertphone_forward.1} parent=11 // pred_fallthru
          _
        // Predicated region
        $region65: #{bertphone_forward.1} parent=11 // pred_check
          %p531 = pneg %p348
        $region66: #{bertphone_forward.1} parent=11 // pred_check_branch
          %533 = sbr.rel (%p531) target = $region68
        $region67: #{bertphone_forward.1} parent=11 // pred_region
          _
        $region68: #{bertphone_forward.1} parent=11 // pred_fallthru
          _
        // Predicated region
        $region69: #{bertphone_forward.1} parent=11 // pred_check
          %p534 = pneg %p369
        $region70: #{bertphone_forward.1} parent=11 // pred_check_branch
          %536 = sbr.rel (%p534) target = $region72
        $region71: #{bertphone_forward.1} parent=11 // pred_region
          %s538 = ssub.s32 2048, 2048
          %539 = vsyncadd [#allocation8], %s538
          %s540 = sshll.u32 [#allocation7], 4
          %s541 = int_to_ptr.vmem [resolvable:$true] %s540
          %546 = dma.hbm_to_vmem [thread:$0]  %s15, 2048, %s541, [#allocation8], 128, 128, 8
        $region72: #{bertphone_forward.1} parent=11 // pred_fallthru
          _
      $region12: #{bertphone_forward.1} parent=5 // pred_fallthru
        _
      %p547 = scmp.lt.s32.totalorder %s28, 2
      // Predicated region
      $region73: #{bertphone_forward.1} parent=5 // pred_check
        %p548 = pneg %p547
      $region74: #{bertphone_forward.1} parent=5 // pred_check_branch
        %550 = sbr.rel (%p548) target = $region76
      $region75: #{bertphone_forward.1} parent=5 // pred_region
        // Predicated region
        $region77: #{bertphone_forward.1} parent=75 // pred_check
          %p551 = pneg %p48
        $region78: #{bertphone_forward.1} parent=75 // pred_check_branch
          %553 = sbr.rel (%p551) target = $region80
        $region79: #{bertphone_forward.1} parent=75 // pred_region
          %p554 = scmp.lt.s32.totalorder %s28, 1
          %s555 = scalar_select %p554, %s28, 1
          %s556 = smul.addr %s555, 8
          %s557 = scalar_lea.vmem %s0, %s556
        $region80: #{bertphone_forward.1} parent=75 // pred_fallthru
          _
      $region76: #{bertphone_forward.1} parent=5 // pred_fallthru
        _
      %p558 = scmp.le.s32.totalorder 1, %s28
      %p559 = scmp.lt.s32.totalorder %s28, 3
      %p560 = pnand %p558, %p559
      %p561 = pneg %p560
      // Predicated region
      $region81: #{bertphone_forward.1} parent=5 // pred_check
        _
      $region82: #{bertphone_forward.1} parent=5 // pred_check_branch
        %563 = sbr.rel (%p560) target = $region84
      $region83: #{bertphone_forward.1} parent=5 // pred_region
        %s564 = ssub.s32 %s28, 1
        // Predicated region
        $region85: #{bertphone_forward.1} parent=83 // pred_check
          %p565 = pneg %p75
        $region86: #{bertphone_forward.1} parent=83 // pred_check_branch
          %567 = sbr.rel (%p565) target = $region88
        $region87: #{bertphone_forward.1} parent=83 // pred_region
          %568 = dma.done [#allocation3], 6144
        $region88: #{bertphone_forward.1} parent=83 // pred_fallthru
          _
        // Predicated region
        $region89: #{bertphone_forward.1} parent=83 // pred_check
          %p569 = pneg %p201
        $region90: #{bertphone_forward.1} parent=83 // pred_check_branch
          %571 = sbr.rel (%p569) target = $region92
        $region91: #{bertphone_forward.1} parent=83 // pred_region
          %572 = dma.done [#allocation5], 4096
        $region92: #{bertphone_forward.1} parent=83 // pred_fallthru
          _
        // Predicated region
        $region93: #{bertphone_forward.1} parent=83 // pred_check
          %p573 = pneg %p243
        $region94: #{bertphone_forward.1} parent=83 // pred_check_branch
          %575 = sbr.rel (%p573) target = $region96
        $region95: #{bertphone_forward.1} parent=83 // pred_region
          %576 = dma.done [#allocation5], 4096
        $region96: #{bertphone_forward.1} parent=83 // pred_fallthru
          _
        // Predicated region
        $region97: #{bertphone_forward.1} parent=83 // pred_check
          %p577 = pneg %p369
        $region98: #{bertphone_forward.1} parent=83 // pred_check_branch
          %579 = sbr.rel (%p577) target = $region100
        $region99: #{bertphone_forward.1} parent=83 // pred_region
          %580 = dma.done [#allocation8], 2048
        $region100: #{bertphone_forward.1} parent=83 // pred_fallthru
          _
        %p581 = scmp.lt.s32.totalorder %s33, 1
        %s582 = scalar_select %p581, %s33, 1
        %s583 = smul.addr %s582, 8
        %s584 = scalar_lea.vmem %s0, %s583
        %p585 = pneg %p54
        %p586 = pneg %p51
        %p587 = pneg %p75
        %p588 = pneg %p72
        %p589 = pneg %p96
        %p590 = pneg %p93
        %p591 = pneg %p117
        %p592 = pneg %p114
        %p593 = pneg %p138
        %p594 = pneg %p135
        %p595 = pneg %p159
        %p596 = pneg %p156
        %p597 = pneg %p180
        %p598 = pneg %p177
        %p599 = pneg %p201
        %p600 = pneg %p198
        %p601 = pneg %p222
        %p602 = pneg %p219
        %p603 = pneg %p243
        %p604 = pneg %p240
        %p605 = pneg %p264
        %p606 = pneg %p261
        %p607 = pneg %p285
        %p608 = pneg %p282
        %p609 = pneg %p306
        %p610 = pneg %p303
        %p611 = pneg %p327
        %p612 = pneg %p324
        %p613 = pneg %p348
        %p614 = pneg %p345
        %p615 = pneg %p369
        %p616 = pneg %p366
        %p617 = pneg %p395
        %p618 = pneg %p392
        %p619 = scmp.lt.s32.totalorder %s33, 1
        %s620 = scalar_select %p619, %s33, 1
        %s621 = smul.addr %s620, 8
        %s622 = scalar_lea.vmem %s16, %s621
        %p623 = pneg %p421
        %p624 = pneg %p418
        %p625 = scmp.lt.s32.totalorder %s33, 1
        %s626 = scalar_select %p625, %s33, 1
        %s627 = smul.addr %s626, 8
        %s628 = scalar_lea.vmem %s17, %s627
        %p629 = pneg %p447
        %p630 = pneg %p444
        %p631 = scmp.lt.s32.totalorder %s33, 1
        %s632 = scalar_select %p631, %s33, 1
        %s633 = smul.addr %s632, 8
        %s634 = scalar_lea.vmem %s18, %s633
        %p635 = scmp.lt.s32.totalorder %s33, 1
        %s636 = scalar_select %p635, %s33, 1
        %s637 = smul.addr %s636, 8
        %s638 = scalar_lea.vmem %s0, %s637
        %p639 = scmp.lt.s32.totalorder %s33, 1
        %s640 = scalar_select %p639, %s33, 1
        %s641 = smul.addr %s640, 8
        %s642 = scalar_lea.vmem %s16, %s641
        %p643 = scmp.lt.s32.totalorder %s33, 1
        %s644 = scalar_select %p643, %s33, 1
        %s645 = smul.addr %s644, 8
        %s646 = scalar_lea.vmem %s17, %s645
        %p647 = scmp.lt.s32.totalorder %s33, 1
        %s648 = scalar_select %p647, %s33, 1
        %s649 = smul.addr %s648, 8
        %s650 = scalar_lea.vmem %s18, %s649
        %v652 = vlaneseq
        %v653 = vand.u32 %v652, 127
        %vm654 = vcmp.lt.s32.totalorder %v653, 39
        %v655 = vsel %vm654, 1, 0
        %v656 = vcvt.s32.f32 %v655
        %v657 = vld [vmem:[%s638] sm:$0xff]
        loop: start=0, step=1, limit=2
        $region101: #{bertphone_forward.1} parent=83 // loop_pre_header
          _
        $region102: #{bertphone_forward.1} parent=83 // loop_header
          %s659 = sphi 0, %s663
          %p660 = scmp.ge.s32.totalorder %s659, 2
          %v664 = vphi %v657, %v3551
        $region103: #{bertphone_forward.1} parent=83 // loop_header_branch
          %662 = sbr.rel (%p660) target = $region107
        $region104: #{bertphone_forward.1} parent=83 // loop_body
          %s665 = scalar_lea.vmem %s5, %s659
          %v666 = vld [vmem:[%s665] sm:$0x1]
          %s667 = scalar_lea.vmem %s6, %s659
          %v668 = vld [vmem:[%s667] sm:$0x1]
          %v669 = vmul.f32 %v664, %v656
          %670 = vadd.xlane.f32.xlu0 %v669
          %v671 = vpop.xlane.xlu0 %670
          %v672 = vmul.f32 %v671, 0.025641026
          %v673 = vsub.f32 %v664, %v672
          %v674 = vmul.f32 %v673, %v656
          %v675 = vmul.f32 %v674, %v674
          %676 = vadd.xlane.f32.xlu0 %v675
          %v677 = vpop.xlane.xlu0 %676
          %v678 = vmul.f32 %v677, 0.025641026
          %v679 = vadd.f32 %v678, 1e-05
          %v680 = vrsqrt.pop %v679
          %v681 = vmul.f32 %v674, %v680
          %v683 = vlaneseq
          %v684 = vshrl.u32 %v683, 7
          %v685 = vsub.s32 0, %v684
          %v686 = vrot.slane %v666, %v685
          %v688 = vmul.f32 %v681, %v686
          %v690 = vlaneseq
          %v691 = vshrl.u32 %v690, 7
          %v692 = vsub.s32 0, %v691
          %v693 = vrot.slane %v668, %v692
          %v695 = vadd.f32 %v688, %v693
          %v696 = vpack.c.bf16 %v695, %v695
          %s697 = smul.u32 %s659, 48
          %s698 = smul.addr %s697, 4
          %s699 = scalar_lea.vmem [#allocation2], %s698
          %v700 = vld [vmem:[%s699] sm:$0xff]
          %v701 = vld [vmem:[%s699 + $0x8] sm:$0xf]
          %v702 = vld [vmem:[%s699 + $0xc] sm:$0xff]
          %v703 = vld [vmem:[%s699 + $0x14] sm:$0xf]
          %v704 = vld [vmem:[%s699 + $0x18] sm:$0xff]
          %v705 = vld [vmem:[%s699 + $0x20] sm:$0xf]
          %v706 = vld [vmem:[%s699 + $0x24] sm:$0xff]
          %v707 = vld [vmem:[%s699 + $0x2c] sm:$0xf]
          %v708 = vld [vmem:[%s699 + $0x30] sm:$0xff]
          %v709 = vld [vmem:[%s699 + $0x38] sm:$0xf]
          %v710 = vld [vmem:[%s699 + $0x3c] sm:$0xff]
          %v711 = vld [vmem:[%s699 + $0x44] sm:$0xf]
          %v712 = vld [vmem:[%s699 + $0x48] sm:$0xff]
          %v713 = vld [vmem:[%s699 + $0x50] sm:$0xf]
          %v714 = vld [vmem:[%s699 + $0x54] sm:$0xff]
          %v715 = vld [vmem:[%s699 + $0x5c] sm:$0xf]
          %v716 = vld [vmem:[%s699 + $0x60] sm:$0xff]
          %v717 = vld [vmem:[%s699 + $0x68] sm:$0xf]
          %v718 = vld [vmem:[%s699 + $0x6c] sm:$0xff]
          %v719 = vld [vmem:[%s699 + $0x74] sm:$0xf]
          %v720 = vld [vmem:[%s699 + $0x78] sm:$0xff]
          %v721 = vld [vmem:[%s699 + $0x80] sm:$0xf]
          %v722 = vld [vmem:[%s699 + $0x84] sm:$0xff]
          %v723 = vld [vmem:[%s699 + $0x8c] sm:$0xf]
          %v724 = vld [vmem:[%s699 + $0x90] sm:$0xff]
          %v725 = vld [vmem:[%s699 + $0x98] sm:$0xf]
          %v726 = vld [vmem:[%s699 + $0x9c] sm:$0xff]
          %v727 = vld [vmem:[%s699 + $0xa4] sm:$0xf]
          %v728 = vld [vmem:[%s699 + $0xa8] sm:$0xff]
          %v729 = vld [vmem:[%s699 + $0xb0] sm:$0xf]
          %v730 = vld [vmem:[%s699 + $0xb4] sm:$0xff]
          %v731 = vld [vmem:[%s699 + $0xbc] sm:$0xf]
          %s732 = smul.u32 %s659, 3
          %s733 = scalar_lea.vmem %s2, %s732
          %v734 = vld [vmem:[%s733] sm:$0x7]
          %v736 = vlaneseq
          %v737 = vshrl.u32 %v736, 7
          %v738 = vsub.s32 0, %v737
          %v739 = vrot.slane %v734, %v738
          %v740 = vlaneseq
          %v741 = vshrl.u32 %v740, 7
          %v742 = vsub.s32 1, %v741
          %v743 = vrot.slane %v734, %v742
          %v744 = vlaneseq
          %v745 = vshrl.u32 %v744, 7
          %v746 = vsub.s32 2, %v745
          %v747 = vrot.slane %v734, %v746
          %v783 = vunpack.c.l.b16 %v700
          %v784 = vunpack.c.h.b16 %v700
          %v785 = vunpack.c.l.b16 %v701
          %v786 = vunpack.c.l.b16 %v702
          %v787 = vunpack.c.h.b16 %v702
          %v788 = vunpack.c.l.b16 %v703
          %v789 = vunpack.c.l.b16 %v704
          %v790 = vunpack.c.h.b16 %v704
          %v791 = vunpack.c.l.b16 %v705
          %v792 = vunpack.c.l.b16 %v706
          %v793 = vunpack.c.h.b16 %v706
          %v794 = vunpack.c.l.b16 %v707
          %v795 = vunpack.c.l.b16 %v708
          %v796 = vunpack.c.h.b16 %v708
          %v797 = vunpack.c.l.b16 %v709
          %v798 = vunpack.c.l.b16 %v710
          %v799 = vunpack.c.h.b16 %v710
          %v800 = vunpack.c.l.b16 %v711
          %v801 = vunpack.c.l.b16 %v712
          %v802 = vunpack.c.h.b16 %v712
          %v803 = vunpack.c.l.b16 %v713
          %v804 = vunpack.c.l.b16 %v714
          %v805 = vunpack.c.h.b16 %v714
          %v806 = vunpack.c.l.b16 %v715
          %v807 = vunpack.c.l.b16 %v716
          %v808 = vunpack.c.h.b16 %v716
          %v809 = vunpack.c.l.b16 %v717
          %v810 = vunpack.c.l.b16 %v718
          %v811 = vunpack.c.h.b16 %v718
          %v812 = vunpack.c.l.b16 %v719
          %v813 = vunpack.c.l.b16 %v720
          %v814 = vunpack.c.h.b16 %v720
          %v815 = vunpack.c.l.b16 %v721
          %v816 = vunpack.c.l.b16 %v722
          %v817 = vunpack.c.h.b16 %v722
          %v818 = vunpack.c.l.b16 %v723
          %v819 = vunpack.c.l.b16 %v724
          %v820 = vunpack.c.h.b16 %v724
          %v821 = vunpack.c.l.b16 %v725
          %v822 = vunpack.c.l.b16 %v726
          %v823 = vunpack.c.h.b16 %v726
          %v824 = vunpack.c.l.b16 %v727
          %v825 = vunpack.c.l.b16 %v728
          %v826 = vunpack.c.h.b16 %v728
          %v827 = vunpack.c.l.b16 %v729
          %v828 = vunpack.c.l.b16 %v730
          %v829 = vunpack.c.h.b16 %v730
          %v830 = vunpack.c.l.b16 %v731
          %v831 = vpack.c.b16 %v786, %v783
          %v832 = vpack.c.b16 %v787, %v784
          %v833 = vpack.c.b16 %v788, %v785
          %v834 = vpack.c.b16 %v792, %v789
          %v835 = vpack.c.b16 %v793, %v790
          %v836 = vpack.c.b16 %v794, %v791
          %v837 = vpack.c.b16 %v798, %v795
          %v838 = vpack.c.b16 %v799, %v796
          %v839 = vpack.c.b16 %v800, %v797
          %v840 = vpack.c.b16 %v804, %v801
          %v841 = vpack.c.b16 %v805, %v802
          %v842 = vpack.c.b16 %v806, %v803
          %v843 = vpack.c.b16 %v810, %v807
          %v844 = vpack.c.b16 %v811, %v808
          %v845 = vpack.c.b16 %v812, %v809
          %v846 = vpack.c.b16 %v816, %v813
          %v847 = vpack.c.b16 %v817, %v814
          %v848 = vpack.c.b16 %v818, %v815
          %v849 = vpack.c.b16 %v822, %v819
          %v850 = vpack.c.b16 %v823, %v820
          %v851 = vpack.c.b16 %v824, %v821
          %v852 = vpack.c.b16 %v828, %v825
          %v853 = vpack.c.b16 %v829, %v826
          %v854 = vpack.c.b16 %v830, %v827
          %879 = vmatprep.subr.bf16.mxu0 %v853
          %880 = vmatpush1.bf16.msra.mxu0 %v852
          %881 = vmatprep.subr.bf16.mxu0 %v850
          %882 = vmatpush1.bf16.msra.mxu0 %v849
          %883 = vmatprep.subr.bf16.mxu0 %v847
          %884 = vmatpush1.bf16.msra.mxu0 %v846
          %885 = vmatprep.subr.bf16.mxu0 %v844
          %886 = vmatpush1.bf16.msra.mxu0 %v843
          %887 = vmatprep.subr.bf16.mxu0 %v841
          %888 = vmatpush1.bf16.msra.mxu0 %v840
          %889 = vmatprep.subr.bf16.mxu0 %v838
          %890 = vmatpush1.bf16.msra.mxu0 %v837
          %891 = vmatprep.subr.bf16.mxu0 %v835
          %892 = vmatpush1.bf16.msra.mxu0 %v834
          %893 = vmatprep.subr.bf16.mxu0 %v832
          %894 = vmatpush1.bf16.msra.mxu0 %v831
          %895 = vmatprep.subr.bf16.mxu0 0
          %896 = vmatpush2.bf16.msra.mxu0 0
          %897 = vmatprep.subr.bf16.mxu0 0
          %898 = vmatpush2.bf16.msra.mxu0 0
          %899 = vmatprep.subr.bf16.mxu0 0
          %900 = vmatpush2.bf16.msra.mxu0 0
          %901 = vmatprep.subr.bf16.mxu0 0
          %902 = vmatpush2.bf16.msra.mxu0 0
          %903 = vmatprep.subr.bf16.mxu0 0
          %904 = vmatpush2.bf16.msra.mxu0 0
          %905 = vmatprep.subr.bf16.mxu0 0
          %906 = vmatpush2.bf16.msra.mxu0 0
          %907 = vmatprep.subr.bf16.mxu0 0
          %908 = vmatpush2.bf16.msra.mxu0 0
          %909 = vmatprep.subr.bf16.mxu0 0
          %910 = vmatpush2.bf16.msra.mxu0 0
          %911 = vmatprep.mubr.bf16.mxu0 0
          %912 = vmatmul.mubr.bf16.gmra.mxu0 %v696
          %v913 = vpop.f32.mrf.mxu0
          %v914 = vadd.f32 %v739, %v913
          %v915 = vpop.f32.mrf.mxu0
          %v916 = vadd.f32 %v743, %v915
          %v917 = vpop.f32.mrf.mxu0
          %v918 = vpop.f32.mrf.mxu0
          %919 = vdwg.mxu0
          %920 = vmatprep.subr.bf16.mxu0 0
          %921 = vmatpush1.bf16.msra.mxu0 %v854
          %922 = vmatprep.subr.bf16.mxu0 0
          %923 = vmatpush1.bf16.msra.mxu0 %v851
          %924 = vmatprep.subr.bf16.mxu0 0
          %925 = vmatpush1.bf16.msra.mxu0 %v848
          %926 = vmatprep.subr.bf16.mxu0 0
          %927 = vmatpush1.bf16.msra.mxu0 %v845
          %928 = vmatprep.subr.bf16.mxu0 0
          %929 = vmatpush1.bf16.msra.mxu0 %v842
          %930 = vmatprep.subr.bf16.mxu0 0
          %931 = vmatpush1.bf16.msra.mxu0 %v839
          %932 = vmatprep.subr.bf16.mxu0 0
          %933 = vmatpush1.bf16.msra.mxu0 %v836
          %934 = vmatprep.subr.bf16.mxu0 0
          %935 = vmatpush1.bf16.msra.mxu0 %v833
          %936 = vmatprep.subr.bf16.mxu0 0
          %937 = vmatpush2.bf16.msra.mxu0 0
          %938 = vmatprep.subr.bf16.mxu0 0
          %939 = vmatpush2.bf16.msra.mxu0 0
          %940 = vmatprep.subr.bf16.mxu0 0
          %941 = vmatpush2.bf16.msra.mxu0 0
          %942 = vmatprep.subr.bf16.mxu0 0
          %943 = vmatpush2.bf16.msra.mxu0 0
          %944 = vmatprep.subr.bf16.mxu0 0
          %945 = vmatpush2.bf16.msra.mxu0 0
          %946 = vmatprep.subr.bf16.mxu0 0
          %947 = vmatpush2.bf16.msra.mxu0 0
          %948 = vmatprep.subr.bf16.mxu0 0
          %949 = vmatpush2.bf16.msra.mxu0 0
          %950 = vmatprep.subr.bf16.mxu0 0
          %951 = vmatpush2.bf16.msra.mxu0 0
          %952 = vmatprep.mubr.bf16.mxu0 0
          %953 = vmatmul.mubr.bf16.gmra.mxu0 %v696
          %v954 = vpop.f32.mrf.mxu0
          %v955 = vadd.f32 %v747, %v954
          %v956 = vpop.f32.mrf.mxu0
          %v957 = vpop.f32.mrf.mxu0
          %v958 = vpop.f32.mrf.mxu0
          %959 = vdwg.mxu0
          %vm960 = vcmp.ge.s32.totalorder %v653, 0
          %vm961 = vcmp.lt.s32.totalorder %v653, 3
          %vm962 = vmand %vm960, %vm961
          %v963 = vsel %vm962, 1, 0
          %v964 = vcvt.s32.f32 %v963
          %v965 = vmul.f32 %v914, %v964
          %966 = vmatprep.subr.mxu0 0.0
          %967 = vmatpush1.xpose.msra.mxu0 0.0
          %968 = vmatprep.subr.mxu0 0.0
          %969 = vmatpush1.xpose.msra.mxu0 0.0
          %970 = vmatprep.subr.mxu0 0.0
          %971 = vmatpush1.xpose.msra.mxu0 0.0
          %972 = vmatprep.subr.mxu0 0.0
          %973 = vmatpush1.xpose.msra.mxu0 0.0
          %974 = vmatprep.subr.mxu0 0.0
          %975 = vmatpush1.xpose.msra.mxu0 0.0
          %976 = vmatprep.subr.mxu0 0.0
          %977 = vmatpush1.xpose.msra.mxu0 0.0
          %978 = vmatprep.subr.mxu0 0.0
          %979 = vmatpush1.xpose.msra.mxu0 0.0
          %980 = vmatprep.subr.mxu0 0.0
          %981 = vmatpush1.xpose.msra.mxu0 0.0
          %982 = vmatprep.subr.mxu0 0.0
          %983 = vmatpush1.xpose.msra.mxu0 0.0
          %984 = vmatprep.subr.mxu0 0.0
          %985 = vmatpush1.xpose.msra.mxu0 0.0
          %986 = vmatprep.subr.mxu0 0.0
          %987 = vmatpush1.xpose.msra.mxu0 0.0
          %988 = vmatprep.subr.mxu0 0.0
          %989 = vmatpush1.xpose.msra.mxu0 0.0
          %990 = vmatprep.subr.mxu0 0.0
          %991 = vmatpush1.xpose.msra.mxu0 0.0
          %992 = vmatprep.subr.mxu0 0.0
          %993 = vmatpush1.xpose.msra.mxu0 0.0
          %994 = vmatprep.subr.mxu0 0.0
          %995 = vmatpush1.xpose.msra.mxu0 0.0
          %996 = vmatprep.subr.mxu0 0.0
          %997 = vmatpush1.xpose.msra.mxu0 %v916
          %998 = vmatprep.subr.mxu0 0.0
          %999 = vmatpush2.xpose.msra.mxu0 0.0
          %1000 = vmatprep.subr.mxu0 0.0
          %1001 = vmatpush2.xpose.msra.mxu0 0.0
          %1002 = vmatprep.subr.mxu0 0.0
          %1003 = vmatpush2.xpose.msra.mxu0 0.0
          %1004 = vmatprep.subr.mxu0 0.0
          %1005 = vmatpush2.xpose.msra.mxu0 0.0
          %1006 = vmatprep.subr.mxu0 0.0
          %1007 = vmatpush2.xpose.msra.mxu0 0.0
          %1008 = vmatprep.subr.mxu0 0.0
          %1009 = vmatpush2.xpose.msra.mxu0 0.0
          %1010 = vmatprep.subr.mxu0 0.0
          %1011 = vmatpush2.xpose.msra.mxu0 0.0
          %1012 = vmatprep.subr.mxu0 0.0
          %1013 = vmatpush2.xpose.msra.mxu0 0.0
          %1014 = vmatprep.subr.mxu0 0.0
          %1015 = vmatpush2.xpose.msra.mxu0 0.0
          %1016 = vmatprep.subr.mxu0 0.0
          %1017 = vmatpush2.xpose.msra.mxu0 0.0
          %1018 = vmatprep.subr.mxu0 0.0
          %1019 = vmatpush2.xpose.msra.mxu0 0.0
          %1020 = vmatprep.subr.mxu0 0.0
          %1021 = vmatpush2.xpose.msra.mxu0 0.0
          %1022 = vmatprep.subr.mxu0 0.0
          %1023 = vmatpush2.xpose.msra.mxu0 0.0
          %1024 = vmatprep.subr.mxu0 0.0
          %1025 = vmatpush2.xpose.msra.mxu0 0.0
          %1026 = vmatprep.subr.mxu0 0.0
          %1027 = vmatpush2.xpose.msra.mxu0 0.0
          %1028 = vmatprep.subr.mxu0 0.0
          %1029 = vmatpush2.xpose.msra.mxu0 0.0
          %1030 = vmatprep.mubr.f32.mxu0 0.0
          %1031 = vmatmul.mubr.f32.gmra.mxu0 %v965
          %v1032 = vpop.f32.mrf.mxu0
          %v1033 = vadd.f32 0.0, %v1032
          %v1034 = vpop.f32.mrf.mxu0
          %1035 = vdwg.mxu0
          %vm1036 = vcmask 64512
          %v1037 = vsel %vm1036, %v1033, -inf
          %1038 = vmax.xlane.f32.xlu0 %v1037
          %v1039 = vpop.xlane.xlu0 %1038
          %v1040 = vsub.f32 %v1033, %v1039
          %v1041 = vmul.f32 %v1040, 1.442695
          %v1042 = vpow.pop %v1041
          %v1043 = vsel %vm1036, %v1042, 0.0
          %1044 = vadd.xlane.f32.xlu0 %v1043
          %v1045 = vpop.xlane.xlu0 %1044
          %v1046 = vrcp.pop %v1045
          %v1047 = vmul.f32 %v1042, %v1046
          %v1049 = vsel %vm1036, %v1047, 0
          %1051 = vmatprep.subr.mxu0 0.0
          %1052 = vmatpush1.msra.mxu0 0.0
          %1053 = vmatprep.subr.mxu0 0.0
          %1054 = vmatpush1.msra.mxu0 0.0
          %1055 = vmatprep.subr.mxu0 0.0
          %1056 = vmatpush1.msra.mxu0 0.0
          %1057 = vmatprep.subr.mxu0 0.0
          %1058 = vmatpush1.msra.mxu0 0.0
          %1059 = vmatprep.subr.mxu0 0.0
          %1060 = vmatpush1.msra.mxu0 0.0
          %1061 = vmatprep.subr.mxu0 0.0
          %1062 = vmatpush1.msra.mxu0 0.0
          %1063 = vmatprep.subr.mxu0 0.0
          %1064 = vmatpush1.msra.mxu0 0.0
          %1065 = vmatprep.subr.mxu0 0.0
          %1066 = vmatpush1.msra.mxu0 0.0
          %1067 = vmatprep.subr.mxu0 0.0
          %1068 = vmatpush1.msra.mxu0 0.0
          %1069 = vmatprep.subr.mxu0 0.0
          %1070 = vmatpush1.msra.mxu0 0.0
          %1071 = vmatprep.subr.mxu0 0.0
          %1072 = vmatpush1.msra.mxu0 0.0
          %1073 = vmatprep.subr.mxu0 0.0
          %1074 = vmatpush1.msra.mxu0 0.0
          %1075 = vmatprep.subr.mxu0 0.0
          %1076 = vmatpush1.msra.mxu0 0.0
          %1077 = vmatprep.subr.mxu0 0.0
          %1078 = vmatpush1.msra.mxu0 0.0
          %1079 = vmatprep.subr.mxu0 0.0
          %1080 = vmatpush1.msra.mxu0 0.0
          %1081 = vmatprep.subr.mxu0 0.0
          %1082 = vmatpush1.msra.mxu0 %v955
          %1083 = vmatprep.subr.mxu0 0.0
          %1084 = vmatpush2.msra.mxu0 0.0
          %1085 = vmatprep.subr.mxu0 0.0
          %1086 = vmatpush2.msra.mxu0 0.0
          %1087 = vmatprep.subr.mxu0 0.0
          %1088 = vmatpush2.msra.mxu0 0.0
          %1089 = vmatprep.subr.mxu0 0.0
          %1090 = vmatpush2.msra.mxu0 0.0
          %1091 = vmatprep.subr.mxu0 0.0
          %1092 = vmatpush2.msra.mxu0 0.0
          %1093 = vmatprep.subr.mxu0 0.0
          %1094 = vmatpush2.msra.mxu0 0.0
          %1095 = vmatprep.subr.mxu0 0.0
          %1096 = vmatpush2.msra.mxu0 0.0
          %1097 = vmatprep.subr.mxu0 0.0
          %1098 = vmatpush2.msra.mxu0 0.0
          %1099 = vmatprep.subr.mxu0 0.0
          %1100 = vmatpush2.msra.mxu0 0.0
          %1101 = vmatprep.subr.mxu0 0.0
          %1102 = vmatpush2.msra.mxu0 0.0
          %1103 = vmatprep.subr.mxu0 0.0
          %1104 = vmatpush2.msra.mxu0 0.0
          %1105 = vmatprep.subr.mxu0 0.0
          %1106 = vmatpush2.msra.mxu0 0.0
          %1107 = vmatprep.subr.mxu0 0.0
          %1108 = vmatpush2.msra.mxu0 0.0
          %1109 = vmatprep.subr.mxu0 0.0
          %1110 = vmatpush2.msra.mxu0 0.0
          %1111 = vmatprep.subr.mxu0 0.0
          %1112 = vmatpush2.msra.mxu0 0.0
          %1113 = vmatprep.subr.mxu0 0.0
          %1114 = vmatpush2.msra.mxu0 0.0
          %1115 = vmatprep.mubr.f32.mxu0 0.0
          %1116 = vmatmul.mubr.f32.gmra.mxu0 %v1049
          %v1117 = vpop.f32.mrf.mxu0
          %v1118 = vadd.f32 0.0, %v1117
          %v1119 = vpop.f32.mrf.mxu0
          %1120 = vdwg.mxu0
          %v1121 = vmul.f32 %v1118, %v964
          %v1122 = vadd.f32 %v1121, 0.0
          %vm1123 = vcmp.ge.s32.totalorder %v653, 3
          %vm1124 = vcmp.lt.s32.totalorder %v653, 6
          %vm1125 = vmand %vm1123, %vm1124
          %v1126 = vsel %vm1125, 1, 0
          %v1127 = vcvt.s32.f32 %v1126
          %v1128 = vmul.f32 %v914, %v1127
          %1129 = vmatprep.subr.mxu0 0.0
          %1130 = vmatpush1.xpose.msra.mxu0 0.0
          %1131 = vmatprep.subr.mxu0 0.0
          %1132 = vmatpush1.xpose.msra.mxu0 0.0
          %1133 = vmatprep.subr.mxu0 0.0
          %1134 = vmatpush1.xpose.msra.mxu0 0.0
          %1135 = vmatprep.subr.mxu0 0.0
          %1136 = vmatpush1.xpose.msra.mxu0 0.0
          %1137 = vmatprep.subr.mxu0 0.0
          %1138 = vmatpush1.xpose.msra.mxu0 0.0
          %1139 = vmatprep.subr.mxu0 0.0
          %1140 = vmatpush1.xpose.msra.mxu0 0.0
          %1141 = vmatprep.subr.mxu0 0.0
          %1142 = vmatpush1.xpose.msra.mxu0 0.0
          %1143 = vmatprep.subr.mxu0 0.0
          %1144 = vmatpush1.xpose.msra.mxu0 0.0
          %1145 = vmatprep.subr.mxu0 0.0
          %1146 = vmatpush1.xpose.msra.mxu0 0.0
          %1147 = vmatprep.subr.mxu0 0.0
          %1148 = vmatpush1.xpose.msra.mxu0 0.0
          %1149 = vmatprep.subr.mxu0 0.0
          %1150 = vmatpush1.xpose.msra.mxu0 0.0
          %1151 = vmatprep.subr.mxu0 0.0
          %1152 = vmatpush1.xpose.msra.mxu0 0.0
          %1153 = vmatprep.subr.mxu0 0.0
          %1154 = vmatpush1.xpose.msra.mxu0 0.0
          %1155 = vmatprep.subr.mxu0 0.0
          %1156 = vmatpush1.xpose.msra.mxu0 0.0
          %1157 = vmatprep.subr.mxu0 0.0
          %1158 = vmatpush1.xpose.msra.mxu0 0.0
          %1159 = vmatprep.subr.mxu0 0.0
          %1160 = vmatpush1.xpose.msra.mxu0 %v916
          %1161 = vmatprep.subr.mxu0 0.0
          %1162 = vmatpush2.xpose.msra.mxu0 0.0
          %1163 = vmatprep.subr.mxu0 0.0
          %1164 = vmatpush2.xpose.msra.mxu0 0.0
          %1165 = vmatprep.subr.mxu0 0.0
          %1166 = vmatpush2.xpose.msra.mxu0 0.0
          %1167 = vmatprep.subr.mxu0 0.0
          %1168 = vmatpush2.xpose.msra.mxu0 0.0
          %1169 = vmatprep.subr.mxu0 0.0
          %1170 = vmatpush2.xpose.msra.mxu0 0.0
          %1171 = vmatprep.subr.mxu0 0.0
          %1172 = vmatpush2.xpose.msra.mxu0 0.0
          %1173 = vmatprep.subr.mxu0 0.0
          %1174 = vmatpush2.xpose.msra.mxu0 0.0
          %1175 = vmatprep.subr.mxu0 0.0
          %1176 = vmatpush2.xpose.msra.mxu0 0.0
          %1177 = vmatprep.subr.mxu0 0.0
          %1178 = vmatpush2.xpose.msra.mxu0 0.0
          %1179 = vmatprep.subr.mxu0 0.0
          %1180 = vmatpush2.xpose.msra.mxu0 0.0
          %1181 = vmatprep.subr.mxu0 0.0
          %1182 = vmatpush2.xpose.msra.mxu0 0.0
          %1183 = vmatprep.subr.mxu0 0.0
          %1184 = vmatpush2.xpose.msra.mxu0 0.0
          %1185 = vmatprep.subr.mxu0 0.0
          %1186 = vmatpush2.xpose.msra.mxu0 0.0
          %1187 = vmatprep.subr.mxu0 0.0
          %1188 = vmatpush2.xpose.msra.mxu0 0.0
          %1189 = vmatprep.subr.mxu0 0.0
          %1190 = vmatpush2.xpose.msra.mxu0 0.0
          %1191 = vmatprep.subr.mxu0 0.0
          %1192 = vmatpush2.xpose.msra.mxu0 0.0
          %1193 = vmatprep.mubr.f32.mxu0 0.0
          %1194 = vmatmul.mubr.f32.gmra.mxu0 %v1128
          %v1195 = vpop.f32.mrf.mxu0
          %v1196 = vadd.f32 0.0, %v1195
          %v1197 = vpop.f32.mrf.mxu0
          %1198 = vdwg.mxu0
          %v1199 = vsel %vm1036, %v1196, -inf
          %1200 = vmax.xlane.f32.xlu0 %v1199
          %v1201 = vpop.xlane.xlu0 %1200
          %v1202 = vsub.f32 %v1196, %v1201
          %v1203 = vmul.f32 %v1202, 1.442695
          %v1204 = vpow.pop %v1203
          %v1205 = vsel %vm1036, %v1204, 0.0
          %1206 = vadd.xlane.f32.xlu0 %v1205
          %v1207 = vpop.xlane.xlu0 %1206
          %v1208 = vrcp.pop %v1207
          %v1209 = vmul.f32 %v1204, %v1208
          %v1211 = vsel %vm1036, %v1209, 0
          %1213 = vmatprep.subr.mxu0 0.0
          %1214 = vmatpush1.msra.mxu0 0.0
          %1215 = vmatprep.subr.mxu0 0.0
          %1216 = vmatpush1.msra.mxu0 0.0
          %1217 = vmatprep.subr.mxu0 0.0
          %1218 = vmatpush1.msra.mxu0 0.0
          %1219 = vmatprep.subr.mxu0 0.0
          %1220 = vmatpush1.msra.mxu0 0.0
          %1221 = vmatprep.subr.mxu0 0.0
          %1222 = vmatpush1.msra.mxu0 0.0
          %1223 = vmatprep.subr.mxu0 0.0
          %1224 = vmatpush1.msra.mxu0 0.0
          %1225 = vmatprep.subr.mxu0 0.0
          %1226 = vmatpush1.msra.mxu0 0.0
          %1227 = vmatprep.subr.mxu0 0.0
          %1228 = vmatpush1.msra.mxu0 0.0
          %1229 = vmatprep.subr.mxu0 0.0
          %1230 = vmatpush1.msra.mxu0 0.0
          %1231 = vmatprep.subr.mxu0 0.0
          %1232 = vmatpush1.msra.mxu0 0.0
          %1233 = vmatprep.subr.mxu0 0.0
          %1234 = vmatpush1.msra.mxu0 0.0
          %1235 = vmatprep.subr.mxu0 0.0
          %1236 = vmatpush1.msra.mxu0 0.0
          %1237 = vmatprep.subr.mxu0 0.0
          %1238 = vmatpush1.msra.mxu0 0.0
          %1239 = vmatprep.subr.mxu0 0.0
          %1240 = vmatpush1.msra.mxu0 0.0
          %1241 = vmatprep.subr.mxu0 0.0
          %1242 = vmatpush1.msra.mxu0 0.0
          %1243 = vmatprep.subr.mxu0 0.0
          %1244 = vmatpush1.msra.mxu0 %v955
          %1245 = vmatprep.subr.mxu0 0.0
          %1246 = vmatpush2.msra.mxu0 0.0
          %1247 = vmatprep.subr.mxu0 0.0
          %1248 = vmatpush2.msra.mxu0 0.0
          %1249 = vmatprep.subr.mxu0 0.0
          %1250 = vmatpush2.msra.mxu0 0.0
          %1251 = vmatprep.subr.mxu0 0.0
          %1252 = vmatpush2.msra.mxu0 0.0
          %1253 = vmatprep.subr.mxu0 0.0
          %1254 = vmatpush2.msra.mxu0 0.0
          %1255 = vmatprep.subr.mxu0 0.0
          %1256 = vmatpush2.msra.mxu0 0.0
          %1257 = vmatprep.subr.mxu0 0.0
          %1258 = vmatpush2.msra.mxu0 0.0
          %1259 = vmatprep.subr.mxu0 0.0
          %1260 = vmatpush2.msra.mxu0 0.0
          %1261 = vmatprep.subr.mxu0 0.0
          %1262 = vmatpush2.msra.mxu0 0.0
          %1263 = vmatprep.subr.mxu0 0.0
          %1264 = vmatpush2.msra.mxu0 0.0
          %1265 = vmatprep.subr.mxu0 0.0
          %1266 = vmatpush2.msra.mxu0 0.0
          %1267 = vmatprep.subr.mxu0 0.0
          %1268 = vmatpush2.msra.mxu0 0.0
          %1269 = vmatprep.subr.mxu0 0.0
          %1270 = vmatpush2.msra.mxu0 0.0
          %1271 = vmatprep.subr.mxu0 0.0
          %1272 = vmatpush2.msra.mxu0 0.0
          %1273 = vmatprep.subr.mxu0 0.0
          %1274 = vmatpush2.msra.mxu0 0.0
          %1275 = vmatprep.subr.mxu0 0.0
          %1276 = vmatpush2.msra.mxu0 0.0
          %1277 = vmatprep.mubr.f32.mxu0 0.0
          %1278 = vmatmul.mubr.f32.gmra.mxu0 %v1211
          %v1279 = vpop.f32.mrf.mxu0
          %v1280 = vadd.f32 0.0, %v1279
          %v1281 = vpop.f32.mrf.mxu0
          %1282 = vdwg.mxu0
          %v1283 = vmul.f32 %v1280, %v1127
          %v1284 = vadd.f32 %v1122, %v1283
          %vm1285 = vcmp.ge.s32.totalorder %v653, 6
          %vm1286 = vcmp.lt.s32.totalorder %v653, 9
          %vm1287 = vmand %vm1285, %vm1286
          %v1288 = vsel %vm1287, 1, 0
          %v1289 = vcvt.s32.f32 %v1288
          %v1290 = vmul.f32 %v914, %v1289
          %1291 = vmatprep.subr.mxu0 0.0
          %1292 = vmatpush1.xpose.msra.mxu0 0.0
          %1293 = vmatprep.subr.mxu0 0.0
          %1294 = vmatpush1.xpose.msra.mxu0 0.0
          %1295 = vmatprep.subr.mxu0 0.0
          %1296 = vmatpush1.xpose.msra.mxu0 0.0
          %1297 = vmatprep.subr.mxu0 0.0
          %1298 = vmatpush1.xpose.msra.mxu0 0.0
          %1299 = vmatprep.subr.mxu0 0.0
          %1300 = vmatpush1.xpose.msra.mxu0 0.0
          %1301 = vmatprep.subr.mxu0 0.0
          %1302 = vmatpush1.xpose.msra.mxu0 0.0
          %1303 = vmatprep.subr.mxu0 0.0
          %1304 = vmatpush1.xpose.msra.mxu0 0.0
          %1305 = vmatprep.subr.mxu0 0.0
          %1306 = vmatpush1.xpose.msra.mxu0 0.0
          %1307 = vmatprep.subr.mxu0 0.0
          %1308 = vmatpush1.xpose.msra.mxu0 0.0
          %1309 = vmatprep.subr.mxu0 0.0
          %1310 = vmatpush1.xpose.msra.mxu0 0.0
          %1311 = vmatprep.subr.mxu0 0.0
          %1312 = vmatpush1.xpose.msra.mxu0 0.0
          %1313 = vmatprep.subr.mxu0 0.0
          %1314 = vmatpush1.xpose.msra.mxu0 0.0
          %1315 = vmatprep.subr.mxu0 0.0
          %1316 = vmatpush1.xpose.msra.mxu0 0.0
          %1317 = vmatprep.subr.mxu0 0.0
          %1318 = vmatpush1.xpose.msra.mxu0 0.0
          %1319 = vmatprep.subr.mxu0 0.0
          %1320 = vmatpush1.xpose.msra.mxu0 0.0
          %1321 = vmatprep.subr.mxu0 0.0
          %1322 = vmatpush1.xpose.msra.mxu0 %v916
          %1323 = vmatprep.subr.mxu0 0.0
          %1324 = vmatpush2.xpose.msra.mxu0 0.0
          %1325 = vmatprep.subr.mxu0 0.0
          %1326 = vmatpush2.xpose.msra.mxu0 0.0
          %1327 = vmatprep.subr.mxu0 0.0
          %1328 = vmatpush2.xpose.msra.mxu0 0.0
          %1329 = vmatprep.subr.mxu0 0.0
          %1330 = vmatpush2.xpose.msra.mxu0 0.0
          %1331 = vmatprep.subr.mxu0 0.0
          %1332 = vmatpush2.xpose.msra.mxu0 0.0
          %1333 = vmatprep.subr.mxu0 0.0
          %1334 = vmatpush2.xpose.msra.mxu0 0.0
          %1335 = vmatprep.subr.mxu0 0.0
          %1336 = vmatpush2.xpose.msra.mxu0 0.0
          %1337 = vmatprep.subr.mxu0 0.0
          %1338 = vmatpush2.xpose.msra.mxu0 0.0
          %1339 = vmatprep.subr.mxu0 0.0
          %1340 = vmatpush2.xpose.msra.mxu0 0.0
          %1341 = vmatprep.subr.mxu0 0.0
          %1342 = vmatpush2.xpose.msra.mxu0 0.0
          %1343 = vmatprep.subr.mxu0 0.0
          %1344 = vmatpush2.xpose.msra.mxu0 0.0
          %1345 = vmatprep.subr.mxu0 0.0
          %1346 = vmatpush2.xpose.msra.mxu0 0.0
          %1347 = vmatprep.subr.mxu0 0.0
          %1348 = vmatpush2.xpose.msra.mxu0 0.0
          %1349 = vmatprep.subr.mxu0 0.0
          %1350 = vmatpush2.xpose.msra.mxu0 0.0
          %1351 = vmatprep.subr.mxu0 0.0
          %1352 = vmatpush2.xpose.msra.mxu0 0.0
          %1353 = vmatprep.subr.mxu0 0.0
          %1354 = vmatpush2.xpose.msra.mxu0 0.0
          %1355 = vmatprep.mubr.f32.mxu0 0.0
          %1356 = vmatmul.mubr.f32.gmra.mxu0 %v1290
          %v1357 = vpop.f32.mrf.mxu0
          %v1358 = vadd.f32 0.0, %v1357
          %v1359 = vpop.f32.mrf.mxu0
          %1360 = vdwg.mxu0
          %v1361 = vsel %vm1036, %v1358, -inf
          %1362 = vmax.xlane.f32.xlu0 %v1361
          %v1363 = vpop.xlane.xlu0 %1362
          %v1364 = vsub.f32 %v1358, %v1363
          %v1365 = vmul.f32 %v1364, 1.442695
          %v1366 = vpow.pop %v1365
          %v1367 = vsel %vm1036, %v1366, 0.0
          %1368 = vadd.xlane.f32.xlu0 %v1367
          %v1369 = vpop.xlane.xlu0 %1368
          %v1370 = vrcp.pop %v1369
          %v1371 = vmul.f32 %v1366, %v1370
          %v1373 = vsel %vm1036, %v1371, 0
          %1375 = vmatprep.subr.mxu0 0.0
          %1376 = vmatpush1.msra.mxu0 0.0
          %1377 = vmatprep.subr.mxu0 0.0
          %1378 = vmatpush1.msra.mxu0 0.0
          %1379 = vmatprep.subr.mxu0 0.0
          %1380 = vmatpush1.msra.mxu0 0.0
          %1381 = vmatprep.subr.mxu0 0.0
          %1382 = vmatpush1.msra.mxu0 0.0
          %1383 = vmatprep.subr.mxu0 0.0
          %1384 = vmatpush1.msra.mxu0 0.0
          %1385 = vmatprep.subr.mxu0 0.0
          %1386 = vmatpush1.msra.mxu0 0.0
          %1387 = vmatprep.subr.mxu0 0.0
          %1388 = vmatpush1.msra.mxu0 0.0
          %1389 = vmatprep.subr.mxu0 0.0
          %1390 = vmatpush1.msra.mxu0 0.0
          %1391 = vmatprep.subr.mxu0 0.0
          %1392 = vmatpush1.msra.mxu0 0.0
          %1393 = vmatprep.subr.mxu0 0.0
          %1394 = vmatpush1.msra.mxu0 0.0
          %1395 = vmatprep.subr.mxu0 0.0
          %1396 = vmatpush1.msra.mxu0 0.0
          %1397 = vmatprep.subr.mxu0 0.0
          %1398 = vmatpush1.msra.mxu0 0.0
          %1399 = vmatprep.subr.mxu0 0.0
          %1400 = vmatpush1.msra.mxu0 0.0
          %1401 = vmatprep.subr.mxu0 0.0
          %1402 = vmatpush1.msra.mxu0 0.0
          %1403 = vmatprep.subr.mxu0 0.0
          %1404 = vmatpush1.msra.mxu0 0.0
          %1405 = vmatprep.subr.mxu0 0.0
          %1406 = vmatpush1.msra.mxu0 %v955
          %1407 = vmatprep.subr.mxu0 0.0
          %1408 = vmatpush2.msra.mxu0 0.0
          %1409 = vmatprep.subr.mxu0 0.0
          %1410 = vmatpush2.msra.mxu0 0.0
          %1411 = vmatprep.subr.mxu0 0.0
          %1412 = vmatpush2.msra.mxu0 0.0
          %1413 = vmatprep.subr.mxu0 0.0
          %1414 = vmatpush2.msra.mxu0 0.0
          %1415 = vmatprep.subr.mxu0 0.0
          %1416 = vmatpush2.msra.mxu0 0.0
          %1417 = vmatprep.subr.mxu0 0.0
          %1418 = vmatpush2.msra.mxu0 0.0
          %1419 = vmatprep.subr.mxu0 0.0
          %1420 = vmatpush2.msra.mxu0 0.0
          %1421 = vmatprep.subr.mxu0 0.0
          %1422 = vmatpush2.msra.mxu0 0.0
          %1423 = vmatprep.subr.mxu0 0.0
          %1424 = vmatpush2.msra.mxu0 0.0
          %1425 = vmatprep.subr.mxu0 0.0
          %1426 = vmatpush2.msra.mxu0 0.0
          %1427 = vmatprep.subr.mxu0 0.0
          %1428 = vmatpush2.msra.mxu0 0.0
          %1429 = vmatprep.subr.mxu0 0.0
          %1430 = vmatpush2.msra.mxu0 0.0
          %1431 = vmatprep.subr.mxu0 0.0
          %1432 = vmatpush2.msra.mxu0 0.0
          %1433 = vmatprep.subr.mxu0 0.0
          %1434 = vmatpush2.msra.mxu0 0.0
          %1435 = vmatprep.subr.mxu0 0.0
          %1436 = vmatpush2.msra.mxu0 0.0
          %1437 = vmatprep.subr.mxu0 0.0
          %1438 = vmatpush2.msra.mxu0 0.0
          %1439 = vmatprep.mubr.f32.mxu0 0.0
          %1440 = vmatmul.mubr.f32.gmra.mxu0 %v1373
          %v1441 = vpop.f32.mrf.mxu0
          %v1442 = vadd.f32 0.0, %v1441
          %v1443 = vpop.f32.mrf.mxu0
          %1444 = vdwg.mxu0
          %v1445 = vmul.f32 %v1442, %v1289
          %v1446 = vadd.f32 %v1284, %v1445
          %vm1447 = vcmp.ge.s32.totalorder %v653, 9
          %vm1448 = vcmp.lt.s32.totalorder %v653, 12
          %vm1449 = vmand %vm1447, %vm1448
          %v1450 = vsel %vm1449, 1, 0
          %v1451 = vcvt.s32.f32 %v1450
          %v1452 = vmul.f32 %v914, %v1451
          %1453 = vmatprep.subr.mxu0 0.0
          %1454 = vmatpush1.xpose.msra.mxu0 0.0
          %1455 = vmatprep.subr.mxu0 0.0
          %1456 = vmatpush1.xpose.msra.mxu0 0.0
          %1457 = vmatprep.subr.mxu0 0.0
          %1458 = vmatpush1.xpose.msra.mxu0 0.0
          %1459 = vmatprep.subr.mxu0 0.0
          %1460 = vmatpush1.xpose.msra.mxu0 0.0
          %1461 = vmatprep.subr.mxu0 0.0
          %1462 = vmatpush1.xpose.msra.mxu0 0.0
          %1463 = vmatprep.subr.mxu0 0.0
          %1464 = vmatpush1.xpose.msra.mxu0 0.0
          %1465 = vmatprep.subr.mxu0 0.0
          %1466 = vmatpush1.xpose.msra.mxu0 0.0
          %1467 = vmatprep.subr.mxu0 0.0
          %1468 = vmatpush1.xpose.msra.mxu0 0.0
          %1469 = vmatprep.subr.mxu0 0.0
          %1470 = vmatpush1.xpose.msra.mxu0 0.0
          %1471 = vmatprep.subr.mxu0 0.0
          %1472 = vmatpush1.xpose.msra.mxu0 0.0
          %1473 = vmatprep.subr.mxu0 0.0
          %1474 = vmatpush1.xpose.msra.mxu0 0.0
          %1475 = vmatprep.subr.mxu0 0.0
          %1476 = vmatpush1.xpose.msra.mxu0 0.0
          %1477 = vmatprep.subr.mxu0 0.0
          %1478 = vmatpush1.xpose.msra.mxu0 0.0
          %1479 = vmatprep.subr.mxu0 0.0
          %1480 = vmatpush1.xpose.msra.mxu0 0.0
          %1481 = vmatprep.subr.mxu0 0.0
          %1482 = vmatpush1.xpose.msra.mxu0 0.0
          %1483 = vmatprep.subr.mxu0 0.0
          %1484 = vmatpush1.xpose.msra.mxu0 %v916
          %1485 = vmatprep.subr.mxu0 0.0
          %1486 = vmatpush2.xpose.msra.mxu0 0.0
          %1487 = vmatprep.subr.mxu0 0.0
          %1488 = vmatpush2.xpose.msra.mxu0 0.0
          %1489 = vmatprep.subr.mxu0 0.0
          %1490 = vmatpush2.xpose.msra.mxu0 0.0
          %1491 = vmatprep.subr.mxu0 0.0
          %1492 = vmatpush2.xpose.msra.mxu0 0.0
          %1493 = vmatprep.subr.mxu0 0.0
          %1494 = vmatpush2.xpose.msra.mxu0 0.0
          %1495 = vmatprep.subr.mxu0 0.0
          %1496 = vmatpush2.xpose.msra.mxu0 0.0
          %1497 = vmatprep.subr.mxu0 0.0
          %1498 = vmatpush2.xpose.msra.mxu0 0.0
          %1499 = vmatprep.subr.mxu0 0.0
          %1500 = vmatpush2.xpose.msra.mxu0 0.0
          %1501 = vmatprep.subr.mxu0 0.0
          %1502 = vmatpush2.xpose.msra.mxu0 0.0
          %1503 = vmatprep.subr.mxu0 0.0
          %1504 = vmatpush2.xpose.msra.mxu0 0.0
          %1505 = vmatprep.subr.mxu0 0.0
          %1506 = vmatpush2.xpose.msra.mxu0 0.0
          %1507 = vmatprep.subr.mxu0 0.0
          %1508 = vmatpush2.xpose.msra.mxu0 0.0
          %1509 = vmatprep.subr.mxu0 0.0
          %1510 = vmatpush2.xpose.msra.mxu0 0.0
          %1511 = vmatprep.subr.mxu0 0.0
          %1512 = vmatpush2.xpose.msra.mxu0 0.0
          %1513 = vmatprep.subr.mxu0 0.0
          %1514 = vmatpush2.xpose.msra.mxu0 0.0
          %1515 = vmatprep.subr.mxu0 0.0
          %1516 = vmatpush2.xpose.msra.mxu0 0.0
          %1517 = vmatprep.mubr.f32.mxu0 0.0
          %1518 = vmatmul.mubr.f32.gmra.mxu0 %v1452
          %v1519 = vpop.f32.mrf.mxu0
          %v1520 = vadd.f32 0.0, %v1519
          %v1521 = vpop.f32.mrf.mxu0
          %1522 = vdwg.mxu0
          %v1523 = vsel %vm1036, %v1520, -inf
          %1524 = vmax.xlane.f32.xlu0 %v1523
          %v1525 = vpop.xlane.xlu0 %1524
          %v1526 = vsub.f32 %v1520, %v1525
          %v1527 = vmul.f32 %v1526, 1.442695
          %v1528 = vpow.pop %v1527
          %v1529 = vsel %vm1036, %v1528, 0.0
          %1530 = vadd.xlane.f32.xlu0 %v1529
          %v1531 = vpop.xlane.xlu0 %1530
          %v1532 = vrcp.pop %v1531
          %v1533 = vmul.f32 %v1528, %v1532
          %v1535 = vsel %vm1036, %v1533, 0
          %1537 = vmatprep.subr.mxu0 0.0
          %1538 = vmatpush1.msra.mxu0 0.0
          %1539 = vmatprep.subr.mxu0 0.0
          %1540 = vmatpush1.msra.mxu0 0.0
          %1541 = vmatprep.subr.mxu0 0.0
          %1542 = vmatpush1.msra.mxu0 0.0
          %1543 = vmatprep.subr.mxu0 0.0
          %1544 = vmatpush1.msra.mxu0 0.0
          %1545 = vmatprep.subr.mxu0 0.0
          %1546 = vmatpush1.msra.mxu0 0.0
          %1547 = vmatprep.subr.mxu0 0.0
          %1548 = vmatpush1.msra.mxu0 0.0
          %1549 = vmatprep.subr.mxu0 0.0
          %1550 = vmatpush1.msra.mxu0 0.0
          %1551 = vmatprep.subr.mxu0 0.0
          %1552 = vmatpush1.msra.mxu0 0.0
          %1553 = vmatprep.subr.mxu0 0.0
          %1554 = vmatpush1.msra.mxu0 0.0
          %1555 = vmatprep.subr.mxu0 0.0
          %1556 = vmatpush1.msra.mxu0 0.0
          %1557 = vmatprep.subr.mxu0 0.0
          %1558 = vmatpush1.msra.mxu0 0.0
          %1559 = vmatprep.subr.mxu0 0.0
          %1560 = vmatpush1.msra.mxu0 0.0
          %1561 = vmatprep.subr.mxu0 0.0
          %1562 = vmatpush1.msra.mxu0 0.0
          %1563 = vmatprep.subr.mxu0 0.0
          %1564 = vmatpush1.msra.mxu0 0.0
          %1565 = vmatprep.subr.mxu0 0.0
          %1566 = vmatpush1.msra.mxu0 0.0
          %1567 = vmatprep.subr.mxu0 0.0
          %1568 = vmatpush1.msra.mxu0 %v955
          %1569 = vmatprep.subr.mxu0 0.0
          %1570 = vmatpush2.msra.mxu0 0.0
          %1571 = vmatprep.subr.mxu0 0.0
          %1572 = vmatpush2.msra.mxu0 0.0
          %1573 = vmatprep.subr.mxu0 0.0
          %1574 = vmatpush2.msra.mxu0 0.0
          %1575 = vmatprep.subr.mxu0 0.0
          %1576 = vmatpush2.msra.mxu0 0.0
          %1577 = vmatprep.subr.mxu0 0.0
          %1578 = vmatpush2.msra.mxu0 0.0
          %1579 = vmatprep.subr.mxu0 0.0
          %1580 = vmatpush2.msra.mxu0 0.0
          %1581 = vmatprep.subr.mxu0 0.0
          %1582 = vmatpush2.msra.mxu0 0.0
          %1583 = vmatprep.subr.mxu0 0.0
          %1584 = vmatpush2.msra.mxu0 0.0
          %1585 = vmatprep.subr.mxu0 0.0
          %1586 = vmatpush2.msra.mxu0 0.0
          %1587 = vmatprep.subr.mxu0 0.0
          %1588 = vmatpush2.msra.mxu0 0.0
          %1589 = vmatprep.subr.mxu0 0.0
          %1590 = vmatpush2.msra.mxu0 0.0
          %1591 = vmatprep.subr.mxu0 0.0
          %1592 = vmatpush2.msra.mxu0 0.0
          %1593 = vmatprep.subr.mxu0 0.0
          %1594 = vmatpush2.msra.mxu0 0.0
          %1595 = vmatprep.subr.mxu0 0.0
          %1596 = vmatpush2.msra.mxu0 0.0
          %1597 = vmatprep.subr.mxu0 0.0
          %1598 = vmatpush2.msra.mxu0 0.0
          %1599 = vmatprep.subr.mxu0 0.0
          %1600 = vmatpush2.msra.mxu0 0.0
          %1601 = vmatprep.mubr.f32.mxu0 0.0
          %1602 = vmatmul.mubr.f32.gmra.mxu0 %v1535
          %v1603 = vpop.f32.mrf.mxu0
          %v1604 = vadd.f32 0.0, %v1603
          %v1605 = vpop.f32.mrf.mxu0
          %1606 = vdwg.mxu0
          %v1607 = vmul.f32 %v1604, %v1451
          %v1608 = vadd.f32 %v1446, %v1607
          %vm1609 = vcmp.ge.s32.totalorder %v653, 12
          %vm1610 = vcmp.lt.s32.totalorder %v653, 15
          %vm1611 = vmand %vm1609, %vm1610
          %v1612 = vsel %vm1611, 1, 0
          %v1613 = vcvt.s32.f32 %v1612
          %v1614 = vmul.f32 %v914, %v1613
          %1615 = vmatprep.subr.mxu0 0.0
          %1616 = vmatpush1.xpose.msra.mxu0 0.0
          %1617 = vmatprep.subr.mxu0 0.0
          %1618 = vmatpush1.xpose.msra.mxu0 0.0
          %1619 = vmatprep.subr.mxu0 0.0
          %1620 = vmatpush1.xpose.msra.mxu0 0.0
          %1621 = vmatprep.subr.mxu0 0.0
          %1622 = vmatpush1.xpose.msra.mxu0 0.0
          %1623 = vmatprep.subr.mxu0 0.0
          %1624 = vmatpush1.xpose.msra.mxu0 0.0
          %1625 = vmatprep.subr.mxu0 0.0
          %1626 = vmatpush1.xpose.msra.mxu0 0.0
          %1627 = vmatprep.subr.mxu0 0.0
          %1628 = vmatpush1.xpose.msra.mxu0 0.0
          %1629 = vmatprep.subr.mxu0 0.0
          %1630 = vmatpush1.xpose.msra.mxu0 0.0
          %1631 = vmatprep.subr.mxu0 0.0
          %1632 = vmatpush1.xpose.msra.mxu0 0.0
          %1633 = vmatprep.subr.mxu0 0.0
          %1634 = vmatpush1.xpose.msra.mxu0 0.0
          %1635 = vmatprep.subr.mxu0 0.0
          %1636 = vmatpush1.xpose.msra.mxu0 0.0
          %1637 = vmatprep.subr.mxu0 0.0
          %1638 = vmatpush1.xpose.msra.mxu0 0.0
          %1639 = vmatprep.subr.mxu0 0.0
          %1640 = vmatpush1.xpose.msra.mxu0 0.0
          %1641 = vmatprep.subr.mxu0 0.0
          %1642 = vmatpush1.xpose.msra.mxu0 0.0
          %1643 = vmatprep.subr.mxu0 0.0
          %1644 = vmatpush1.xpose.msra.mxu0 0.0
          %1645 = vmatprep.subr.mxu0 0.0
          %1646 = vmatpush1.xpose.msra.mxu0 %v916
          %1647 = vmatprep.subr.mxu0 0.0
          %1648 = vmatpush2.xpose.msra.mxu0 0.0
          %1649 = vmatprep.subr.mxu0 0.0
          %1650 = vmatpush2.xpose.msra.mxu0 0.0
          %1651 = vmatprep.subr.mxu0 0.0
          %1652 = vmatpush2.xpose.msra.mxu0 0.0
          %1653 = vmatprep.subr.mxu0 0.0
          %1654 = vmatpush2.xpose.msra.mxu0 0.0
          %1655 = vmatprep.subr.mxu0 0.0
          %1656 = vmatpush2.xpose.msra.mxu0 0.0
          %1657 = vmatprep.subr.mxu0 0.0
          %1658 = vmatpush2.xpose.msra.mxu0 0.0
          %1659 = vmatprep.subr.mxu0 0.0
          %1660 = vmatpush2.xpose.msra.mxu0 0.0
          %1661 = vmatprep.subr.mxu0 0.0
          %1662 = vmatpush2.xpose.msra.mxu0 0.0
          %1663 = vmatprep.subr.mxu0 0.0
          %1664 = vmatpush2.xpose.msra.mxu0 0.0
          %1665 = vmatprep.subr.mxu0 0.0
          %1666 = vmatpush2.xpose.msra.mxu0 0.0
          %1667 = vmatprep.subr.mxu0 0.0
          %1668 = vmatpush2.xpose.msra.mxu0 0.0
          %1669 = vmatprep.subr.mxu0 0.0
          %1670 = vmatpush2.xpose.msra.mxu0 0.0
          %1671 = vmatprep.subr.mxu0 0.0
          %1672 = vmatpush2.xpose.msra.mxu0 0.0
          %1673 = vmatprep.subr.mxu0 0.0
          %1674 = vmatpush2.xpose.msra.mxu0 0.0
          %1675 = vmatprep.subr.mxu0 0.0
          %1676 = vmatpush2.xpose.msra.mxu0 0.0
          %1677 = vmatprep.subr.mxu0 0.0
          %1678 = vmatpush2.xpose.msra.mxu0 0.0
          %1679 = vmatprep.mubr.f32.mxu0 0.0
          %1680 = vmatmul.mubr.f32.gmra.mxu0 %v1614
          %v1681 = vpop.f32.mrf.mxu0
          %v1682 = vadd.f32 0.0, %v1681
          %v1683 = vpop.f32.mrf.mxu0
          %1684 = vdwg.mxu0
          %v1685 = vsel %vm1036, %v1682, -inf
          %1686 = vmax.xlane.f32.xlu0 %v1685
          %v1687 = vpop.xlane.xlu0 %1686
          %v1688 = vsub.f32 %v1682, %v1687
          %v1689 = vmul.f32 %v1688, 1.442695
          %v1690 = vpow.pop %v1689
          %v1691 = vsel %vm1036, %v1690, 0.0
          %1692 = vadd.xlane.f32.xlu0 %v1691
          %v1693 = vpop.xlane.xlu0 %1692
          %v1694 = vrcp.pop %v1693
          %v1695 = vmul.f32 %v1690, %v1694
          %v1697 = vsel %vm1036, %v1695, 0
          %1699 = vmatprep.subr.mxu0 0.0
          %1700 = vmatpush1.msra.mxu0 0.0
          %1701 = vmatprep.subr.mxu0 0.0
          %1702 = vmatpush1.msra.mxu0 0.0
          %1703 = vmatprep.subr.mxu0 0.0
          %1704 = vmatpush1.msra.mxu0 0.0
          %1705 = vmatprep.subr.mxu0 0.0
          %1706 = vmatpush1.msra.mxu0 0.0
          %1707 = vmatprep.subr.mxu0 0.0
          %1708 = vmatpush1.msra.mxu0 0.0
          %1709 = vmatprep.subr.mxu0 0.0
          %1710 = vmatpush1.msra.mxu0 0.0
          %1711 = vmatprep.subr.mxu0 0.0
          %1712 = vmatpush1.msra.mxu0 0.0
          %1713 = vmatprep.subr.mxu0 0.0
          %1714 = vmatpush1.msra.mxu0 0.0
          %1715 = vmatprep.subr.mxu0 0.0
          %1716 = vmatpush1.msra.mxu0 0.0
          %1717 = vmatprep.subr.mxu0 0.0
          %1718 = vmatpush1.msra.mxu0 0.0
          %1719 = vmatprep.subr.mxu0 0.0
          %1720 = vmatpush1.msra.mxu0 0.0
          %1721 = vmatprep.subr.mxu0 0.0
          %1722 = vmatpush1.msra.mxu0 0.0
          %1723 = vmatprep.subr.mxu0 0.0
          %1724 = vmatpush1.msra.mxu0 0.0
          %1725 = vmatprep.subr.mxu0 0.0
          %1726 = vmatpush1.msra.mxu0 0.0
          %1727 = vmatprep.subr.mxu0 0.0
          %1728 = vmatpush1.msra.mxu0 0.0
          %1729 = vmatprep.subr.mxu0 0.0
          %1730 = vmatpush1.msra.mxu0 %v955
          %1731 = vmatprep.subr.mxu0 0.0
          %1732 = vmatpush2.msra.mxu0 0.0
          %1733 = vmatprep.subr.mxu0 0.0
          %1734 = vmatpush2.msra.mxu0 0.0
          %1735 = vmatprep.subr.mxu0 0.0
          %1736 = vmatpush2.msra.mxu0 0.0
          %1737 = vmatprep.subr.mxu0 0.0
          %1738 = vmatpush2.msra.mxu0 0.0
          %1739 = vmatprep.subr.mxu0 0.0
          %1740 = vmatpush2.msra.mxu0 0.0
          %1741 = vmatprep.subr.mxu0 0.0
          %1742 = vmatpush2.msra.mxu0 0.0
          %1743 = vmatprep.subr.mxu0 0.0
          %1744 = vmatpush2.msra.mxu0 0.0
          %1745 = vmatprep.subr.mxu0 0.0
          %1746 = vmatpush2.msra.mxu0 0.0
          %1747 = vmatprep.subr.mxu0 0.0
          %1748 = vmatpush2.msra.mxu0 0.0
          %1749 = vmatprep.subr.mxu0 0.0
          %1750 = vmatpush2.msra.mxu0 0.0
          %1751 = vmatprep.subr.mxu0 0.0
          %1752 = vmatpush2.msra.mxu0 0.0
          %1753 = vmatprep.subr.mxu0 0.0
          %1754 = vmatpush2.msra.mxu0 0.0
          %1755 = vmatprep.subr.mxu0 0.0
          %1756 = vmatpush2.msra.mxu0 0.0
          %1757 = vmatprep.subr.mxu0 0.0
          %1758 = vmatpush2.msra.mxu0 0.0
          %1759 = vmatprep.subr.mxu0 0.0
          %1760 = vmatpush2.msra.mxu0 0.0
          %1761 = vmatprep.subr.mxu0 0.0
          %1762 = vmatpush2.msra.mxu0 0.0
          %1763 = vmatprep.mubr.f32.mxu0 0.0
          %1764 = vmatmul.mubr.f32.gmra.mxu0 %v1697
          %v1765 = vpop.f32.mrf.mxu0
          %v1766 = vadd.f32 0.0, %v1765
          %v1767 = vpop.f32.mrf.mxu0
          %1768 = vdwg.mxu0
          %v1769 = vmul.f32 %v1766, %v1613
          %v1770 = vadd.f32 %v1608, %v1769
          %vm1771 = vcmp.ge.s32.totalorder %v653, 15
          %vm1772 = vcmp.lt.s32.totalorder %v653, 18
          %vm1773 = vmand %vm1771, %vm1772
          %v1774 = vsel %vm1773, 1, 0
          %v1775 = vcvt.s32.f32 %v1774
          %v1776 = vmul.f32 %v914, %v1775
          %1777 = vmatprep.subr.mxu0 0.0
          %1778 = vmatpush1.xpose.msra.mxu0 0.0
          %1779 = vmatprep.subr.mxu0 0.0
          %1780 = vmatpush1.xpose.msra.mxu0 0.0
          %1781 = vmatprep.subr.mxu0 0.0
          %1782 = vmatpush1.xpose.msra.mxu0 0.0
          %1783 = vmatprep.subr.mxu0 0.0
          %1784 = vmatpush1.xpose.msra.mxu0 0.0
          %1785 = vmatprep.subr.mxu0 0.0
          %1786 = vmatpush1.xpose.msra.mxu0 0.0
          %1787 = vmatprep.subr.mxu0 0.0
          %1788 = vmatpush1.xpose.msra.mxu0 0.0
          %1789 = vmatprep.subr.mxu0 0.0
          %1790 = vmatpush1.xpose.msra.mxu0 0.0
          %1791 = vmatprep.subr.mxu0 0.0
          %1792 = vmatpush1.xpose.msra.mxu0 0.0
          %1793 = vmatprep.subr.mxu0 0.0
          %1794 = vmatpush1.xpose.msra.mxu0 0.0
          %1795 = vmatprep.subr.mxu0 0.0
          %1796 = vmatpush1.xpose.msra.mxu0 0.0
          %1797 = vmatprep.subr.mxu0 0.0
          %1798 = vmatpush1.xpose.msra.mxu0 0.0
          %1799 = vmatprep.subr.mxu0 0.0
          %1800 = vmatpush1.xpose.msra.mxu0 0.0
          %1801 = vmatprep.subr.mxu0 0.0
          %1802 = vmatpush1.xpose.msra.mxu0 0.0
          %1803 = vmatprep.subr.mxu0 0.0
          %1804 = vmatpush1.xpose.msra.mxu0 0.0
          %1805 = vmatprep.subr.mxu0 0.0
          %1806 = vmatpush1.xpose.msra.mxu0 0.0
          %1807 = vmatprep.subr.mxu0 0.0
          %1808 = vmatpush1.xpose.msra.mxu0 %v916
          %1809 = vmatprep.subr.mxu0 0.0
          %1810 = vmatpush2.xpose.msra.mxu0 0.0
          %1811 = vmatprep.subr.mxu0 0.0
          %1812 = vmatpush2.xpose.msra.mxu0 0.0
          %1813 = vmatprep.subr.mxu0 0.0
          %1814 = vmatpush2.xpose.msra.mxu0 0.0
          %1815 = vmatprep.subr.mxu0 0.0
          %1816 = vmatpush2.xpose.msra.mxu0 0.0
          %1817 = vmatprep.subr.mxu0 0.0
          %1818 = vmatpush2.xpose.msra.mxu0 0.0
          %1819 = vmatprep.subr.mxu0 0.0
          %1820 = vmatpush2.xpose.msra.mxu0 0.0
          %1821 = vmatprep.subr.mxu0 0.0
          %1822 = vmatpush2.xpose.msra.mxu0 0.0
          %1823 = vmatprep.subr.mxu0 0.0
          %1824 = vmatpush2.xpose.msra.mxu0 0.0
          %1825 = vmatprep.subr.mxu0 0.0
          %1826 = vmatpush2.xpose.msra.mxu0 0.0
          %1827 = vmatprep.subr.mxu0 0.0
          %1828 = vmatpush2.xpose.msra.mxu0 0.0
          %1829 = vmatprep.subr.mxu0 0.0
          %1830 = vmatpush2.xpose.msra.mxu0 0.0
          %1831 = vmatprep.subr.mxu0 0.0
          %1832 = vmatpush2.xpose.msra.mxu0 0.0
          %1833 = vmatprep.subr.mxu0 0.0
          %1834 = vmatpush2.xpose.msra.mxu0 0.0
          %1835 = vmatprep.subr.mxu0 0.0
          %1836 = vmatpush2.xpose.msra.mxu0 0.0
          %1837 = vmatprep.subr.mxu0 0.0
          %1838 = vmatpush2.xpose.msra.mxu0 0.0
          %1839 = vmatprep.subr.mxu0 0.0
          %1840 = vmatpush2.xpose.msra.mxu0 0.0
          %1841 = vmatprep.mubr.f32.mxu0 0.0
          %1842 = vmatmul.mubr.f32.gmra.mxu0 %v1776
          %v1843 = vpop.f32.mrf.mxu0
          %v1844 = vadd.f32 0.0, %v1843
          %v1845 = vpop.f32.mrf.mxu0
          %1846 = vdwg.mxu0
          %v1847 = vsel %vm1036, %v1844, -inf
          %1848 = vmax.xlane.f32.xlu0 %v1847
          %v1849 = vpop.xlane.xlu0 %1848
          %v1850 = vsub.f32 %v1844, %v1849
          %v1851 = vmul.f32 %v1850, 1.442695
          %v1852 = vpow.pop %v1851
          %v1853 = vsel %vm1036, %v1852, 0.0
          %1854 = vadd.xlane.f32.xlu0 %v1853
          %v1855 = vpop.xlane.xlu0 %1854
          %v1856 = vrcp.pop %v1855
          %v1857 = vmul.f32 %v1852, %v1856
          %v1859 = vsel %vm1036, %v1857, 0
          %1861 = vmatprep.subr.mxu0 0.0
          %1862 = vmatpush1.msra.mxu0 0.0
          %1863 = vmatprep.subr.mxu0 0.0
          %1864 = vmatpush1.msra.mxu0 0.0
          %1865 = vmatprep.subr.mxu0 0.0
          %1866 = vmatpush1.msra.mxu0 0.0
          %1867 = vmatprep.subr.mxu0 0.0
          %1868 = vmatpush1.msra.mxu0 0.0
          %1869 = vmatprep.subr.mxu0 0.0
          %1870 = vmatpush1.msra.mxu0 0.0
          %1871 = vmatprep.subr.mxu0 0.0
          %1872 = vmatpush1.msra.mxu0 0.0
          %1873 = vmatprep.subr.mxu0 0.0
          %1874 = vmatpush1.msra.mxu0 0.0
          %1875 = vmatprep.subr.mxu0 0.0
          %1876 = vmatpush1.msra.mxu0 0.0
          %1877 = vmatprep.subr.mxu0 0.0
          %1878 = vmatpush1.msra.mxu0 0.0
          %1879 = vmatprep.subr.mxu0 0.0
          %1880 = vmatpush1.msra.mxu0 0.0
          %1881 = vmatprep.subr.mxu0 0.0
          %1882 = vmatpush1.msra.mxu0 0.0
          %1883 = vmatprep.subr.mxu0 0.0
          %1884 = vmatpush1.msra.mxu0 0.0
          %1885 = vmatprep.subr.mxu0 0.0
          %1886 = vmatpush1.msra.mxu0 0.0
          %1887 = vmatprep.subr.mxu0 0.0
          %1888 = vmatpush1.msra.mxu0 0.0
          %1889 = vmatprep.subr.mxu0 0.0
          %1890 = vmatpush1.msra.mxu0 0.0
          %1891 = vmatprep.subr.mxu0 0.0
          %1892 = vmatpush1.msra.mxu0 %v955
          %1893 = vmatprep.subr.mxu0 0.0
          %1894 = vmatpush2.msra.mxu0 0.0
          %1895 = vmatprep.subr.mxu0 0.0
          %1896 = vmatpush2.msra.mxu0 0.0
          %1897 = vmatprep.subr.mxu0 0.0
          %1898 = vmatpush2.msra.mxu0 0.0
          %1899 = vmatprep.subr.mxu0 0.0
          %1900 = vmatpush2.msra.mxu0 0.0
          %1901 = vmatprep.subr.mxu0 0.0
          %1902 = vmatpush2.msra.mxu0 0.0
          %1903 = vmatprep.subr.mxu0 0.0
          %1904 = vmatpush2.msra.mxu0 0.0
          %1905 = vmatprep.subr.mxu0 0.0
          %1906 = vmatpush2.msra.mxu0 0.0
          %1907 = vmatprep.subr.mxu0 0.0
          %1908 = vmatpush2.msra.mxu0 0.0
          %1909 = vmatprep.subr.mxu0 0.0
          %1910 = vmatpush2.msra.mxu0 0.0
          %1911 = vmatprep.subr.mxu0 0.0
          %1912 = vmatpush2.msra.mxu0 0.0
          %1913 = vmatprep.subr.mxu0 0.0
          %1914 = vmatpush2.msra.mxu0 0.0
          %1915 = vmatprep.subr.mxu0 0.0
          %1916 = vmatpush2.msra.mxu0 0.0
          %1917 = vmatprep.subr.mxu0 0.0
          %1918 = vmatpush2.msra.mxu0 0.0
          %1919 = vmatprep.subr.mxu0 0.0
          %1920 = vmatpush2.msra.mxu0 0.0
          %1921 = vmatprep.subr.mxu0 0.0
          %1922 = vmatpush2.msra.mxu0 0.0
          %1923 = vmatprep.subr.mxu0 0.0
          %1924 = vmatpush2.msra.mxu0 0.0
          %1925 = vmatprep.mubr.f32.mxu0 0.0
          %1926 = vmatmul.mubr.f32.gmra.mxu0 %v1859
          %v1927 = vpop.f32.mrf.mxu0
          %v1928 = vadd.f32 0.0, %v1927
          %v1929 = vpop.f32.mrf.mxu0
          %1930 = vdwg.mxu0
          %v1931 = vmul.f32 %v1928, %v1775
          %v1932 = vadd.f32 %v1770, %v1931
          %vm1933 = vcmp.ge.s32.totalorder %v653, 18
          %vm1934 = vcmp.lt.s32.totalorder %v653, 21
          %vm1935 = vmand %vm1933, %vm1934
          %v1936 = vsel %vm1935, 1, 0
          %v1937 = vcvt.s32.f32 %v1936
          %v1938 = vmul.f32 %v914, %v1937
          %1939 = vmatprep.subr.mxu0 0.0
          %1940 = vmatpush1.xpose.msra.mxu0 0.0
          %1941 = vmatprep.subr.mxu0 0.0
          %1942 = vmatpush1.xpose.msra.mxu0 0.0
          %1943 = vmatprep.subr.mxu0 0.0
          %1944 = vmatpush1.xpose.msra.mxu0 0.0
          %1945 = vmatprep.subr.mxu0 0.0
          %1946 = vmatpush1.xpose.msra.mxu0 0.0
          %1947 = vmatprep.subr.mxu0 0.0
          %1948 = vmatpush1.xpose.msra.mxu0 0.0
          %1949 = vmatprep.subr.mxu0 0.0
          %1950 = vmatpush1.xpose.msra.mxu0 0.0
          %1951 = vmatprep.subr.mxu0 0.0
          %1952 = vmatpush1.xpose.msra.mxu0 0.0
          %1953 = vmatprep.subr.mxu0 0.0
          %1954 = vmatpush1.xpose.msra.mxu0 0.0
          %1955 = vmatprep.subr.mxu0 0.0
          %1956 = vmatpush1.xpose.msra.mxu0 0.0
          %1957 = vmatprep.subr.mxu0 0.0
          %1958 = vmatpush1.xpose.msra.mxu0 0.0
          %1959 = vmatprep.subr.mxu0 0.0
          %1960 = vmatpush1.xpose.msra.mxu0 0.0
          %1961 = vmatprep.subr.mxu0 0.0
          %1962 = vmatpush1.xpose.msra.mxu0 0.0
          %1963 = vmatprep.subr.mxu0 0.0
          %1964 = vmatpush1.xpose.msra.mxu0 0.0
          %1965 = vmatprep.subr.mxu0 0.0
          %1966 = vmatpush1.xpose.msra.mxu0 0.0
          %1967 = vmatprep.subr.mxu0 0.0
          %1968 = vmatpush1.xpose.msra.mxu0 0.0
          %1969 = vmatprep.subr.mxu0 0.0
          %1970 = vmatpush1.xpose.msra.mxu0 %v916
          %1971 = vmatprep.subr.mxu0 0.0
          %1972 = vmatpush2.xpose.msra.mxu0 0.0
          %1973 = vmatprep.subr.mxu0 0.0
          %1974 = vmatpush2.xpose.msra.mxu0 0.0
          %1975 = vmatprep.subr.mxu0 0.0
          %1976 = vmatpush2.xpose.msra.mxu0 0.0
          %1977 = vmatprep.subr.mxu0 0.0
          %1978 = vmatpush2.xpose.msra.mxu0 0.0
          %1979 = vmatprep.subr.mxu0 0.0
          %1980 = vmatpush2.xpose.msra.mxu0 0.0
          %1981 = vmatprep.subr.mxu0 0.0
          %1982 = vmatpush2.xpose.msra.mxu0 0.0
          %1983 = vmatprep.subr.mxu0 0.0
          %1984 = vmatpush2.xpose.msra.mxu0 0.0
          %1985 = vmatprep.subr.mxu0 0.0
          %1986 = vmatpush2.xpose.msra.mxu0 0.0
          %1987 = vmatprep.subr.mxu0 0.0
          %1988 = vmatpush2.xpose.msra.mxu0 0.0
          %1989 = vmatprep.subr.mxu0 0.0
          %1990 = vmatpush2.xpose.msra.mxu0 0.0
          %1991 = vmatprep.subr.mxu0 0.0
          %1992 = vmatpush2.xpose.msra.mxu0 0.0
          %1993 = vmatprep.subr.mxu0 0.0
          %1994 = vmatpush2.xpose.msra.mxu0 0.0
          %1995 = vmatprep.subr.mxu0 0.0
          %1996 = vmatpush2.xpose.msra.mxu0 0.0
          %1997 = vmatprep.subr.mxu0 0.0
          %1998 = vmatpush2.xpose.msra.mxu0 0.0
          %1999 = vmatprep.subr.mxu0 0.0
          %2000 = vmatpush2.xpose.msra.mxu0 0.0
          %2001 = vmatprep.subr.mxu0 0.0
          %2002 = vmatpush2.xpose.msra.mxu0 0.0
          %2003 = vmatprep.mubr.f32.mxu0 0.0
          %2004 = vmatmul.mubr.f32.gmra.mxu0 %v1938
          %v2005 = vpop.f32.mrf.mxu0
          %v2006 = vadd.f32 0.0, %v2005
          %v2007 = vpop.f32.mrf.mxu0
          %2008 = vdwg.mxu0
          %v2009 = vsel %vm1036, %v2006, -inf
          %2010 = vmax.xlane.f32.xlu0 %v2009
          %v2011 = vpop.xlane.xlu0 %2010
          %v2012 = vsub.f32 %v2006, %v2011
          %v2013 = vmul.f32 %v2012, 1.442695
          %v2014 = vpow.pop %v2013
          %v2015 = vsel %vm1036, %v2014, 0.0
          %2016 = vadd.xlane.f32.xlu0 %v2015
          %v2017 = vpop.xlane.xlu0 %2016
          %v2018 = vrcp.pop %v2017
          %v2019 = vmul.f32 %v2014, %v2018
          %v2021 = vsel %vm1036, %v2019, 0
          %2023 = vmatprep.subr.mxu0 0.0
          %2024 = vmatpush1.msra.mxu0 0.0
          %2025 = vmatprep.subr.mxu0 0.0
          %2026 = vmatpush1.msra.mxu0 0.0
          %2027 = vmatprep.subr.mxu0 0.0
          %2028 = vmatpush1.msra.mxu0 0.0
          %2029 = vmatprep.subr.mxu0 0.0
          %2030 = vmatpush1.msra.mxu0 0.0
          %2031 = vmatprep.subr.mxu0 0.0
          %2032 = vmatpush1.msra.mxu0 0.0
          %2033 = vmatprep.subr.mxu0 0.0
          %2034 = vmatpush1.msra.mxu0 0.0
          %2035 = vmatprep.subr.mxu0 0.0
          %2036 = vmatpush1.msra.mxu0 0.0
          %2037 = vmatprep.subr.mxu0 0.0
          %2038 = vmatpush1.msra.mxu0 0.0
          %2039 = vmatprep.subr.mxu0 0.0
          %2040 = vmatpush1.msra.mxu0 0.0
          %2041 = vmatprep.subr.mxu0 0.0
          %2042 = vmatpush1.msra.mxu0 0.0
          %2043 = vmatprep.subr.mxu0 0.0
          %2044 = vmatpush1.msra.mxu0 0.0
          %2045 = vmatprep.subr.mxu0 0.0
          %2046 = vmatpush1.msra.mxu0 0.0
          %2047 = vmatprep.subr.mxu0 0.0
          %2048 = vmatpush1.msra.mxu0 0.0
          %2049 = vmatprep.subr.mxu0 0.0
          %2050 = vmatpush1.msra.mxu0 0.0
          %2051 = vmatprep.subr.mxu0 0.0
          %2052 = vmatpush1.msra.mxu0 0.0
          %2053 = vmatprep.subr.mxu0 0.0
          %2054 = vmatpush1.msra.mxu0 %v955
          %2055 = vmatprep.subr.mxu0 0.0
          %2056 = vmatpush2.msra.mxu0 0.0
          %2057 = vmatprep.subr.mxu0 0.0
          %2058 = vmatpush2.msra.mxu0 0.0
          %2059 = vmatprep.subr.mxu0 0.0
          %2060 = vmatpush2.msra.mxu0 0.0
          %2061 = vmatprep.subr.mxu0 0.0
          %2062 = vmatpush2.msra.mxu0 0.0
          %2063 = vmatprep.subr.mxu0 0.0
          %2064 = vmatpush2.msra.mxu0 0.0
          %2065 = vmatprep.subr.mxu0 0.0
          %2066 = vmatpush2.msra.mxu0 0.0
          %2067 = vmatprep.subr.mxu0 0.0
          %2068 = vmatpush2.msra.mxu0 0.0
          %2069 = vmatprep.subr.mxu0 0.0
          %2070 = vmatpush2.msra.mxu0 0.0
          %2071 = vmatprep.subr.mxu0 0.0
          %2072 = vmatpush2.msra.mxu0 0.0
          %2073 = vmatprep.subr.mxu0 0.0
          %2074 = vmatpush2.msra.mxu0 0.0
          %2075 = vmatprep.subr.mxu0 0.0
          %2076 = vmatpush2.msra.mxu0 0.0
          %2077 = vmatprep.subr.mxu0 0.0
          %2078 = vmatpush2.msra.mxu0 0.0
          %2079 = vmatprep.subr.mxu0 0.0
          %2080 = vmatpush2.msra.mxu0 0.0
          %2081 = vmatprep.subr.mxu0 0.0
          %2082 = vmatpush2.msra.mxu0 0.0
          %2083 = vmatprep.subr.mxu0 0.0
          %2084 = vmatpush2.msra.mxu0 0.0
          %2085 = vmatprep.subr.mxu0 0.0
          %2086 = vmatpush2.msra.mxu0 0.0
          %2087 = vmatprep.mubr.f32.mxu0 0.0
          %2088 = vmatmul.mubr.f32.gmra.mxu0 %v2021
          %v2089 = vpop.f32.mrf.mxu0
          %v2090 = vadd.f32 0.0, %v2089
          %v2091 = vpop.f32.mrf.mxu0
          %2092 = vdwg.mxu0
          %v2093 = vmul.f32 %v2090, %v1937
          %v2094 = vadd.f32 %v1932, %v2093
          %vm2095 = vcmp.ge.s32.totalorder %v653, 21
          %vm2096 = vcmp.lt.s32.totalorder %v653, 24
          %vm2097 = vmand %vm2095, %vm2096
          %v2098 = vsel %vm2097, 1, 0
          %v2099 = vcvt.s32.f32 %v2098
          %v2100 = vmul.f32 %v914, %v2099
          %2101 = vmatprep.subr.mxu0 0.0
          %2102 = vmatpush1.xpose.msra.mxu0 0.0
          %2103 = vmatprep.subr.mxu0 0.0
          %2104 = vmatpush1.xpose.msra.mxu0 0.0
          %2105 = vmatprep.subr.mxu0 0.0
          %2106 = vmatpush1.xpose.msra.mxu0 0.0
          %2107 = vmatprep.subr.mxu0 0.0
          %2108 = vmatpush1.xpose.msra.mxu0 0.0
          %2109 = vmatprep.subr.mxu0 0.0
          %2110 = vmatpush1.xpose.msra.mxu0 0.0
          %2111 = vmatprep.subr.mxu0 0.0
          %2112 = vmatpush1.xpose.msra.mxu0 0.0
          %2113 = vmatprep.subr.mxu0 0.0
          %2114 = vmatpush1.xpose.msra.mxu0 0.0
          %2115 = vmatprep.subr.mxu0 0.0
          %2116 = vmatpush1.xpose.msra.mxu0 0.0
          %2117 = vmatprep.subr.mxu0 0.0
          %2118 = vmatpush1.xpose.msra.mxu0 0.0
          %2119 = vmatprep.subr.mxu0 0.0
          %2120 = vmatpush1.xpose.msra.mxu0 0.0
          %2121 = vmatprep.subr.mxu0 0.0
          %2122 = vmatpush1.xpose.msra.mxu0 0.0
          %2123 = vmatprep.subr.mxu0 0.0
          %2124 = vmatpush1.xpose.msra.mxu0 0.0
          %2125 = vmatprep.subr.mxu0 0.0
          %2126 = vmatpush1.xpose.msra.mxu0 0.0
          %2127 = vmatprep.subr.mxu0 0.0
          %2128 = vmatpush1.xpose.msra.mxu0 0.0
          %2129 = vmatprep.subr.mxu0 0.0
          %2130 = vmatpush1.xpose.msra.mxu0 0.0
          %2131 = vmatprep.subr.mxu0 0.0
          %2132 = vmatpush1.xpose.msra.mxu0 %v916
          %2133 = vmatprep.subr.mxu0 0.0
          %2134 = vmatpush2.xpose.msra.mxu0 0.0
          %2135 = vmatprep.subr.mxu0 0.0
          %2136 = vmatpush2.xpose.msra.mxu0 0.0
          %2137 = vmatprep.subr.mxu0 0.0
          %2138 = vmatpush2.xpose.msra.mxu0 0.0
          %2139 = vmatprep.subr.mxu0 0.0
          %2140 = vmatpush2.xpose.msra.mxu0 0.0
          %2141 = vmatprep.subr.mxu0 0.0
          %2142 = vmatpush2.xpose.msra.mxu0 0.0
          %2143 = vmatprep.subr.mxu0 0.0
          %2144 = vmatpush2.xpose.msra.mxu0 0.0
          %2145 = vmatprep.subr.mxu0 0.0
          %2146 = vmatpush2.xpose.msra.mxu0 0.0
          %2147 = vmatprep.subr.mxu0 0.0
          %2148 = vmatpush2.xpose.msra.mxu0 0.0
          %2149 = vmatprep.subr.mxu0 0.0
          %2150 = vmatpush2.xpose.msra.mxu0 0.0
          %2151 = vmatprep.subr.mxu0 0.0
          %2152 = vmatpush2.xpose.msra.mxu0 0.0
          %2153 = vmatprep.subr.mxu0 0.0
          %2154 = vmatpush2.xpose.msra.mxu0 0.0
          %2155 = vmatprep.subr.mxu0 0.0
          %2156 = vmatpush2.xpose.msra.mxu0 0.0
          %2157 = vmatprep.subr.mxu0 0.0
          %2158 = vmatpush2.xpose.msra.mxu0 0.0
          %2159 = vmatprep.subr.mxu0 0.0
          %2160 = vmatpush2.xpose.msra.mxu0 0.0
          %2161 = vmatprep.subr.mxu0 0.0
          %2162 = vmatpush2.xpose.msra.mxu0 0.0
          %2163 = vmatprep.subr.mxu0 0.0
          %2164 = vmatpush2.xpose.msra.mxu0 0.0
          %2165 = vmatprep.mubr.f32.mxu0 0.0
          %2166 = vmatmul.mubr.f32.gmra.mxu0 %v2100
          %v2167 = vpop.f32.mrf.mxu0
          %v2168 = vadd.f32 0.0, %v2167
          %v2169 = vpop.f32.mrf.mxu0
          %2170 = vdwg.mxu0
          %v2171 = vsel %vm1036, %v2168, -inf
          %2172 = vmax.xlane.f32.xlu0 %v2171
          %v2173 = vpop.xlane.xlu0 %2172
          %v2174 = vsub.f32 %v2168, %v2173
          %v2175 = vmul.f32 %v2174, 1.442695
          %v2176 = vpow.pop %v2175
          %v2177 = vsel %vm1036, %v2176, 0.0
          %2178 = vadd.xlane.f32.xlu0 %v2177
          %v2179 = vpop.xlane.xlu0 %2178
          %v2180 = vrcp.pop %v2179
          %v2181 = vmul.f32 %v2176, %v2180
          %v2183 = vsel %vm1036, %v2181, 0
          %2185 = vmatprep.subr.mxu0 0.0
          %2186 = vmatpush1.msra.mxu0 0.0
          %2187 = vmatprep.subr.mxu0 0.0
          %2188 = vmatpush1.msra.mxu0 0.0
          %2189 = vmatprep.subr.mxu0 0.0
          %2190 = vmatpush1.msra.mxu0 0.0
          %2191 = vmatprep.subr.mxu0 0.0
          %2192 = vmatpush1.msra.mxu0 0.0
          %2193 = vmatprep.subr.mxu0 0.0
          %2194 = vmatpush1.msra.mxu0 0.0
          %2195 = vmatprep.subr.mxu0 0.0
          %2196 = vmatpush1.msra.mxu0 0.0
          %2197 = vmatprep.subr.mxu0 0.0
          %2198 = vmatpush1.msra.mxu0 0.0
          %2199 = vmatprep.subr.mxu0 0.0
          %2200 = vmatpush1.msra.mxu0 0.0
          %2201 = vmatprep.subr.mxu0 0.0
          %2202 = vmatpush1.msra.mxu0 0.0
          %2203 = vmatprep.subr.mxu0 0.0
          %2204 = vmatpush1.msra.mxu0 0.0
          %2205 = vmatprep.subr.mxu0 0.0
          %2206 = vmatpush1.msra.mxu0 0.0
          %2207 = vmatprep.subr.mxu0 0.0
          %2208 = vmatpush1.msra.mxu0 0.0
          %2209 = vmatprep.subr.mxu0 0.0
          %2210 = vmatpush1.msra.mxu0 0.0
          %2211 = vmatprep.subr.mxu0 0.0
          %2212 = vmatpush1.msra.mxu0 0.0
          %2213 = vmatprep.subr.mxu0 0.0
          %2214 = vmatpush1.msra.mxu0 0.0
          %2215 = vmatprep.subr.mxu0 0.0
          %2216 = vmatpush1.msra.mxu0 %v955
          %2217 = vmatprep.subr.mxu0 0.0
          %2218 = vmatpush2.msra.mxu0 0.0
          %2219 = vmatprep.subr.mxu0 0.0
          %2220 = vmatpush2.msra.mxu0 0.0
          %2221 = vmatprep.subr.mxu0 0.0
          %2222 = vmatpush2.msra.mxu0 0.0
          %2223 = vmatprep.subr.mxu0 0.0
          %2224 = vmatpush2.msra.mxu0 0.0
          %2225 = vmatprep.subr.mxu0 0.0
          %2226 = vmatpush2.msra.mxu0 0.0
          %2227 = vmatprep.subr.mxu0 0.0
          %2228 = vmatpush2.msra.mxu0 0.0
          %2229 = vmatprep.subr.mxu0 0.0
          %2230 = vmatpush2.msra.mxu0 0.0
          %2231 = vmatprep.subr.mxu0 0.0
          %2232 = vmatpush2.msra.mxu0 0.0
          %2233 = vmatprep.subr.mxu0 0.0
          %2234 = vmatpush2.msra.mxu0 0.0
          %2235 = vmatprep.subr.mxu0 0.0
          %2236 = vmatpush2.msra.mxu0 0.0
          %2237 = vmatprep.subr.mxu0 0.0
          %2238 = vmatpush2.msra.mxu0 0.0
          %2239 = vmatprep.subr.mxu0 0.0
          %2240 = vmatpush2.msra.mxu0 0.0
          %2241 = vmatprep.subr.mxu0 0.0
          %2242 = vmatpush2.msra.mxu0 0.0
          %2243 = vmatprep.subr.mxu0 0.0
          %2244 = vmatpush2.msra.mxu0 0.0
          %2245 = vmatprep.subr.mxu0 0.0
          %2246 = vmatpush2.msra.mxu0 0.0
          %2247 = vmatprep.subr.mxu0 0.0
          %2248 = vmatpush2.msra.mxu0 0.0
          %2249 = vmatprep.mubr.f32.mxu0 0.0
          %2250 = vmatmul.mubr.f32.gmra.mxu0 %v2183
          %v2251 = vpop.f32.mrf.mxu0
          %v2252 = vadd.f32 0.0, %v2251
          %v2253 = vpop.f32.mrf.mxu0
          %2254 = vdwg.mxu0
          %v2255 = vmul.f32 %v2252, %v2099
          %v2256 = vadd.f32 %v2094, %v2255
          %vm2257 = vcmp.ge.s32.totalorder %v653, 24
          %vm2258 = vcmp.lt.s32.totalorder %v653, 27
          %vm2259 = vmand %vm2257, %vm2258
          %v2260 = vsel %vm2259, 1, 0
          %v2261 = vcvt.s32.f32 %v2260
          %v2262 = vmul.f32 %v914, %v2261
          %2263 = vmatprep.subr.mxu0 0.0
          %2264 = vmatpush1.xpose.msra.mxu0 0.0
          %2265 = vmatprep.subr.mxu0 0.0
          %2266 = vmatpush1.xpose.msra.mxu0 0.0
          %2267 = vmatprep.subr.mxu0 0.0
          %2268 = vmatpush1.xpose.msra.mxu0 0.0
          %2269 = vmatprep.subr.mxu0 0.0
          %2270 = vmatpush1.xpose.msra.mxu0 0.0
          %2271 = vmatprep.subr.mxu0 0.0
          %2272 = vmatpush1.xpose.msra.mxu0 0.0
          %2273 = vmatprep.subr.mxu0 0.0
          %2274 = vmatpush1.xpose.msra.mxu0 0.0
          %2275 = vmatprep.subr.mxu0 0.0
          %2276 = vmatpush1.xpose.msra.mxu0 0.0
          %2277 = vmatprep.subr.mxu0 0.0
          %2278 = vmatpush1.xpose.msra.mxu0 0.0
          %2279 = vmatprep.subr.mxu0 0.0
          %2280 = vmatpush1.xpose.msra.mxu0 0.0
          %2281 = vmatprep.subr.mxu0 0.0
          %2282 = vmatpush1.xpose.msra.mxu0 0.0
          %2283 = vmatprep.subr.mxu0 0.0
          %2284 = vmatpush1.xpose.msra.mxu0 0.0
          %2285 = vmatprep.subr.mxu0 0.0
          %2286 = vmatpush1.xpose.msra.mxu0 0.0
          %2287 = vmatprep.subr.mxu0 0.0
          %2288 = vmatpush1.xpose.msra.mxu0 0.0
          %2289 = vmatprep.subr.mxu0 0.0
          %2290 = vmatpush1.xpose.msra.mxu0 0.0
          %2291 = vmatprep.subr.mxu0 0.0
          %2292 = vmatpush1.xpose.msra.mxu0 0.0
          %2293 = vmatprep.subr.mxu0 0.0
          %2294 = vmatpush1.xpose.msra.mxu0 %v916
          %2295 = vmatprep.subr.mxu0 0.0
          %2296 = vmatpush2.xpose.msra.mxu0 0.0
          %2297 = vmatprep.subr.mxu0 0.0
          %2298 = vmatpush2.xpose.msra.mxu0 0.0
          %2299 = vmatprep.subr.mxu0 0.0
          %2300 = vmatpush2.xpose.msra.mxu0 0.0
          %2301 = vmatprep.subr.mxu0 0.0
          %2302 = vmatpush2.xpose.msra.mxu0 0.0
          %2303 = vmatprep.subr.mxu0 0.0
          %2304 = vmatpush2.xpose.msra.mxu0 0.0
          %2305 = vmatprep.subr.mxu0 0.0
          %2306 = vmatpush2.xpose.msra.mxu0 0.0
          %2307 = vmatprep.subr.mxu0 0.0
          %2308 = vmatpush2.xpose.msra.mxu0 0.0
          %2309 = vmatprep.subr.mxu0 0.0
          %2310 = vmatpush2.xpose.msra.mxu0 0.0
          %2311 = vmatprep.subr.mxu0 0.0
          %2312 = vmatpush2.xpose.msra.mxu0 0.0
          %2313 = vmatprep.subr.mxu0 0.0
          %2314 = vmatpush2.xpose.msra.mxu0 0.0
          %2315 = vmatprep.subr.mxu0 0.0
          %2316 = vmatpush2.xpose.msra.mxu0 0.0
          %2317 = vmatprep.subr.mxu0 0.0
          %2318 = vmatpush2.xpose.msra.mxu0 0.0
          %2319 = vmatprep.subr.mxu0 0.0
          %2320 = vmatpush2.xpose.msra.mxu0 0.0
          %2321 = vmatprep.subr.mxu0 0.0
          %2322 = vmatpush2.xpose.msra.mxu0 0.0
          %2323 = vmatprep.subr.mxu0 0.0
          %2324 = vmatpush2.xpose.msra.mxu0 0.0
          %2325 = vmatprep.subr.mxu0 0.0
          %2326 = vmatpush2.xpose.msra.mxu0 0.0
          %2327 = vmatprep.mubr.f32.mxu0 0.0
          %2328 = vmatmul.mubr.f32.gmra.mxu0 %v2262
          %v2329 = vpop.f32.mrf.mxu0
          %v2330 = vadd.f32 0.0, %v2329
          %v2331 = vpop.f32.mrf.mxu0
          %2332 = vdwg.mxu0
          %v2333 = vsel %vm1036, %v2330, -inf
          %2334 = vmax.xlane.f32.xlu0 %v2333
          %v2335 = vpop.xlane.xlu0 %2334
          %v2336 = vsub.f32 %v2330, %v2335
          %v2337 = vmul.f32 %v2336, 1.442695
          %v2338 = vpow.pop %v2337
          %v2339 = vsel %vm1036, %v2338, 0.0
          %2340 = vadd.xlane.f32.xlu0 %v2339
          %v2341 = vpop.xlane.xlu0 %2340
          %v2342 = vrcp.pop %v2341
          %v2343 = vmul.f32 %v2338, %v2342
          %v2345 = vsel %vm1036, %v2343, 0
          %2347 = vmatprep.subr.mxu0 0.0
          %2348 = vmatpush1.msra.mxu0 0.0
          %2349 = vmatprep.subr.mxu0 0.0
          %2350 = vmatpush1.msra.mxu0 0.0
          %2351 = vmatprep.subr.mxu0 0.0
          %2352 = vmatpush1.msra.mxu0 0.0
          %2353 = vmatprep.subr.mxu0 0.0
          %2354 = vmatpush1.msra.mxu0 0.0
          %2355 = vmatprep.subr.mxu0 0.0
          %2356 = vmatpush1.msra.mxu0 0.0
          %2357 = vmatprep.subr.mxu0 0.0
          %2358 = vmatpush1.msra.mxu0 0.0
          %2359 = vmatprep.subr.mxu0 0.0
          %2360 = vmatpush1.msra.mxu0 0.0
          %2361 = vmatprep.subr.mxu0 0.0
          %2362 = vmatpush1.msra.mxu0 0.0
          %2363 = vmatprep.subr.mxu0 0.0
          %2364 = vmatpush1.msra.mxu0 0.0
          %2365 = vmatprep.subr.mxu0 0.0
          %2366 = vmatpush1.msra.mxu0 0.0
          %2367 = vmatprep.subr.mxu0 0.0
          %2368 = vmatpush1.msra.mxu0 0.0
          %2369 = vmatprep.subr.mxu0 0.0
          %2370 = vmatpush1.msra.mxu0 0.0
          %2371 = vmatprep.subr.mxu0 0.0
          %2372 = vmatpush1.msra.mxu0 0.0
          %2373 = vmatprep.subr.mxu0 0.0
          %2374 = vmatpush1.msra.mxu0 0.0
          %2375 = vmatprep.subr.mxu0 0.0
          %2376 = vmatpush1.msra.mxu0 0.0
          %2377 = vmatprep.subr.mxu0 0.0
          %2378 = vmatpush1.msra.mxu0 %v955
          %2379 = vmatprep.subr.mxu0 0.0
          %2380 = vmatpush2.msra.mxu0 0.0
          %2381 = vmatprep.subr.mxu0 0.0
          %2382 = vmatpush2.msra.mxu0 0.0
          %2383 = vmatprep.subr.mxu0 0.0
          %2384 = vmatpush2.msra.mxu0 0.0
          %2385 = vmatprep.subr.mxu0 0.0
          %2386 = vmatpush2.msra.mxu0 0.0
          %2387 = vmatprep.subr.mxu0 0.0
          %2388 = vmatpush2.msra.mxu0 0.0
          %2389 = vmatprep.subr.mxu0 0.0
          %2390 = vmatpush2.msra.mxu0 0.0
          %2391 = vmatprep.subr.mxu0 0.0
          %2392 = vmatpush2.msra.mxu0 0.0
          %2393 = vmatprep.subr.mxu0 0.0
          %2394 = vmatpush2.msra.mxu0 0.0
          %2395 = vmatprep.subr.mxu0 0.0
          %2396 = vmatpush2.msra.mxu0 0.0
          %2397 = vmatprep.subr.mxu0 0.0
          %2398 = vmatpush2.msra.mxu0 0.0
          %2399 = vmatprep.subr.mxu0 0.0
          %2400 = vmatpush2.msra.mxu0 0.0
          %2401 = vmatprep.subr.mxu0 0.0
          %2402 = vmatpush2.msra.mxu0 0.0
          %2403 = vmatprep.subr.mxu0 0.0
          %2404 = vmatpush2.msra.mxu0 0.0
          %2405 = vmatprep.subr.mxu0 0.0
          %2406 = vmatpush2.msra.mxu0 0.0
          %2407 = vmatprep.subr.mxu0 0.0
          %2408 = vmatpush2.msra.mxu0 0.0
          %2409 = vmatprep.subr.mxu0 0.0
          %2410 = vmatpush2.msra.mxu0 0.0
          %2411 = vmatprep.mubr.f32.mxu0 0.0
          %2412 = vmatmul.mubr.f32.gmra.mxu0 %v2345
          %v2413 = vpop.f32.mrf.mxu0
          %v2414 = vadd.f32 0.0, %v2413
          %v2415 = vpop.f32.mrf.mxu0
          %2416 = vdwg.mxu0
          %v2417 = vmul.f32 %v2414, %v2261
          %v2418 = vadd.f32 %v2256, %v2417
          %vm2419 = vcmp.ge.s32.totalorder %v653, 27
          %vm2420 = vcmp.lt.s32.totalorder %v653, 30
          %vm2421 = vmand %vm2419, %vm2420
          %v2422 = vsel %vm2421, 1, 0
          %v2423 = vcvt.s32.f32 %v2422
          %v2424 = vmul.f32 %v914, %v2423
          %2425 = vmatprep.subr.mxu0 0.0
          %2426 = vmatpush1.xpose.msra.mxu0 0.0
          %2427 = vmatprep.subr.mxu0 0.0
          %2428 = vmatpush1.xpose.msra.mxu0 0.0
          %2429 = vmatprep.subr.mxu0 0.0
          %2430 = vmatpush1.xpose.msra.mxu0 0.0
          %2431 = vmatprep.subr.mxu0 0.0
          %2432 = vmatpush1.xpose.msra.mxu0 0.0
          %2433 = vmatprep.subr.mxu0 0.0
          %2434 = vmatpush1.xpose.msra.mxu0 0.0
          %2435 = vmatprep.subr.mxu0 0.0
          %2436 = vmatpush1.xpose.msra.mxu0 0.0
          %2437 = vmatprep.subr.mxu0 0.0
          %2438 = vmatpush1.xpose.msra.mxu0 0.0
          %2439 = vmatprep.subr.mxu0 0.0
          %2440 = vmatpush1.xpose.msra.mxu0 0.0
          %2441 = vmatprep.subr.mxu0 0.0
          %2442 = vmatpush1.xpose.msra.mxu0 0.0
          %2443 = vmatprep.subr.mxu0 0.0
          %2444 = vmatpush1.xpose.msra.mxu0 0.0
          %2445 = vmatprep.subr.mxu0 0.0
          %2446 = vmatpush1.xpose.msra.mxu0 0.0
          %2447 = vmatprep.subr.mxu0 0.0
          %2448 = vmatpush1.xpose.msra.mxu0 0.0
          %2449 = vmatprep.subr.mxu0 0.0
          %2450 = vmatpush1.xpose.msra.mxu0 0.0
          %2451 = vmatprep.subr.mxu0 0.0
          %2452 = vmatpush1.xpose.msra.mxu0 0.0
          %2453 = vmatprep.subr.mxu0 0.0
          %2454 = vmatpush1.xpose.msra.mxu0 0.0
          %2455 = vmatprep.subr.mxu0 0.0
          %2456 = vmatpush1.xpose.msra.mxu0 %v916
          %2457 = vmatprep.subr.mxu0 0.0
          %2458 = vmatpush2.xpose.msra.mxu0 0.0
          %2459 = vmatprep.subr.mxu0 0.0
          %2460 = vmatpush2.xpose.msra.mxu0 0.0
          %2461 = vmatprep.subr.mxu0 0.0
          %2462 = vmatpush2.xpose.msra.mxu0 0.0
          %2463 = vmatprep.subr.mxu0 0.0
          %2464 = vmatpush2.xpose.msra.mxu0 0.0
          %2465 = vmatprep.subr.mxu0 0.0
          %2466 = vmatpush2.xpose.msra.mxu0 0.0
          %2467 = vmatprep.subr.mxu0 0.0
          %2468 = vmatpush2.xpose.msra.mxu0 0.0
          %2469 = vmatprep.subr.mxu0 0.0
          %2470 = vmatpush2.xpose.msra.mxu0 0.0
          %2471 = vmatprep.subr.mxu0 0.0
          %2472 = vmatpush2.xpose.msra.mxu0 0.0
          %2473 = vmatprep.subr.mxu0 0.0
          %2474 = vmatpush2.xpose.msra.mxu0 0.0
          %2475 = vmatprep.subr.mxu0 0.0
          %2476 = vmatpush2.xpose.msra.mxu0 0.0
          %2477 = vmatprep.subr.mxu0 0.0
          %2478 = vmatpush2.xpose.msra.mxu0 0.0
          %2479 = vmatprep.subr.mxu0 0.0
          %2480 = vmatpush2.xpose.msra.mxu0 0.0
          %2481 = vmatprep.subr.mxu0 0.0
          %2482 = vmatpush2.xpose.msra.mxu0 0.0
          %2483 = vmatprep.subr.mxu0 0.0
          %2484 = vmatpush2.xpose.msra.mxu0 0.0
          %2485 = vmatprep.subr.mxu0 0.0
          %2486 = vmatpush2.xpose.msra.mxu0 0.0
          %2487 = vmatprep.subr.mxu0 0.0
          %2488 = vmatpush2.xpose.msra.mxu0 0.0
          %2489 = vmatprep.mubr.f32.mxu0 0.0
          %2490 = vmatmul.mubr.f32.gmra.mxu0 %v2424
          %v2491 = vpop.f32.mrf.mxu0
          %v2492 = vadd.f32 0.0, %v2491
          %v2493 = vpop.f32.mrf.mxu0
          %2494 = vdwg.mxu0
          %v2495 = vsel %vm1036, %v2492, -inf
          %2496 = vmax.xlane.f32.xlu0 %v2495
          %v2497 = vpop.xlane.xlu0 %2496
          %v2498 = vsub.f32 %v2492, %v2497
          %v2499 = vmul.f32 %v2498, 1.442695
          %v2500 = vpow.pop %v2499
          %v2501 = vsel %vm1036, %v2500, 0.0
          %2502 = vadd.xlane.f32.xlu0 %v2501
          %v2503 = vpop.xlane.xlu0 %2502
          %v2504 = vrcp.pop %v2503
          %v2505 = vmul.f32 %v2500, %v2504
          %v2507 = vsel %vm1036, %v2505, 0
          %2509 = vmatprep.subr.mxu0 0.0
          %2510 = vmatpush1.msra.mxu0 0.0
          %2511 = vmatprep.subr.mxu0 0.0
          %2512 = vmatpush1.msra.mxu0 0.0
          %2513 = vmatprep.subr.mxu0 0.0
          %2514 = vmatpush1.msra.mxu0 0.0
          %2515 = vmatprep.subr.mxu0 0.0
          %2516 = vmatpush1.msra.mxu0 0.0
          %2517 = vmatprep.subr.mxu0 0.0
          %2518 = vmatpush1.msra.mxu0 0.0
          %2519 = vmatprep.subr.mxu0 0.0
          %2520 = vmatpush1.msra.mxu0 0.0
          %2521 = vmatprep.subr.mxu0 0.0
          %2522 = vmatpush1.msra.mxu0 0.0
          %2523 = vmatprep.subr.mxu0 0.0
          %2524 = vmatpush1.msra.mxu0 0.0
          %2525 = vmatprep.subr.mxu0 0.0
          %2526 = vmatpush1.msra.mxu0 0.0
          %2527 = vmatprep.subr.mxu0 0.0
          %2528 = vmatpush1.msra.mxu0 0.0
          %2529 = vmatprep.subr.mxu0 0.0
          %2530 = vmatpush1.msra.mxu0 0.0
          %2531 = vmatprep.subr.mxu0 0.0
          %2532 = vmatpush1.msra.mxu0 0.0
          %2533 = vmatprep.subr.mxu0 0.0
          %2534 = vmatpush1.msra.mxu0 0.0
          %2535 = vmatprep.subr.mxu0 0.0
          %2536 = vmatpush1.msra.mxu0 0.0
          %2537 = vmatprep.subr.mxu0 0.0
          %2538 = vmatpush1.msra.mxu0 0.0
          %2539 = vmatprep.subr.mxu0 0.0
          %2540 = vmatpush1.msra.mxu0 %v955
          %2541 = vmatprep.subr.mxu0 0.0
          %2542 = vmatpush2.msra.mxu0 0.0
          %2543 = vmatprep.subr.mxu0 0.0
          %2544 = vmatpush2.msra.mxu0 0.0
          %2545 = vmatprep.subr.mxu0 0.0
          %2546 = vmatpush2.msra.mxu0 0.0
          %2547 = vmatprep.subr.mxu0 0.0
          %2548 = vmatpush2.msra.mxu0 0.0
          %2549 = vmatprep.subr.mxu0 0.0
          %2550 = vmatpush2.msra.mxu0 0.0
          %2551 = vmatprep.subr.mxu0 0.0
          %2552 = vmatpush2.msra.mxu0 0.0
          %2553 = vmatprep.subr.mxu0 0.0
          %2554 = vmatpush2.msra.mxu0 0.0
          %2555 = vmatprep.subr.mxu0 0.0
          %2556 = vmatpush2.msra.mxu0 0.0
          %2557 = vmatprep.subr.mxu0 0.0
          %2558 = vmatpush2.msra.mxu0 0.0
          %2559 = vmatprep.subr.mxu0 0.0
          %2560 = vmatpush2.msra.mxu0 0.0
          %2561 = vmatprep.subr.mxu0 0.0
          %2562 = vmatpush2.msra.mxu0 0.0
          %2563 = vmatprep.subr.mxu0 0.0
          %2564 = vmatpush2.msra.mxu0 0.0
          %2565 = vmatprep.subr.mxu0 0.0
          %2566 = vmatpush2.msra.mxu0 0.0
          %2567 = vmatprep.subr.mxu0 0.0
          %2568 = vmatpush2.msra.mxu0 0.0
          %2569 = vmatprep.subr.mxu0 0.0
          %2570 = vmatpush2.msra.mxu0 0.0
          %2571 = vmatprep.subr.mxu0 0.0
          %2572 = vmatpush2.msra.mxu0 0.0
          %2573 = vmatprep.mubr.f32.mxu0 0.0
          %2574 = vmatmul.mubr.f32.gmra.mxu0 %v2507
          %v2575 = vpop.f32.mrf.mxu0
          %v2576 = vadd.f32 0.0, %v2575
          %v2577 = vpop.f32.mrf.mxu0
          %2578 = vdwg.mxu0
          %v2579 = vmul.f32 %v2576, %v2423
          %v2580 = vadd.f32 %v2418, %v2579
          %vm2581 = vcmp.ge.s32.totalorder %v653, 30
          %vm2582 = vcmp.lt.s32.totalorder %v653, 33
          %vm2583 = vmand %vm2581, %vm2582
          %v2584 = vsel %vm2583, 1, 0
          %v2585 = vcvt.s32.f32 %v2584
          %v2586 = vmul.f32 %v914, %v2585
          %2587 = vmatprep.subr.mxu0 0.0
          %2588 = vmatpush1.xpose.msra.mxu0 0.0
          %2589 = vmatprep.subr.mxu0 0.0
          %2590 = vmatpush1.xpose.msra.mxu0 0.0
          %2591 = vmatprep.subr.mxu0 0.0
          %2592 = vmatpush1.xpose.msra.mxu0 0.0
          %2593 = vmatprep.subr.mxu0 0.0
          %2594 = vmatpush1.xpose.msra.mxu0 0.0
          %2595 = vmatprep.subr.mxu0 0.0
          %2596 = vmatpush1.xpose.msra.mxu0 0.0
          %2597 = vmatprep.subr.mxu0 0.0
          %2598 = vmatpush1.xpose.msra.mxu0 0.0
          %2599 = vmatprep.subr.mxu0 0.0
          %2600 = vmatpush1.xpose.msra.mxu0 0.0
          %2601 = vmatprep.subr.mxu0 0.0
          %2602 = vmatpush1.xpose.msra.mxu0 0.0
          %2603 = vmatprep.subr.mxu0 0.0
          %2604 = vmatpush1.xpose.msra.mxu0 0.0
          %2605 = vmatprep.subr.mxu0 0.0
          %2606 = vmatpush1.xpose.msra.mxu0 0.0
          %2607 = vmatprep.subr.mxu0 0.0
          %2608 = vmatpush1.xpose.msra.mxu0 0.0
          %2609 = vmatprep.subr.mxu0 0.0
          %2610 = vmatpush1.xpose.msra.mxu0 0.0
          %2611 = vmatprep.subr.mxu0 0.0
          %2612 = vmatpush1.xpose.msra.mxu0 0.0
          %2613 = vmatprep.subr.mxu0 0.0
          %2614 = vmatpush1.xpose.msra.mxu0 0.0
          %2615 = vmatprep.subr.mxu0 0.0
          %2616 = vmatpush1.xpose.msra.mxu0 0.0
          %2617 = vmatprep.subr.mxu0 0.0
          %2618 = vmatpush1.xpose.msra.mxu0 %v916
          %2619 = vmatprep.subr.mxu0 0.0
          %2620 = vmatpush2.xpose.msra.mxu0 0.0
          %2621 = vmatprep.subr.mxu0 0.0
          %2622 = vmatpush2.xpose.msra.mxu0 0.0
          %2623 = vmatprep.subr.mxu0 0.0
          %2624 = vmatpush2.xpose.msra.mxu0 0.0
          %2625 = vmatprep.subr.mxu0 0.0
          %2626 = vmatpush2.xpose.msra.mxu0 0.0
          %2627 = vmatprep.subr.mxu0 0.0
          %2628 = vmatpush2.xpose.msra.mxu0 0.0
          %2629 = vmatprep.subr.mxu0 0.0
          %2630 = vmatpush2.xpose.msra.mxu0 0.0
          %2631 = vmatprep.subr.mxu0 0.0
          %2632 = vmatpush2.xpose.msra.mxu0 0.0
          %2633 = vmatprep.subr.mxu0 0.0
          %2634 = vmatpush2.xpose.msra.mxu0 0.0
          %2635 = vmatprep.subr.mxu0 0.0
          %2636 = vmatpush2.xpose.msra.mxu0 0.0
          %2637 = vmatprep.subr.mxu0 0.0
          %2638 = vmatpush2.xpose.msra.mxu0 0.0
          %2639 = vmatprep.subr.mxu0 0.0
          %2640 = vmatpush2.xpose.msra.mxu0 0.0
          %2641 = vmatprep.subr.mxu0 0.0
          %2642 = vmatpush2.xpose.msra.mxu0 0.0
          %2643 = vmatprep.subr.mxu0 0.0
          %2644 = vmatpush2.xpose.msra.mxu0 0.0
          %2645 = vmatprep.subr.mxu0 0.0
          %2646 = vmatpush2.xpose.msra.mxu0 0.0
          %2647 = vmatprep.subr.mxu0 0.0
          %2648 = vmatpush2.xpose.msra.mxu0 0.0
          %2649 = vmatprep.subr.mxu0 0.0
          %2650 = vmatpush2.xpose.msra.mxu0 0.0
          %2651 = vmatprep.mubr.f32.mxu0 0.0
          %2652 = vmatmul.mubr.f32.gmra.mxu0 %v2586
          %v2653 = vpop.f32.mrf.mxu0
          %v2654 = vadd.f32 0.0, %v2653
          %v2655 = vpop.f32.mrf.mxu0
          %2656 = vdwg.mxu0
          %v2657 = vsel %vm1036, %v2654, -inf
          %2658 = vmax.xlane.f32.xlu0 %v2657
          %v2659 = vpop.xlane.xlu0 %2658
          %v2660 = vsub.f32 %v2654, %v2659
          %v2661 = vmul.f32 %v2660, 1.442695
          %v2662 = vpow.pop %v2661
          %v2663 = vsel %vm1036, %v2662, 0.0
          %2664 = vadd.xlane.f32.xlu0 %v2663
          %v2665 = vpop.xlane.xlu0 %2664
          %v2666 = vrcp.pop %v2665
          %v2667 = vmul.f32 %v2662, %v2666
          %v2669 = vsel %vm1036, %v2667, 0
          %2671 = vmatprep.subr.mxu0 0.0
          %2672 = vmatpush1.msra.mxu0 0.0
          %2673 = vmatprep.subr.mxu0 0.0
          %2674 = vmatpush1.msra.mxu0 0.0
          %2675 = vmatprep.subr.mxu0 0.0
          %2676 = vmatpush1.msra.mxu0 0.0
          %2677 = vmatprep.subr.mxu0 0.0
          %2678 = vmatpush1.msra.mxu0 0.0
          %2679 = vmatprep.subr.mxu0 0.0
          %2680 = vmatpush1.msra.mxu0 0.0
          %2681 = vmatprep.subr.mxu0 0.0
          %2682 = vmatpush1.msra.mxu0 0.0
          %2683 = vmatprep.subr.mxu0 0.0
          %2684 = vmatpush1.msra.mxu0 0.0
          %2685 = vmatprep.subr.mxu0 0.0
          %2686 = vmatpush1.msra.mxu0 0.0
          %2687 = vmatprep.subr.mxu0 0.0
          %2688 = vmatpush1.msra.mxu0 0.0
          %2689 = vmatprep.subr.mxu0 0.0
          %2690 = vmatpush1.msra.mxu0 0.0
          %2691 = vmatprep.subr.mxu0 0.0
          %2692 = vmatpush1.msra.mxu0 0.0
          %2693 = vmatprep.subr.mxu0 0.0
          %2694 = vmatpush1.msra.mxu0 0.0
          %2695 = vmatprep.subr.mxu0 0.0
          %2696 = vmatpush1.msra.mxu0 0.0
          %2697 = vmatprep.subr.mxu0 0.0
          %2698 = vmatpush1.msra.mxu0 0.0
          %2699 = vmatprep.subr.mxu0 0.0
          %2700 = vmatpush1.msra.mxu0 0.0
          %2701 = vmatprep.subr.mxu0 0.0
          %2702 = vmatpush1.msra.mxu0 %v955
          %2703 = vmatprep.subr.mxu0 0.0
          %2704 = vmatpush2.msra.mxu0 0.0
          %2705 = vmatprep.subr.mxu0 0.0
          %2706 = vmatpush2.msra.mxu0 0.0
          %2707 = vmatprep.subr.mxu0 0.0
          %2708 = vmatpush2.msra.mxu0 0.0
          %2709 = vmatprep.subr.mxu0 0.0
          %2710 = vmatpush2.msra.mxu0 0.0
          %2711 = vmatprep.subr.mxu0 0.0
          %2712 = vmatpush2.msra.mxu0 0.0
          %2713 = vmatprep.subr.mxu0 0.0
          %2714 = vmatpush2.msra.mxu0 0.0
          %2715 = vmatprep.subr.mxu0 0.0
          %2716 = vmatpush2.msra.mxu0 0.0
          %2717 = vmatprep.subr.mxu0 0.0
          %2718 = vmatpush2.msra.mxu0 0.0
          %2719 = vmatprep.subr.mxu0 0.0
          %2720 = vmatpush2.msra.mxu0 0.0
          %2721 = vmatprep.subr.mxu0 0.0
          %2722 = vmatpush2.msra.mxu0 0.0
          %2723 = vmatprep.subr.mxu0 0.0
          %2724 = vmatpush2.msra.mxu0 0.0
          %2725 = vmatprep.subr.mxu0 0.0
          %2726 = vmatpush2.msra.mxu0 0.0
          %2727 = vmatprep.subr.mxu0 0.0
          %2728 = vmatpush2.msra.mxu0 0.0
          %2729 = vmatprep.subr.mxu0 0.0
          %2730 = vmatpush2.msra.mxu0 0.0
          %2731 = vmatprep.subr.mxu0 0.0
          %2732 = vmatpush2.msra.mxu0 0.0
          %2733 = vmatprep.subr.mxu0 0.0
          %2734 = vmatpush2.msra.mxu0 0.0
          %2735 = vmatprep.mubr.f32.mxu0 0.0
          %2736 = vmatmul.mubr.f32.gmra.mxu0 %v2669
          %v2737 = vpop.f32.mrf.mxu0
          %v2738 = vadd.f32 0.0, %v2737
          %v2739 = vpop.f32.mrf.mxu0
          %2740 = vdwg.mxu0
          %v2741 = vmul.f32 %v2738, %v2585
          %v2742 = vadd.f32 %v2580, %v2741
          %vm2743 = vcmp.ge.s32.totalorder %v653, 33
          %vm2744 = vcmp.lt.s32.totalorder %v653, 36
          %vm2745 = vmand %vm2743, %vm2744
          %v2746 = vsel %vm2745, 1, 0
          %v2747 = vcvt.s32.f32 %v2746
          %v2748 = vmul.f32 %v914, %v2747
          %2749 = vmatprep.subr.mxu0 0.0
          %2750 = vmatpush1.xpose.msra.mxu0 0.0
          %2751 = vmatprep.subr.mxu0 0.0
          %2752 = vmatpush1.xpose.msra.mxu0 0.0
          %2753 = vmatprep.subr.mxu0 0.0
          %2754 = vmatpush1.xpose.msra.mxu0 0.0
          %2755 = vmatprep.subr.mxu0 0.0
          %2756 = vmatpush1.xpose.msra.mxu0 0.0
          %2757 = vmatprep.subr.mxu0 0.0
          %2758 = vmatpush1.xpose.msra.mxu0 0.0
          %2759 = vmatprep.subr.mxu0 0.0
          %2760 = vmatpush1.xpose.msra.mxu0 0.0
          %2761 = vmatprep.subr.mxu0 0.0
          %2762 = vmatpush1.xpose.msra.mxu0 0.0
          %2763 = vmatprep.subr.mxu0 0.0
          %2764 = vmatpush1.xpose.msra.mxu0 0.0
          %2765 = vmatprep.subr.mxu0 0.0
          %2766 = vmatpush1.xpose.msra.mxu0 0.0
          %2767 = vmatprep.subr.mxu0 0.0
          %2768 = vmatpush1.xpose.msra.mxu0 0.0
          %2769 = vmatprep.subr.mxu0 0.0
          %2770 = vmatpush1.xpose.msra.mxu0 0.0
          %2771 = vmatprep.subr.mxu0 0.0
          %2772 = vmatpush1.xpose.msra.mxu0 0.0
          %2773 = vmatprep.subr.mxu0 0.0
          %2774 = vmatpush1.xpose.msra.mxu0 0.0
          %2775 = vmatprep.subr.mxu0 0.0
          %2776 = vmatpush1.xpose.msra.mxu0 0.0
          %2777 = vmatprep.subr.mxu0 0.0
          %2778 = vmatpush1.xpose.msra.mxu0 0.0
          %2779 = vmatprep.subr.mxu0 0.0
          %2780 = vmatpush1.xpose.msra.mxu0 %v916
          %2781 = vmatprep.subr.mxu0 0.0
          %2782 = vmatpush2.xpose.msra.mxu0 0.0
          %2783 = vmatprep.subr.mxu0 0.0
          %2784 = vmatpush2.xpose.msra.mxu0 0.0
          %2785 = vmatprep.subr.mxu0 0.0
          %2786 = vmatpush2.xpose.msra.mxu0 0.0
          %2787 = vmatprep.subr.mxu0 0.0
          %2788 = vmatpush2.xpose.msra.mxu0 0.0
          %2789 = vmatprep.subr.mxu0 0.0
          %2790 = vmatpush2.xpose.msra.mxu0 0.0
          %2791 = vmatprep.subr.mxu0 0.0
          %2792 = vmatpush2.xpose.msra.mxu0 0.0
          %2793 = vmatprep.subr.mxu0 0.0
          %2794 = vmatpush2.xpose.msra.mxu0 0.0
          %2795 = vmatprep.subr.mxu0 0.0
          %2796 = vmatpush2.xpose.msra.mxu0 0.0
          %2797 = vmatprep.subr.mxu0 0.0
          %2798 = vmatpush2.xpose.msra.mxu0 0.0
          %2799 = vmatprep.subr.mxu0 0.0
          %2800 = vmatpush2.xpose.msra.mxu0 0.0
          %2801 = vmatprep.subr.mxu0 0.0
          %2802 = vmatpush2.xpose.msra.mxu0 0.0
          %2803 = vmatprep.subr.mxu0 0.0
          %2804 = vmatpush2.xpose.msra.mxu0 0.0
          %2805 = vmatprep.subr.mxu0 0.0
          %2806 = vmatpush2.xpose.msra.mxu0 0.0
          %2807 = vmatprep.subr.mxu0 0.0
          %2808 = vmatpush2.xpose.msra.mxu0 0.0
          %2809 = vmatprep.subr.mxu0 0.0
          %2810 = vmatpush2.xpose.msra.mxu0 0.0
          %2811 = vmatprep.subr.mxu0 0.0
          %2812 = vmatpush2.xpose.msra.mxu0 0.0
          %2813 = vmatprep.mubr.f32.mxu0 0.0
          %2814 = vmatmul.mubr.f32.gmra.mxu0 %v2748
          %v2815 = vpop.f32.mrf.mxu0
          %v2816 = vadd.f32 0.0, %v2815
          %v2817 = vpop.f32.mrf.mxu0
          %2818 = vdwg.mxu0
          %v2819 = vsel %vm1036, %v2816, -inf
          %2820 = vmax.xlane.f32.xlu0 %v2819
          %v2821 = vpop.xlane.xlu0 %2820
          %v2822 = vsub.f32 %v2816, %v2821
          %v2823 = vmul.f32 %v2822, 1.442695
          %v2824 = vpow.pop %v2823
          %v2825 = vsel %vm1036, %v2824, 0.0
          %2826 = vadd.xlane.f32.xlu0 %v2825
          %v2827 = vpop.xlane.xlu0 %2826
          %v2828 = vrcp.pop %v2827
          %v2829 = vmul.f32 %v2824, %v2828
          %v2831 = vsel %vm1036, %v2829, 0
          %2833 = vmatprep.subr.mxu0 0.0
          %2834 = vmatpush1.msra.mxu0 0.0
          %2835 = vmatprep.subr.mxu0 0.0
          %2836 = vmatpush1.msra.mxu0 0.0
          %2837 = vmatprep.subr.mxu0 0.0
          %2838 = vmatpush1.msra.mxu0 0.0
          %2839 = vmatprep.subr.mxu0 0.0
          %2840 = vmatpush1.msra.mxu0 0.0
          %2841 = vmatprep.subr.mxu0 0.0
          %2842 = vmatpush1.msra.mxu0 0.0
          %2843 = vmatprep.subr.mxu0 0.0
          %2844 = vmatpush1.msra.mxu0 0.0
          %2845 = vmatprep.subr.mxu0 0.0
          %2846 = vmatpush1.msra.mxu0 0.0
          %2847 = vmatprep.subr.mxu0 0.0
          %2848 = vmatpush1.msra.mxu0 0.0
          %2849 = vmatprep.subr.mxu0 0.0
          %2850 = vmatpush1.msra.mxu0 0.0
          %2851 = vmatprep.subr.mxu0 0.0
          %2852 = vmatpush1.msra.mxu0 0.0
          %2853 = vmatprep.subr.mxu0 0.0
          %2854 = vmatpush1.msra.mxu0 0.0
          %2855 = vmatprep.subr.mxu0 0.0
          %2856 = vmatpush1.msra.mxu0 0.0
          %2857 = vmatprep.subr.mxu0 0.0
          %2858 = vmatpush1.msra.mxu0 0.0
          %2859 = vmatprep.subr.mxu0 0.0
          %2860 = vmatpush1.msra.mxu0 0.0
          %2861 = vmatprep.subr.mxu0 0.0
          %2862 = vmatpush1.msra.mxu0 0.0
          %2863 = vmatprep.subr.mxu0 0.0
          %2864 = vmatpush1.msra.mxu0 %v955
          %2865 = vmatprep.subr.mxu0 0.0
          %2866 = vmatpush2.msra.mxu0 0.0
          %2867 = vmatprep.subr.mxu0 0.0
          %2868 = vmatpush2.msra.mxu0 0.0
          %2869 = vmatprep.subr.mxu0 0.0
          %2870 = vmatpush2.msra.mxu0 0.0
          %2871 = vmatprep.subr.mxu0 0.0
          %2872 = vmatpush2.msra.mxu0 0.0
          %2873 = vmatprep.subr.mxu0 0.0
          %2874 = vmatpush2.msra.mxu0 0.0
          %2875 = vmatprep.subr.mxu0 0.0
          %2876 = vmatpush2.msra.mxu0 0.0
          %2877 = vmatprep.subr.mxu0 0.0
          %2878 = vmatpush2.msra.mxu0 0.0
          %2879 = vmatprep.subr.mxu0 0.0
          %2880 = vmatpush2.msra.mxu0 0.0
          %2881 = vmatprep.subr.mxu0 0.0
          %2882 = vmatpush2.msra.mxu0 0.0
          %2883 = vmatprep.subr.mxu0 0.0
          %2884 = vmatpush2.msra.mxu0 0.0
          %2885 = vmatprep.subr.mxu0 0.0
          %2886 = vmatpush2.msra.mxu0 0.0
          %2887 = vmatprep.subr.mxu0 0.0
          %2888 = vmatpush2.msra.mxu0 0.0
          %2889 = vmatprep.subr.mxu0 0.0
          %2890 = vmatpush2.msra.mxu0 0.0
          %2891 = vmatprep.subr.mxu0 0.0
          %2892 = vmatpush2.msra.mxu0 0.0
          %2893 = vmatprep.subr.mxu0 0.0
          %2894 = vmatpush2.msra.mxu0 0.0
          %2895 = vmatprep.subr.mxu0 0.0
          %2896 = vmatpush2.msra.mxu0 0.0
          %2897 = vmatprep.mubr.f32.mxu0 0.0
          %2898 = vmatmul.mubr.f32.gmra.mxu0 %v2831
          %v2899 = vpop.f32.mrf.mxu0
          %v2900 = vadd.f32 0.0, %v2899
          %v2901 = vpop.f32.mrf.mxu0
          %2902 = vdwg.mxu0
          %v2903 = vmul.f32 %v2900, %v2747
          %v2904 = vadd.f32 %v2742, %v2903
          %vm2905 = vcmp.ge.s32.totalorder %v653, 36
          %vm2906 = vmand %vm2905, %vm654
          %v2907 = vsel %vm2906, 1, 0
          %v2908 = vcvt.s32.f32 %v2907
          %v2909 = vmul.f32 %v914, %v2908
          %2910 = vmatprep.subr.mxu0 0.0
          %2911 = vmatpush1.xpose.msra.mxu0 0.0
          %2912 = vmatprep.subr.mxu0 0.0
          %2913 = vmatpush1.xpose.msra.mxu0 0.0
          %2914 = vmatprep.subr.mxu0 0.0
          %2915 = vmatpush1.xpose.msra.mxu0 0.0
          %2916 = vmatprep.subr.mxu0 0.0
          %2917 = vmatpush1.xpose.msra.mxu0 0.0
          %2918 = vmatprep.subr.mxu0 0.0
          %2919 = vmatpush1.xpose.msra.mxu0 0.0
          %2920 = vmatprep.subr.mxu0 0.0
          %2921 = vmatpush1.xpose.msra.mxu0 0.0
          %2922 = vmatprep.subr.mxu0 0.0
          %2923 = vmatpush1.xpose.msra.mxu0 0.0
          %2924 = vmatprep.subr.mxu0 0.0
          %2925 = vmatpush1.xpose.msra.mxu0 0.0
          %2926 = vmatprep.subr.mxu0 0.0
          %2927 = vmatpush1.xpose.msra.mxu0 0.0
          %2928 = vmatprep.subr.mxu0 0.0
          %2929 = vmatpush1.xpose.msra.mxu0 0.0
          %2930 = vmatprep.subr.mxu0 0.0
          %2931 = vmatpush1.xpose.msra.mxu0 0.0
          %2932 = vmatprep.subr.mxu0 0.0
          %2933 = vmatpush1.xpose.msra.mxu0 0.0
          %2934 = vmatprep.subr.mxu0 0.0
          %2935 = vmatpush1.xpose.msra.mxu0 0.0
          %2936 = vmatprep.subr.mxu0 0.0
          %2937 = vmatpush1.xpose.msra.mxu0 0.0
          %2938 = vmatprep.subr.mxu0 0.0
          %2939 = vmatpush1.xpose.msra.mxu0 0.0
          %2940 = vmatprep.subr.mxu0 0.0
          %2941 = vmatpush1.xpose.msra.mxu0 %v916
          %2942 = vmatprep.subr.mxu0 0.0
          %2943 = vmatpush2.xpose.msra.mxu0 0.0
          %2944 = vmatprep.subr.mxu0 0.0
          %2945 = vmatpush2.xpose.msra.mxu0 0.0
          %2946 = vmatprep.subr.mxu0 0.0
          %2947 = vmatpush2.xpose.msra.mxu0 0.0
          %2948 = vmatprep.subr.mxu0 0.0
          %2949 = vmatpush2.xpose.msra.mxu0 0.0
          %2950 = vmatprep.subr.mxu0 0.0
          %2951 = vmatpush2.xpose.msra.mxu0 0.0
          %2952 = vmatprep.subr.mxu0 0.0
          %2953 = vmatpush2.xpose.msra.mxu0 0.0
          %2954 = vmatprep.subr.mxu0 0.0
          %2955 = vmatpush2.xpose.msra.mxu0 0.0
          %2956 = vmatprep.subr.mxu0 0.0
          %2957 = vmatpush2.xpose.msra.mxu0 0.0
          %2958 = vmatprep.subr.mxu0 0.0
          %2959 = vmatpush2.xpose.msra.mxu0 0.0
          %2960 = vmatprep.subr.mxu0 0.0
          %2961 = vmatpush2.xpose.msra.mxu0 0.0
          %2962 = vmatprep.subr.mxu0 0.0
          %2963 = vmatpush2.xpose.msra.mxu0 0.0
          %2964 = vmatprep.subr.mxu0 0.0
          %2965 = vmatpush2.xpose.msra.mxu0 0.0
          %2966 = vmatprep.subr.mxu0 0.0
          %2967 = vmatpush2.xpose.msra.mxu0 0.0
          %2968 = vmatprep.subr.mxu0 0.0
          %2969 = vmatpush2.xpose.msra.mxu0 0.0
          %2970 = vmatprep.subr.mxu0 0.0
          %2971 = vmatpush2.xpose.msra.mxu0 0.0
          %2972 = vmatprep.subr.mxu0 0.0
          %2973 = vmatpush2.xpose.msra.mxu0 0.0
          %2974 = vmatprep.mubr.f32.mxu0 0.0
          %2975 = vmatmul.mubr.f32.gmra.mxu0 %v2909
          %v2976 = vpop.f32.mrf.mxu0
          %v2977 = vadd.f32 0.0, %v2976
          %v2978 = vpop.f32.mrf.mxu0
          %2979 = vdwg.mxu0
          %v2980 = vsel %vm1036, %v2977, -inf
          %2981 = vmax.xlane.f32.xlu0 %v2980
          %v2982 = vpop.xlane.xlu0 %2981
          %v2983 = vsub.f32 %v2977, %v2982
          %v2984 = vmul.f32 %v2983, 1.442695
          %v2985 = vpow.pop %v2984
          %v2986 = vsel %vm1036, %v2985, 0.0
          %2987 = vadd.xlane.f32.xlu0 %v2986
          %v2988 = vpop.xlane.xlu0 %2987
          %v2989 = vrcp.pop %v2988
          %v2990 = vmul.f32 %v2985, %v2989
          %v2992 = vsel %vm1036, %v2990, 0
          %2994 = vmatprep.subr.mxu0 0.0
          %2995 = vmatpush1.msra.mxu0 0.0
          %2996 = vmatprep.subr.mxu0 0.0
          %2997 = vmatpush1.msra.mxu0 0.0
          %2998 = vmatprep.subr.mxu0 0.0
          %2999 = vmatpush1.msra.mxu0 0.0
          %3000 = vmatprep.subr.mxu0 0.0
          %3001 = vmatpush1.msra.mxu0 0.0
          %3002 = vmatprep.subr.mxu0 0.0
          %3003 = vmatpush1.msra.mxu0 0.0
          %3004 = vmatprep.subr.mxu0 0.0
          %3005 = vmatpush1.msra.mxu0 0.0
          %3006 = vmatprep.subr.mxu0 0.0
          %3007 = vmatpush1.msra.mxu0 0.0
          %3008 = vmatprep.subr.mxu0 0.0
          %3009 = vmatpush1.msra.mxu0 0.0
          %3010 = vmatprep.subr.mxu0 0.0
          %3011 = vmatpush1.msra.mxu0 0.0
          %3012 = vmatprep.subr.mxu0 0.0
          %3013 = vmatpush1.msra.mxu0 0.0
          %3014 = vmatprep.subr.mxu0 0.0
          %3015 = vmatpush1.msra.mxu0 0.0
          %3016 = vmatprep.subr.mxu0 0.0
          %3017 = vmatpush1.msra.mxu0 0.0
          %3018 = vmatprep.subr.mxu0 0.0
          %3019 = vmatpush1.msra.mxu0 0.0
          %3020 = vmatprep.subr.mxu0 0.0
          %3021 = vmatpush1.msra.mxu0 0.0
          %3022 = vmatprep.subr.mxu0 0.0
          %3023 = vmatpush1.msra.mxu0 0.0
          %3024 = vmatprep.subr.mxu0 0.0
          %3025 = vmatpush1.msra.mxu0 %v955
          %3026 = vmatprep.subr.mxu0 0.0
          %3027 = vmatpush2.msra.mxu0 0.0
          %3028 = vmatprep.subr.mxu0 0.0
          %3029 = vmatpush2.msra.mxu0 0.0
          %3030 = vmatprep.subr.mxu0 0.0
          %3031 = vmatpush2.msra.mxu0 0.0
          %3032 = vmatprep.subr.mxu0 0.0
          %3033 = vmatpush2.msra.mxu0 0.0
          %3034 = vmatprep.subr.mxu0 0.0
          %3035 = vmatpush2.msra.mxu0 0.0
          %3036 = vmatprep.subr.mxu0 0.0
          %3037 = vmatpush2.msra.mxu0 0.0
          %3038 = vmatprep.subr.mxu0 0.0
          %3039 = vmatpush2.msra.mxu0 0.0
          %3040 = vmatprep.subr.mxu0 0.0
          %3041 = vmatpush2.msra.mxu0 0.0
          %3042 = vmatprep.subr.mxu0 0.0
          %3043 = vmatpush2.msra.mxu0 0.0
          %3044 = vmatprep.subr.mxu0 0.0
          %3045 = vmatpush2.msra.mxu0 0.0
          %3046 = vmatprep.subr.mxu0 0.0
          %3047 = vmatpush2.msra.mxu0 0.0
          %3048 = vmatprep.subr.mxu0 0.0
          %3049 = vmatpush2.msra.mxu0 0.0
          %3050 = vmatprep.subr.mxu0 0.0
          %3051 = vmatpush2.msra.mxu0 0.0
          %3052 = vmatprep.subr.mxu0 0.0
          %3053 = vmatpush2.msra.mxu0 0.0
          %3054 = vmatprep.subr.mxu0 0.0
          %3055 = vmatpush2.msra.mxu0 0.0
          %3056 = vmatprep.subr.mxu0 0.0
          %3057 = vmatpush2.msra.mxu0 0.0
          %3058 = vmatprep.mubr.f32.mxu0 0.0
          %3059 = vmatmul.mubr.f32.gmra.mxu0 %v2992
          %v3060 = vpop.f32.mrf.mxu0
          %v3061 = vadd.f32 0.0, %v3060
          %v3062 = vpop.f32.mrf.mxu0
          %3063 = vdwg.mxu0
          %v3064 = vmul.f32 %v3061, %v2908
          %v3065 = vadd.f32 %v2904, %v3064
          %v3066 = vpack.c.bf16 %v3065, %v3065
          %s3067 = smul.u32 %s659, 16
          %s3068 = smul.addr %s3067, 4
          %s3069 = scalar_lea.vmem %s3, %s3068
          %v3070 = vld [vmem:[%s3069] sm:$0xf]
          %v3071 = vld [vmem:[%s3069 + $0x4] sm:$0xf]
          %v3072 = vld [vmem:[%s3069 + $0x8] sm:$0xf]
          %v3073 = vld [vmem:[%s3069 + $0xc] sm:$0xf]
          %v3074 = vld [vmem:[%s3069 + $0x10] sm:$0xf]
          %v3075 = vld [vmem:[%s3069 + $0x14] sm:$0xf]
          %v3076 = vld [vmem:[%s3069 + $0x18] sm:$0xf]
          %v3077 = vld [vmem:[%s3069 + $0x1c] sm:$0xf]
          %v3078 = vld [vmem:[%s3069 + $0x20] sm:$0xf]
          %v3079 = vld [vmem:[%s3069 + $0x24] sm:$0xf]
          %v3080 = vld [vmem:[%s3069 + $0x28] sm:$0xf]
          %v3081 = vld [vmem:[%s3069 + $0x2c] sm:$0xf]
          %v3082 = vld [vmem:[%s3069 + $0x30] sm:$0xf]
          %v3083 = vld [vmem:[%s3069 + $0x34] sm:$0xf]
          %v3084 = vld [vmem:[%s3069 + $0x38] sm:$0xf]
          %v3085 = vld [vmem:[%s3069 + $0x3c] sm:$0xf]
          %s3086 = scalar_lea.vmem %s4, %s659
          %v3087 = vld [vmem:[%s3086] sm:$0x1]
          %v3089 = vlaneseq
          %v3090 = vshrl.u32 %v3089, 7
          %v3091 = vsub.s32 0, %v3090
          %v3092 = vrot.slane %v3087, %v3091
          %v3110 = vunpack.c.l.b16 %v3070
          %v3111 = vunpack.c.l.b16 %v3071
          %v3112 = vunpack.c.l.b16 %v3072
          %v3113 = vunpack.c.l.b16 %v3073
          %v3114 = vunpack.c.l.b16 %v3074
          %v3115 = vunpack.c.l.b16 %v3075
          %v3116 = vunpack.c.l.b16 %v3076
          %v3117 = vunpack.c.l.b16 %v3077
          %v3118 = vunpack.c.l.b16 %v3078
          %v3119 = vunpack.c.l.b16 %v3079
          %v3120 = vunpack.c.l.b16 %v3080
          %v3121 = vunpack.c.l.b16 %v3081
          %v3122 = vunpack.c.l.b16 %v3082
          %v3123 = vunpack.c.l.b16 %v3083
          %v3124 = vunpack.c.l.b16 %v3084
          %v3125 = vunpack.c.l.b16 %v3085
          %v3126 = vpack.c.b16 %v3111, %v3110
          %v3127 = vpack.c.b16 %v3113, %v3112
          %v3128 = vpack.c.b16 %v3115, %v3114
          %v3129 = vpack.c.b16 %v3117, %v3116
          %v3130 = vpack.c.b16 %v3119, %v3118
          %v3131 = vpack.c.b16 %v3121, %v3120
          %v3132 = vpack.c.b16 %v3123, %v3122
          %v3133 = vpack.c.b16 %v3125, %v3124
          %3142 = vmatprep.subr.bf16.mxu0 0
          %3143 = vmatpush1.bf16.msra.mxu0 %v3133
          %3144 = vmatprep.subr.bf16.mxu0 0
          %3145 = vmatpush1.bf16.msra.mxu0 %v3132
          %3146 = vmatprep.subr.bf16.mxu0 0
          %3147 = vmatpush1.bf16.msra.mxu0 %v3131
          %3148 = vmatprep.subr.bf16.mxu0 0
          %3149 = vmatpush1.bf16.msra.mxu0 %v3130
          %3150 = vmatprep.subr.bf16.mxu0 0
          %3151 = vmatpush1.bf16.msra.mxu0 %v3129
          %3152 = vmatprep.subr.bf16.mxu0 0
          %3153 = vmatpush1.bf16.msra.mxu0 %v3128
          %3154 = vmatprep.subr.bf16.mxu0 0
          %3155 = vmatpush1.bf16.msra.mxu0 %v3127
          %3156 = vmatprep.subr.bf16.mxu0 0
          %3157 = vmatpush1.bf16.msra.mxu0 %v3126
          %3158 = vmatprep.subr.bf16.mxu0 0
          %3159 = vmatpush2.bf16.msra.mxu0 0
          %3160 = vmatprep.subr.bf16.mxu0 0
          %3161 = vmatpush2.bf16.msra.mxu0 0
          %3162 = vmatprep.subr.bf16.mxu0 0
          %3163 = vmatpush2.bf16.msra.mxu0 0
          %3164 = vmatprep.subr.bf16.mxu0 0
          %3165 = vmatpush2.bf16.msra.mxu0 0
          %3166 = vmatprep.subr.bf16.mxu0 0
          %3167 = vmatpush2.bf16.msra.mxu0 0
          %3168 = vmatprep.subr.bf16.mxu0 0
          %3169 = vmatpush2.bf16.msra.mxu0 0
          %3170 = vmatprep.subr.bf16.mxu0 0
          %3171 = vmatpush2.bf16.msra.mxu0 0
          %3172 = vmatprep.subr.bf16.mxu0 0
          %3173 = vmatpush2.bf16.msra.mxu0 0
          %3174 = vmatprep.mubr.bf16.mxu0 0
          %3175 = vmatmul.mubr.bf16.gmra.mxu0 %v3066
          %v3176 = vpop.f32.mrf.mxu0
          %v3177 = vadd.f32 %v3092, %v3176
          %v3178 = vpop.f32.mrf.mxu0
          %v3179 = vpop.f32.mrf.mxu0
          %v3180 = vpop.f32.mrf.mxu0
          %3181 = vdwg.mxu0
          %v3182 = vadd.f32 %v664, %v3177
          %s3183 = scalar_lea.vmem %s11, %s659
          %v3184 = vld [vmem:[%s3183] sm:$0x1]
          %s3185 = scalar_lea.vmem %s12, %s659
          %v3186 = vld [vmem:[%s3185] sm:$0x1]
          %v3187 = vmul.f32 %v3182, %v656
          %3188 = vadd.xlane.f32.xlu0 %v3187
          %v3189 = vpop.xlane.xlu0 %3188
          %v3190 = vmul.f32 %v3189, 0.025641026
          %v3191 = vsub.f32 %v3182, %v3190
          %v3192 = vmul.f32 %v3191, %v656
          %v3193 = vmul.f32 %v3192, %v3192
          %3194 = vadd.xlane.f32.xlu0 %v3193
          %v3195 = vpop.xlane.xlu0 %3194
          %v3196 = vmul.f32 %v3195, 0.025641026
          %v3197 = vadd.f32 %v3196, 1e-05
          %v3198 = vrsqrt.pop %v3197
          %v3199 = vmul.f32 %v3192, %v3198
          %v3201 = vlaneseq
          %v3202 = vshrl.u32 %v3201, 7
          %v3203 = vsub.s32 0, %v3202
          %v3204 = vrot.slane %v3184, %v3203
          %v3206 = vmul.f32 %v3199, %v3204
          %v3208 = vlaneseq
          %v3209 = vshrl.u32 %v3208, 7
          %v3210 = vsub.s32 0, %v3209
          %v3211 = vrot.slane %v3186, %v3210
          %v3213 = vadd.f32 %v3206, %v3211
          %v3214 = vpack.c.bf16 %v3213, %v3213
          %s3215 = smul.u32 %s659, 32
          %s3216 = smul.addr %s3215, 4
          %s3217 = scalar_lea.vmem [#allocation4], %s3216
          %v3218 = vld [vmem:[%s3217] sm:$0xff]
          %v3219 = vld [vmem:[%s3217 + $0x8] sm:$0xff]
          %v3220 = vld [vmem:[%s3217 + $0x10] sm:$0xff]
          %v3221 = vld [vmem:[%s3217 + $0x18] sm:$0xff]
          %v3222 = vld [vmem:[%s3217 + $0x20] sm:$0xff]
          %v3223 = vld [vmem:[%s3217 + $0x28] sm:$0xff]
          %v3224 = vld [vmem:[%s3217 + $0x30] sm:$0xff]
          %v3225 = vld [vmem:[%s3217 + $0x38] sm:$0xff]
          %v3226 = vld [vmem:[%s3217 + $0x40] sm:$0xff]
          %v3227 = vld [vmem:[%s3217 + $0x48] sm:$0xff]
          %v3228 = vld [vmem:[%s3217 + $0x50] sm:$0xff]
          %v3229 = vld [vmem:[%s3217 + $0x58] sm:$0xff]
          %v3230 = vld [vmem:[%s3217 + $0x60] sm:$0xff]
          %v3231 = vld [vmem:[%s3217 + $0x68] sm:$0xff]
          %v3232 = vld [vmem:[%s3217 + $0x70] sm:$0xff]
          %v3233 = vld [vmem:[%s3217 + $0x78] sm:$0xff]
          %s3234 = smul.u32 %s659, 2
          %s3235 = scalar_lea.vmem %s8, %s3234
          %v3236 = vld [vmem:[%s3235] sm:$0x3]
          %v3238 = vlaneseq
          %v3239 = vshrl.u32 %v3238, 7
          %v3240 = vsub.s32 0, %v3239
          %v3241 = vrot.slane %v3236, %v3240
          %v3242 = vlaneseq
          %v3243 = vshrl.u32 %v3242, 7
          %v3244 = vsub.s32 1, %v3243
          %v3245 = vrot.slane %v3236, %v3244
          %v3264 = vunpack.c.l.b16 %v3218
          %v3265 = vunpack.c.h.b16 %v3218
          %v3266 = vunpack.c.l.b16 %v3219
          %v3267 = vunpack.c.h.b16 %v3219
          %v3268 = vunpack.c.l.b16 %v3220
          %v3269 = vunpack.c.h.b16 %v3220
          %v3270 = vunpack.c.l.b16 %v3221
          %v3271 = vunpack.c.h.b16 %v3221
          %v3272 = vunpack.c.l.b16 %v3222
          %v3273 = vunpack.c.h.b16 %v3222
          %v3274 = vunpack.c.l.b16 %v3223
          %v3275 = vunpack.c.h.b16 %v3223
          %v3276 = vunpack.c.l.b16 %v3224
          %v3277 = vunpack.c.h.b16 %v3224
          %v3278 = vunpack.c.l.b16 %v3225
          %v3279 = vunpack.c.h.b16 %v3225
          %v3280 = vunpack.c.l.b16 %v3226
          %v3281 = vunpack.c.h.b16 %v3226
          %v3282 = vunpack.c.l.b16 %v3227
          %v3283 = vunpack.c.h.b16 %v3227
          %v3284 = vunpack.c.l.b16 %v3228
          %v3285 = vunpack.c.h.b16 %v3228
          %v3286 = vunpack.c.l.b16 %v3229
          %v3287 = vunpack.c.h.b16 %v3229
          %v3288 = vunpack.c.l.b16 %v3230
          %v3289 = vunpack.c.h.b16 %v3230
          %v3290 = vunpack.c.l.b16 %v3231
          %v3291 = vunpack.c.h.b16 %v3231
          %v3292 = vunpack.c.l.b16 %v3232
          %v3293 = vunpack.c.h.b16 %v3232
          %v3294 = vunpack.c.l.b16 %v3233
          %v3295 = vunpack.c.h.b16 %v3233
          %v3296 = vpack.c.b16 %v3266, %v3264
          %v3297 = vpack.c.b16 %v3267, %v3265
          %v3298 = vpack.c.b16 %v3270, %v3268
          %v3299 = vpack.c.b16 %v3271, %v3269
          %v3300 = vpack.c.b16 %v3274, %v3272
          %v3301 = vpack.c.b16 %v3275, %v3273
          %v3302 = vpack.c.b16 %v3278, %v3276
          %v3303 = vpack.c.b16 %v3279, %v3277
          %v3304 = vpack.c.b16 %v3282, %v3280
          %v3305 = vpack.c.b16 %v3283, %v3281
          %v3306 = vpack.c.b16 %v3286, %v3284
          %v3307 = vpack.c.b16 %v3287, %v3285
          %v3308 = vpack.c.b16 %v3290, %v3288
          %v3309 = vpack.c.b16 %v3291, %v3289
          %v3310 = vpack.c.b16 %v3294, %v3292
          %v3311 = vpack.c.b16 %v3295, %v3293
          %3328 = vmatprep.subr.bf16.mxu0 %v3311
          %3329 = vmatpush1.bf16.msra.mxu0 %v3310
          %3330 = vmatprep.subr.bf16.mxu0 %v3309
          %3331 = vmatpush1.bf16.msra.mxu0 %v3308
          %3332 = vmatprep.subr.bf16.mxu0 %v3307
          %3333 = vmatpush1.bf16.msra.mxu0 %v3306
          %3334 = vmatprep.subr.bf16.mxu0 %v3305
          %3335 = vmatpush1.bf16.msra.mxu0 %v3304
          %3336 = vmatprep.subr.bf16.mxu0 %v3303
          %3337 = vmatpush1.bf16.msra.mxu0 %v3302
          %3338 = vmatprep.subr.bf16.mxu0 %v3301
          %3339 = vmatpush1.bf16.msra.mxu0 %v3300
          %3340 = vmatprep.subr.bf16.mxu0 %v3299
          %3341 = vmatpush1.bf16.msra.mxu0 %v3298
          %3342 = vmatprep.subr.bf16.mxu0 %v3297
          %3343 = vmatpush1.bf16.msra.mxu0 %v3296
          %3344 = vmatprep.subr.bf16.mxu0 0
          %3345 = vmatpush2.bf16.msra.mxu0 0
          %3346 = vmatprep.subr.bf16.mxu0 0
          %3347 = vmatpush2.bf16.msra.mxu0 0
          %3348 = vmatprep.subr.bf16.mxu0 0
          %3349 = vmatpush2.bf16.msra.mxu0 0
          %3350 = vmatprep.subr.bf16.mxu0 0
          %3351 = vmatpush2.bf16.msra.mxu0 0
          %3352 = vmatprep.subr.bf16.mxu0 0
          %3353 = vmatpush2.bf16.msra.mxu0 0
          %3354 = vmatprep.subr.bf16.mxu0 0
          %3355 = vmatpush2.bf16.msra.mxu0 0
          %3356 = vmatprep.subr.bf16.mxu0 0
          %3357 = vmatpush2.bf16.msra.mxu0 0
          %3358 = vmatprep.subr.bf16.mxu0 0
          %3359 = vmatpush2.bf16.msra.mxu0 0
          %3360 = vmatprep.mubr.bf16.mxu0 0
          %3361 = vmatmul.mubr.bf16.gmra.mxu0 %v3214
          %v3362 = vpop.f32.mrf.mxu0
          %v3363 = vadd.f32 %v3241, %v3362
          %v3364 = vpop.f32.mrf.mxu0
          %v3365 = vadd.f32 %v3245, %v3364
          %v3366 = vpop.f32.mrf.mxu0
          %v3367 = vpop.f32.mrf.mxu0
          %3368 = vdwg.mxu0
          %v3369 = vmax.f32 %v3363, 0.0
          %v3370 = vmax.f32 %v3365, 0.0
          %v3371 = vpack.c.bf16 %v3369, %v3369
          %v3372 = vpack.c.bf16 %v3370, %v3370
          %s3373 = smul.addr %s3215, 4
          %s3374 = scalar_lea.vmem [#allocation6], %s3373
          %v3375 = vld [vmem:[%s3374] sm:$0xf]
          %v3376 = vld [vmem:[%s3374 + $0x4] sm:$0xf]
          %v3377 = vld [vmem:[%s3374 + $0x8] sm:$0xf]
          %v3378 = vld [vmem:[%s3374 + $0xc] sm:$0xf]
          %v3379 = vld [vmem:[%s3374 + $0x10] sm:$0xf]
          %v3380 = vld [vmem:[%s3374 + $0x14] sm:$0xf]
          %v3381 = vld [vmem:[%s3374 + $0x18] sm:$0xf]
          %v3382 = vld [vmem:[%s3374 + $0x1c] sm:$0xf]
          %v3383 = vld [vmem:[%s3374 + $0x20] sm:$0xf]
          %v3384 = vld [vmem:[%s3374 + $0x24] sm:$0xf]
          %v3385 = vld [vmem:[%s3374 + $0x28] sm:$0xf]
          %v3386 = vld [vmem:[%s3374 + $0x2c] sm:$0xf]
          %v3387 = vld [vmem:[%s3374 + $0x30] sm:$0xf]
          %v3388 = vld [vmem:[%s3374 + $0x34] sm:$0xf]
          %v3389 = vld [vmem:[%s3374 + $0x38] sm:$0xf]
          %v3390 = vld [vmem:[%s3374 + $0x3c] sm:$0xf]
          %v3391 = vld [vmem:[%s3374 + $0x40] sm:$0xf]
          %v3392 = vld [vmem:[%s3374 + $0x44] sm:$0xf]
          %v3393 = vld [vmem:[%s3374 + $0x48] sm:$0xf]
          %v3394 = vld [vmem:[%s3374 + $0x4c] sm:$0xf]
          %v3395 = vld [vmem:[%s3374 + $0x50] sm:$0xf]
          %v3396 = vld [vmem:[%s3374 + $0x54] sm:$0xf]
          %v3397 = vld [vmem:[%s3374 + $0x58] sm:$0xf]
          %v3398 = vld [vmem:[%s3374 + $0x5c] sm:$0xf]
          %v3399 = vld [vmem:[%s3374 + $0x60] sm:$0xf]
          %v3400 = vld [vmem:[%s3374 + $0x64] sm:$0xf]
          %v3401 = vld [vmem:[%s3374 + $0x68] sm:$0xf]
          %v3402 = vld [vmem:[%s3374 + $0x6c] sm:$0xf]
          %v3403 = vld [vmem:[%s3374 + $0x70] sm:$0xf]
          %v3404 = vld [vmem:[%s3374 + $0x74] sm:$0xf]
          %v3405 = vld [vmem:[%s3374 + $0x78] sm:$0xf]
          %v3406 = vld [vmem:[%s3374 + $0x7c] sm:$0xf]
          %s3407 = scalar_lea.vmem %s10, %s659
          %v3408 = vld [vmem:[%s3407] sm:$0x1]
          %v3410 = vlaneseq
          %v3411 = vshrl.u32 %v3410, 7
          %v3412 = vsub.s32 0, %v3411
          %v3413 = vrot.slane %v3408, %v3412
          %v3447 = vunpack.c.l.b16 %v3375
          %v3448 = vunpack.c.l.b16 %v3376
          %v3449 = vunpack.c.l.b16 %v3377
          %v3450 = vunpack.c.l.b16 %v3378
          %v3451 = vunpack.c.l.b16 %v3379
          %v3452 = vunpack.c.l.b16 %v3380
          %v3453 = vunpack.c.l.b16 %v3381
          %v3454 = vunpack.c.l.b16 %v3382
          %v3455 = vunpack.c.l.b16 %v3383
          %v3456 = vunpack.c.l.b16 %v3384
          %v3457 = vunpack.c.l.b16 %v3385
          %v3458 = vunpack.c.l.b16 %v3386
          %v3459 = vunpack.c.l.b16 %v3387
          %v3460 = vunpack.c.l.b16 %v3388
          %v3461 = vunpack.c.l.b16 %v3389
          %v3462 = vunpack.c.l.b16 %v3390
          %v3463 = vunpack.c.l.b16 %v3391
          %v3464 = vunpack.c.l.b16 %v3392
          %v3465 = vunpack.c.l.b16 %v3393
          %v3466 = vunpack.c.l.b16 %v3394
          %v3467 = vunpack.c.l.b16 %v3395
          %v3468 = vunpack.c.l.b16 %v3396
          %v3469 = vunpack.c.l.b16 %v3397
          %v3470 = vunpack.c.l.b16 %v3398
          %v3471 = vunpack.c.l.b16 %v3399
          %v3472 = vunpack.c.l.b16 %v3400
          %v3473 = vunpack.c.l.b16 %v3401
          %v3474 = vunpack.c.l.b16 %v3402
          %v3475 = vunpack.c.l.b16 %v3403
          %v3476 = vunpack.c.l.b16 %v3404
          %v3477 = vunpack.c.l.b16 %v3405
          %v3478 = vunpack.c.l.b16 %v3406
          %v3479 = vpack.c.b16 %v3448, %v3447
          %v3480 = vpack.c.b16 %v3450, %v3449
          %v3481 = vpack.c.b16 %v3452, %v3451
          %v3482 = vpack.c.b16 %v3454, %v3453
          %v3483 = vpack.c.b16 %v3456, %v3455
          %v3484 = vpack.c.b16 %v3458, %v3457
          %v3485 = vpack.c.b16 %v3460, %v3459
          %v3486 = vpack.c.b16 %v3462, %v3461
          %v3487 = vpack.c.b16 %v3464, %v3463
          %v3488 = vpack.c.b16 %v3466, %v3465
          %v3489 = vpack.c.b16 %v3468, %v3467
          %v3490 = vpack.c.b16 %v3470, %v3469
          %v3491 = vpack.c.b16 %v3472, %v3471
          %v3492 = vpack.c.b16 %v3474, %v3473
          %v3493 = vpack.c.b16 %v3476, %v3475
          %v3494 = vpack.c.b16 %v3478, %v3477
          %3511 = vmatprep.subr.bf16.mxu0 0
          %3512 = vmatpush1.bf16.msra.mxu0 %v3486
          %3513 = vmatprep.subr.bf16.mxu0 0
          %3514 = vmatpush1.bf16.msra.mxu0 %v3485
          %3515 = vmatprep.subr.bf16.mxu0 0
          %3516 = vmatpush1.bf16.msra.mxu0 %v3484
          %3517 = vmatprep.subr.bf16.mxu0 0
          %3518 = vmatpush1.bf16.msra.mxu0 %v3483
          %3519 = vmatprep.subr.bf16.mxu0 0
          %3520 = vmatpush1.bf16.msra.mxu0 %v3482
          %3521 = vmatprep.subr.bf16.mxu0 0
          %3522 = vmatpush1.bf16.msra.mxu0 %v3481
          %3523 = vmatprep.subr.bf16.mxu0 0
          %3524 = vmatpush1.bf16.msra.mxu0 %v3480
          %3525 = vmatprep.subr.bf16.mxu0 0
          %3526 = vmatpush1.bf16.msra.mxu0 %v3479
          %3527 = vmatprep.subr.bf16.mxu0 0
          %3528 = vmatpush2.bf16.msra.mxu0 %v3494
          %3529 = vmatprep.subr.bf16.mxu0 0
          %3530 = vmatpush2.bf16.msra.mxu0 %v3493
          %3531 = vmatprep.subr.bf16.mxu0 0
          %3532 = vmatpush2.bf16.msra.mxu0 %v3492
          %3533 = vmatprep.subr.bf16.mxu0 0
          %3534 = vmatpush2.bf16.msra.mxu0 %v3491
          %3535 = vmatprep.subr.bf16.mxu0 0
          %3536 = vmatpush2.bf16.msra.mxu0 %v3490
          %3537 = vmatprep.subr.bf16.mxu0 0
          %3538 = vmatpush2.bf16.msra.mxu0 %v3489
          %3539 = vmatprep.subr.bf16.mxu0 0
          %3540 = vmatpush2.bf16.msra.mxu0 %v3488
          %3541 = vmatprep.subr.bf16.mxu0 0
          %3542 = vmatpush2.bf16.msra.mxu0 %v3487
          %3543 = vmatprep.mubr.bf16.mxu0 %v3372
          %3544 = vmatmul.mubr.bf16.gmra.mxu0 %v3371
          %v3545 = vpop.f32.mrf.mxu0
          %v3546 = vadd.f32 %v3413, %v3545
          %v3547 = vpop.f32.mrf.mxu0
          %v3548 = vpop.f32.mrf.mxu0
          %v3549 = vpop.f32.mrf.mxu0
          %3550 = vdwg.mxu0
          %v3551 = vadd.f32 %v3182, %v3546
        $region105: #{bertphone_forward.1} parent=83 // loop_footer
          %s663 = sadd.s32 1, %s659
        $region106: #{bertphone_forward.1} parent=83 // loop_footer_branch
          %658 = sbr.rel target = $region102
        $region107: #{bertphone_forward.1} parent=83 // loop_exit
          _
        %v3552 = vld [vmem:[%s13] sm:$0x1]
        %v3553 = vld [vmem:[%s14] sm:$0x1]
        %v3554 = vmul.f32 %v664, %v656
        %3555 = vadd.xlane.f32.xlu0 %v3554
        %v3556 = vpop.xlane.xlu0 %3555
        %v3557 = vmul.f32 %v3556, 0.025641026
        %v3558 = vsub.f32 %v664, %v3557
        %v3559 = vmul.f32 %v3558, %v656
        %v3560 = vmul.f32 %v3559, %v3559
        %3561 = vadd.xlane.f32.xlu0 %v3560
        %v3562 = vpop.xlane.xlu0 %3561
        %v3563 = vmul.f32 %v3562, 0.025641026
        %v3564 = vadd.f32 %v3563, 1e-05
        %v3565 = vrsqrt.pop %v3564
        %v3566 = vmul.f32 %v3559, %v3565
        %v3568 = vlaneseq
        %v3569 = vshrl.u32 %v3568, 7
        %v3570 = vsub.s32 0, %v3569
        %v3571 = vrot.slane %v3552, %v3570
        %v3573 = vmul.f32 %v3566, %v3571
        %v3575 = vlaneseq
        %v3576 = vshrl.u32 %v3575, 7
        %v3577 = vsub.s32 0, %v3576
        %v3578 = vrot.slane %v3553, %v3577
        %v3580 = vadd.f32 %v3573, %v3578
        %3581 = vst [vmem:[%s642] sm:$0xff] %v3580
        %v3582 = vpack.c.bf16 %v3580, %v3580
        %v3583 = vld [vmem:[#allocation7] sm:$0xff]
        %v3584 = vld [vmem:[#allocation7 + $0x8] sm:$0xff]
        %v3585 = vld [vmem:[#allocation7 + $0x10] sm:$0xff]
        %v3586 = vld [vmem:[#allocation7 + $0x18] sm:$0xff]
        %v3587 = vld [vmem:[#allocation7 + $0x20] sm:$0xff]
        %v3588 = vld [vmem:[#allocation7 + $0x28] sm:$0xff]
        %v3589 = vld [vmem:[#allocation7 + $0x30] sm:$0xff]
        %v3590 = vld [vmem:[#allocation7 + $0x38] sm:$0xff]
        %v3591 = vld [vmem:[#allocation7 + $0x40] sm:$0xff]
        %v3592 = vld [vmem:[#allocation7 + $0x48] sm:$0xff]
        %v3593 = vld [vmem:[#allocation7 + $0x50] sm:$0xff]
        %v3594 = vld [vmem:[#allocation7 + $0x58] sm:$0xff]
        %v3595 = vld [vmem:[#allocation7 + $0x60] sm:$0xff]
        %v3596 = vld [vmem:[#allocation7 + $0x68] sm:$0xff]
        %v3597 = vld [vmem:[#allocation7 + $0x70] sm:$0xff]
        %v3598 = vld [vmem:[#allocation7 + $0x78] sm:$0xff]
        %v3615 = vunpack.c.l.b16 %v3583
        %v3616 = vunpack.c.h.b16 %v3583
        %v3617 = vunpack.c.l.b16 %v3584
        %v3618 = vunpack.c.h.b16 %v3584
        %v3619 = vunpack.c.l.b16 %v3585
        %v3620 = vunpack.c.h.b16 %v3585
        %v3621 = vunpack.c.l.b16 %v3586
        %v3622 = vunpack.c.h.b16 %v3586
        %v3623 = vunpack.c.l.b16 %v3587
        %v3624 = vunpack.c.h.b16 %v3587
        %v3625 = vunpack.c.l.b16 %v3588
        %v3626 = vunpack.c.h.b16 %v3588
        %v3627 = vunpack.c.l.b16 %v3589
        %v3628 = vunpack.c.h.b16 %v3589
        %v3629 = vunpack.c.l.b16 %v3590
        %v3630 = vunpack.c.h.b16 %v3590
        %v3631 = vunpack.c.l.b16 %v3591
        %v3632 = vunpack.c.h.b16 %v3591
        %v3633 = vunpack.c.l.b16 %v3592
        %v3634 = vunpack.c.h.b16 %v3592
        %v3635 = vunpack.c.l.b16 %v3593
        %v3636 = vunpack.c.h.b16 %v3593
        %v3637 = vunpack.c.l.b16 %v3594
        %v3638 = vunpack.c.h.b16 %v3594
        %v3639 = vunpack.c.l.b16 %v3595
        %v3640 = vunpack.c.h.b16 %v3595
        %v3641 = vunpack.c.l.b16 %v3596
        %v3642 = vunpack.c.h.b16 %v3596
        %v3643 = vunpack.c.l.b16 %v3597
        %v3644 = vunpack.c.h.b16 %v3597
        %v3645 = vunpack.c.l.b16 %v3598
        %v3646 = vunpack.c.h.b16 %v3598
        %v3647 = vpack.c.b16 %v3617, %v3615
        %v3648 = vpack.c.b16 %v3618, %v3616
        %v3649 = vpack.c.b16 %v3621, %v3619
        %v3650 = vpack.c.b16 %v3622, %v3620
        %v3651 = vpack.c.b16 %v3625, %v3623
        %v3652 = vpack.c.b16 %v3626, %v3624
        %v3653 = vpack.c.b16 %v3629, %v3627
        %v3654 = vpack.c.b16 %v3630, %v3628
        %v3655 = vpack.c.b16 %v3633, %v3631
        %v3656 = vpack.c.b16 %v3634, %v3632
        %v3657 = vpack.c.b16 %v3637, %v3635
        %v3658 = vpack.c.b16 %v3638, %v3636
        %v3659 = vpack.c.b16 %v3641, %v3639
        %v3660 = vpack.c.b16 %v3642, %v3640
        %v3661 = vpack.c.b16 %v3645, %v3643
        %v3662 = vpack.c.b16 %v3646, %v3644
        %3679 = vmatprep.subr.bf16.mxu0 %v3662
        %3680 = vmatpush1.bf16.msra.mxu0 %v3661
        %3681 = vmatprep.subr.bf16.mxu0 %v3660
        %3682 = vmatpush1.bf16.msra.mxu0 %v3659
        %3683 = vmatprep.subr.bf16.mxu0 %v3658
        %3684 = vmatpush1.bf16.msra.mxu0 %v3657
        %3685 = vmatprep.subr.bf16.mxu0 %v3656
        %3686 = vmatpush1.bf16.msra.mxu0 %v3655
        %3687 = vmatprep.subr.bf16.mxu0 %v3654
        %3688 = vmatpush1.bf16.msra.mxu0 %v3653
        %3689 = vmatprep.subr.bf16.mxu0 %v3652
        %3690 = vmatpush1.bf16.msra.mxu0 %v3651
        %3691 = vmatprep.subr.bf16.mxu0 %v3650
        %3692 = vmatpush1.bf16.msra.mxu0 %v3649
        %3693 = vmatprep.subr.bf16.mxu0 %v3648
        %3694 = vmatpush1.bf16.msra.mxu0 %v3647
        %3695 = vmatprep.subr.bf16.mxu0 0
        %3696 = vmatpush2.bf16.msra.mxu0 0
        %3697 = vmatprep.subr.bf16.mxu0 0
        %3698 = vmatpush2.bf16.msra.mxu0 0
        %3699 = vmatprep.subr.bf16.mxu0 0
        %3700 = vmatpush2.bf16.msra.mxu0 0
        %3701 = vmatprep.subr.bf16.mxu0 0
        %3702 = vmatpush2.bf16.msra.mxu0 0
        %3703 = vmatprep.subr.bf16.mxu0 0
        %3704 = vmatpush2.bf16.msra.mxu0 0
        %3705 = vmatprep.subr.bf16.mxu0 0
        %3706 = vmatpush2.bf16.msra.mxu0 0
        %3707 = vmatprep.subr.bf16.mxu0 0
        %3708 = vmatpush2.bf16.msra.mxu0 0
        %3709 = vmatprep.subr.bf16.mxu0 0
        %3710 = vmatpush2.bf16.msra.mxu0 0
        %3711 = vmatprep.mubr.bf16.mxu0 0
        %3712 = vmatmul.mubr.bf16.gmra.mxu0 %v3582
        %v3713 = vpop.f32.mrf.mxu0
        %v3714 = vadd.f32 0.0, %v3713
        %v3715 = vpop.f32.mrf.mxu0
        %v3716 = vadd.f32 0.0, %v3715
        %v3717 = vpop.f32.mrf.mxu0
        %v3718 = vpop.f32.mrf.mxu0
        %3719 = vdwg.mxu0
        %vm3720 = vcmp.lt.s32.totalorder %v653, 86
        %v3721 = vsel %vm3720, %v3714, -1e+30
        %3722 = vmax.xlane.f32.xlu0 %v3721
        %v3723 = vpop.xlane.xlu0 %3722
        %v3724 = vsub.f32 %v3714, %v3723
        %v3725 = vmul.f32 %v3724, 1.442695
        %v3726 = vpow.pop %v3725
        %v3727 = vsel %vm3720, %v3726, 0.0
        %3728 = vadd.xlane.f32.xlu0 %v3727
        %v3729 = vpop.xlane.xlu0 %3728
        %v3730 = vlog2.pop %v3729
        %v3731 = vmul.f32 %v3730, 0.6931472
        %v3732 = vsub.f32 %v3724, %v3731
        %3733 = vst [vmem:[%s646] sm:$0xff] %v3732
        %3734 = vst [vmem:[%s650] sm:$0xff] %v3716
        %p3735 = scmp.lt.s32.totalorder %s33, 1
        %s3736 = scalar_select %p3735, %s33, 1
        %s3737 = smul.addr %s3736, 8
        %s3738 = scalar_lea.vmem %s16, %s3737
        %p3739 = scmp.lt.s32.totalorder %s33, 1
        %s3740 = scalar_select %p3739, %s33, 1
        %s3741 = smul.addr %s3740, 8
        %s3742 = scalar_lea.vmem %s17, %s3741
        %p3743 = scmp.lt.s32.totalorder %s33, 1
        %s3744 = scalar_select %p3743, %s33, 1
        %s3745 = smul.addr %s3744, 8
        %s3746 = scalar_lea.vmem %s18, %s3745
        // Predicated region
        $region108: #{bertphone_forward.1} parent=83 // pred_check
          %p3747 = pneg %p392
        $region109: #{bertphone_forward.1} parent=83 // pred_check_branch
          %3749 = sbr.rel (%p3747) target = $region111
        $region110: #{bertphone_forward.1} parent=83 // pred_region
          _
        $region111: #{bertphone_forward.1} parent=83 // pred_fallthru
          _
        // Predicated region
        $region112: #{bertphone_forward.1} parent=83 // pred_check
          %p3750 = pneg %p418
        $region113: #{bertphone_forward.1} parent=83 // pred_check_branch
          %3752 = sbr.rel (%p3750) target = $region115
        $region114: #{bertphone_forward.1} parent=83 // pred_region
          _
        $region115: #{bertphone_forward.1} parent=83 // pred_fallthru
          _
        // Predicated region
        $region116: #{bertphone_forward.1} parent=83 // pred_check
          %p3753 = pneg %p444
        $region117: #{bertphone_forward.1} parent=83 // pred_check_branch
          %3755 = sbr.rel (%p3753) target = $region119
        $region118: #{bertphone_forward.1} parent=83 // pred_region
          _
        $region119: #{bertphone_forward.1} parent=83 // pred_fallthru
          _
      $region84: #{bertphone_forward.1} parent=5 // pred_fallthru
        _
      %p3756 = scmp.le.s32.totalorder 2, %s28
      // Predicated region
      $region120: #{bertphone_forward.1} parent=5 // pred_check
        %p3757 = pneg %p3756
      $region121: #{bertphone_forward.1} parent=5 // pred_check_branch
        %3759 = sbr.rel (%p3757) target = $region123
      $region122: #{bertphone_forward.1} parent=5 // pred_region
        %s3760 = ssub.s32 %s28, 2
        // Predicated region
        $region124: #{bertphone_forward.1} parent=122 // pred_check
          %p3761 = pneg %p398
        $region125: #{bertphone_forward.1} parent=122 // pred_check_branch
          %3763 = sbr.rel (%p3761) target = $region127
        $region126: #{bertphone_forward.1} parent=122 // pred_region
          %p3764 = scmp.lt.s32.totalorder %s34, 1
          %s3765 = scalar_select %p3764, %s34, 1
          %s3766 = smul.addr %s3765, 8
          %s3767 = scalar_lea.vmem %s16, %s3766
        $region127: #{bertphone_forward.1} parent=122 // pred_fallthru
          _
        // Predicated region
        $region128: #{bertphone_forward.1} parent=122 // pred_check
          %p3768 = pneg %p424
        $region129: #{bertphone_forward.1} parent=122 // pred_check_branch
          %3770 = sbr.rel (%p3768) target = $region131
        $region130: #{bertphone_forward.1} parent=122 // pred_region
          %p3771 = scmp.lt.s32.totalorder %s34, 1
          %s3772 = scalar_select %p3771, %s34, 1
          %s3773 = smul.addr %s3772, 8
          %s3774 = scalar_lea.vmem %s17, %s3773
        $region131: #{bertphone_forward.1} parent=122 // pred_fallthru
          _
        // Predicated region
        $region132: #{bertphone_forward.1} parent=122 // pred_check
          %p3775 = pneg %p450
        $region133: #{bertphone_forward.1} parent=122 // pred_check_branch
          %3777 = sbr.rel (%p3775) target = $region135
        $region134: #{bertphone_forward.1} parent=122 // pred_region
          %p3778 = scmp.lt.s32.totalorder %s34, 1
          %s3779 = scalar_select %p3778, %s34, 1
          %s3780 = smul.addr %s3779, 8
          %s3781 = scalar_lea.vmem %s18, %s3780
        $region135: #{bertphone_forward.1} parent=122 // pred_fallthru
          _
      $region123: #{bertphone_forward.1} parent=5 // pred_fallthru
        _
    $region6: #{bertphone_forward.1} parent=1 // loop_footer
      %s32 = sadd.s32 1, %s28
    $region7: #{bertphone_forward.1} parent=1 // loop_footer_branch
      %27 = sbr.rel target = $region3
    $region8: #{bertphone_forward.1} parent=1 // loop_exit
      _
    %3782 = vsyncpa [#allocation3], 1
    %s3783 = scalar_lea.sflag [#allocation3], 1
    %3784 = vsyncpa %s3783, 1
    %3785 = vsyncpa [#allocation5], 1
    %3786 = vsyncpa [#allocation8], 1

</llo_original>
